<compile_context>
chip_gen: v7x
topology: tpu7x:2x2x1
jax: 0.10.0
libtpu: 0.0.40
codegen_flags: <defaults>
</compile_context>

<pallas_src>
import functools

import jax
import jax.numpy as jnp
from jax import lax
from jax.experimental import pallas as pl
from jax.experimental.pallas import tpu as pltpu

BN_EPS = 1e-5
LANE = 128


def _round_up(x, m):
    return ((x + m - 1) // m) * m


def _pick_tile_h(H, W):
    # ~2048 output rows (tile_h * W) per grid step amortizes the ~0.35us/step
    # overhead; multiple of 8 keeps the (tile_h, Wp) sublane merge free.
    th = _round_up(max(1, 2048 // max(W, 1)), 8)
    th = min(th, _round_up(H, 8))
    return max(8, min(th, 256))


def _vmem_limit_bytes():
    # Generation-aware cap: v5e/v6e have 128 MiB physical VMEM, v7x only 64 MiB.
    try:
        cap = int(pltpu.get_tpu_info().vmem_capacity_bytes)
    except Exception:
        cap = 64 * 1024 * 1024
    return min(cap // 2, 64 * 1024 * 1024)


# --------------------- pass 1: fused conv (im2col-free) + BN partial stats ---------------------
def conv_stats_kernel(x_ref, w_ref, y_ref, sum_ref, sumsq_ref, *, num_hb, h_real):
    """K*K accumulating MXU dots over a haloed input slab + per-tile channel sums.

    x_ref:     (1, tile_h+K-1, Wp, Cin)  bf16  zero-padded haloed input slab
    w_ref:     (K*K, Cin, COUT_PAD)      bf16  conv weights, tap-major
    y_ref:     (1, tile_h, W, Cout)      bf16  conv output tile (pre-BN)
    sum_ref:   (1, 1, COUT_PAD)          f32   per-tile channel sum
    sumsq_ref: (1, 1, COUT_PAD)          f32   per-tile channel sum of squares
    """
    _, th_halo, wp, cin = x_ref.shape
    _, tile_h, w_out, cout = y_ref.shape
    cout_pad = sum_ref.shape[-1]
    k = th_halo - tile_h + 1  # kernel size

    x = x_ref[0]        # (tile_h+K-1, Wp, Cin)
    w = w_ref[...]      # (K*K, Cin, COUT_PAD)

    acc = jnp.zeros((tile_h, w_out, cout_pad), jnp.float32)
    for kh in range(k):
        # One contiguous (tile_h*Wp, Cin) view per kh; Wp is a multiple of 8 so the
        # merge is a free sublane reinterpretation. The kw shift is applied on the
        # matmul output via a sublane slice.
        lhs = x[kh:kh + tile_h].reshape(tile_h * wp, cin)
        for kw in range(k):
            t = jnp.dot(lhs, w[kh * k + kw], preferred_element_type=jnp.float32)
            acc = acc + t.reshape(tile_h, wp, cout_pad)[:, kw:kw + w_out, :]

    # Conv output tile at true Cout width, bf16 (halves / shrinks the HBM round trip).
    y_ref[0] = acc[:, :, :cout].astype(y_ref.dtype)

    # BN batch statistics. Rows that only exist because H was padded up to a multiple
    # of tile_h convolve real boundary rows (non-zero), so mask them out of the sums.
    acc_stats = acc
    if num_hb * tile_h != h_real:
        hb = pl.program_id(0) % num_hb
        row = hb * tile_h + lax.broadcasted_iota(jnp.int32, (tile_h, w_out, 1), 0)
        acc_stats = jnp.where(row < h_real, acc, 0.0)
    sum_ref[...] = jnp.sum(acc_stats, axis=(0, 1)).reshape(1, 1, cout_pad)
    sumsq_ref[...] = jnp.sum(acc_stats * acc_stats, axis=(0, 1)).reshape(1, 1, cout_pad)


# ----------------------------- pass 2: BN affine + ReLU (streaming) ----------------------------
def bn_relu_kernel(y_ref, scale_ref, shift_ref, o_ref):
    """o = max(scale*y + shift, 0), computed in f32 (v5e-safe)."""
    y = y_ref[...].astype(jnp.float32)
    o_ref[...] = jnp.maximum(y * scale_ref[...] + shift_ref[...], 0.0)


# ------------------------------------------- wrapper -------------------------------------------
def _cbr_forward(x_nchw, conv_w, conv_b, bn_gamma, bn_beta, *, tile_h=None):
    """x_nchw: (N, Cin, H, W) f32. conv_w: (Cout, Cin, K, K) PyTorch layout.

    conv_b is accepted for API parity but unused: a conv bias added before train-mode
    BatchNorm is exactly cancelled by the batch-mean subtraction.
    """
    del conv_b
    N, Cin, H, W = x_nchw.shape
    Cout, cin_w, K, K2 = conv_w.shape
    assert cin_w == Cin and K == K2 and K % 2 == 1
    p = (K - 1) // 2  # "same" padding, stride 1 (module defaults)

    if tile_h is None:
        tile_h = _pick_tile_h(H, W)
    tile_h = max(1, min(int(tile_h), _round_up(H, 8)))

    H_t = _round_up(H, tile_h)
    num_hb = H_t // tile_h
    Wp = _round_up(W + K - 1, 8)          # padded width incl. halo, sublane-aligned
    COUT_PAD = _round_up(Cout, LANE)      # lane-dense matmul N dim
    T = N * num_hb

    # --- glue: NCHW -> NHWC bf16, zero pad, halo-overlapped H blocks (~1.1-1.25x of x) ---
    x = jnp.transpose(x_nchw, (0, 2, 3, 1)).astype(jnp.bfloat16)
    x_pad = jnp.pad(x, ((0, 0),
                        (p, H_t + K - 1 - H - p),
                        (p, Wp - W - p),
                        (0, 0)))                          # (N, H_t+K-1, Wp, Cin)
    if num_hb == 1:
        x_blocks = x_pad[:, None]
    else:
        x_blocks = jnp.stack(
            [x_pad[:, j * tile_h:j * tile_h + tile_h + K - 1] for j in range(num_hb)],
            axis=1)
    x_blocks = x_blocks.reshape(T, tile_h + K - 1, Wp, Cin)

    # Weights (Cout, Cin, kh, kw) -> (kh*K+kw, Cin, COUT_PAD), bf16, zero-padded channels.
    w_taps = jnp.transpose(conv_w, (2, 3, 1, 0)).reshape(K * K, Cin, Cout)
    w_taps = jnp.pad(w_taps, ((0, 0), (0, 0), (0, COUT_PAD - Cout))).astype(jnp.bfloat16)

    vmem_limit = _vmem_limit_bytes()

    # --- pass 1: fused conv + per-tile BN partials (grid axis fully parallel) ---
    kern = functools.partial(conv_stats_kernel, num_hb=num_hb, h_real=H)
    y_blocks, p_sum, p_sumsq = pl.pallas_call(
        kern,
        out_shape=(
            jax.ShapeDtypeStruct((T, tile_h, W, Cout), jnp.bfloat16),
            jax.ShapeDtypeStruct((T, 1, COUT_PAD), jnp.float32),
            jax.ShapeDtypeStruct((T, 1, COUT_PAD), jnp.float32),
        ),
        grid_spec=pltpu.PrefetchScalarGridSpec(
            num_scalar_prefetch=0,
            grid=(T,),
            in_specs=[
                pl.BlockSpec((1, tile_h + K - 1, Wp, Cin), lambda i: (i, 0, 0, 0)),
                pl.BlockSpec((K * K, Cin, COUT_PAD), lambda i: (0, 0, 0)),  # resident
            ],
            out_specs=[
                pl.BlockSpec((1, tile_h, W, Cout), lambda i: (i, 0, 0, 0)),
                pl.BlockSpec((1, 1, COUT_PAD), lambda i: (i, 0, 0)),
                pl.BlockSpec((1, 1, COUT_PAD), lambda i: (i, 0, 0)),
            ],
        ),
        compiler_params=pltpu.CompilerParams(
            dimension_semantics=("parallel",),
            vmem_limit_bytes=vmem_limit,
        ),
    )(x_blocks, w_taps)

    # --- glue: fold batch stats into per-channel scale/shift (O(Cout) work) ---
    m = float(N * H * W)                                  # true element count per channel
    ch_sum = jnp.sum(p_sum[:, 0, :Cout], axis=0)
    ch_sumsq = jnp.sum(p_sumsq[:, 0, :Cout], axis=0)
    mean = ch_sum / m
    var = jnp.maximum(ch_sumsq / m - mean * mean, 0.0)    # clamp cancellation
    scale = bn_gamma.astype(jnp.float32) * lax.rsqrt(var + BN_EPS)
    shift = bn_beta.astype(jnp.float32) - mean * scale
    scale4 = scale.reshape(1, 1, 1, Cout)
    shift4 = shift.reshape(1, 1, 1, Cout)

    # --- pass 2: streaming BN affine + ReLU ---
    out_blocks = pl.pallas_call(
        bn_relu_kernel,
        out_shape=jax.ShapeDtypeStruct((T, tile_h, W, Cout), jnp.float32),
        grid_spec=pltpu.PrefetchScalarGridSpec(
            num_scalar_prefetch=0,
            grid=(T,),
            in_specs=[
                pl.BlockSpec((1, tile_h, W, Cout), lambda i: (i, 0, 0, 0)),
                pl.BlockSpec((1, 1, 1, Cout), lambda i: (0, 0, 0, 0)),
                pl.BlockSpec((1, 1, 1, Cout), lambda i: (0, 0, 0, 0)),
            ],
            out_specs=pl.BlockSpec((1, tile_h, W, Cout), lambda i: (i, 0, 0, 0)),
        ),
        compiler_params=pltpu.CompilerParams(
            dimension_semantics=("parallel",),
            vmem_limit_bytes=vmem_limit,
        ),
    )(y_blocks, scale4, shift4)

    out = out_blocks.reshape(N, H_t, W, Cout)[:, :H]      # drop padded rows (contiguous view)
    # TODO(synk): emit NHWC directly for NHWC consumers; this transpose only matches
    # the PyTorch module's NCHW output layout.
    return jnp.transpose(out, (0, 3, 1, 2))               # (N, Cout, H, W)


cbr_forward = jax.jit(_cbr_forward, static_argnames=("tile_h",))


# Pure-JAX reference (matches the PyTorch module: conv(+bias) -> train-mode BN -> ReLU).
def cbr_reference(x_nchw, conv_w, conv_b, bn_gamma, bn_beta):
    y = lax.conv_general_dilated(
        x_nchw, conv_w, window_strides=(1, 1), padding=((1, 1), (1, 1)),
        dimension_numbers=("NCHW", "OIHW", "NCHW"))
    y = y + conv_b.reshape(1, -1, 1, 1)
    mean = jnp.mean(y, axis=(0, 2, 3), keepdims=True)
    var = jnp.mean((y - mean) ** 2, axis=(0, 2, 3), keepdims=True)
    y_hat = (y - mean) * lax.rsqrt(var + BN_EPS)
    y_hat = y_hat * bn_gamma.reshape(1, -1, 1, 1) + bn_beta.reshape(1, -1, 1, 1)
    return jnp.maximum(y_hat, 0.0)


if __name__ == "__main__":
    # Shapes consistent with the module: batch=2, in_channels=4, out_channels=8,
    # spatial=16x16, kernel_size=3, stride=1, padding=1.
    N, Cin, Cout, H, W, K = 2, 4, 8, 16, 16, 3

    key = jax.random.PRNGKey(0)
    kx, kw_, kb = jax.random.split(key, 3)

    x = jax.random.normal(kx, (N, Cin, H, W), dtype=jnp.float32)
    conv_w = jax.random.normal(kw_, (Cout, Cin, K, K), dtype=jnp.float32) * 0.1
    conv_b = jax.random.normal(kb, (Cout,), dtype=jnp.float32) * 0.1
    bn_gamma = jnp.ones((Cout,), dtype=jnp.float32)   # PyTorch BatchNorm2d default init
    bn_beta = jnp.zeros((Cout,), dtype=jnp.float32)

    out = cbr_forward(x, conv_w, conv_b, bn_gamma, bn_beta)                    # 1 h-tile / image
    out_tiled = cbr_forward(x, conv_w, conv_b, bn_gamma, bn_beta, tile_h=8)    # 2 h-tiles / image
    ref = cbr_reference(x, conv_w, conv_b, bn_gamma, bn_beta)

    # Ragged case: H not a multiple of tile_h (exercises the stats row mask).
    x2 = jax.random.normal(kx, (1, 3, 10, 12), dtype=jnp.float32)
    w2 = jax.random.normal(kw_, (Cout, 3, K, K), dtype=jnp.float32) * 0.1
    out2 = cbr_forward(x2, w2, conv_b, bn_gamma, bn_beta)
    ref2 = cbr_reference(x2, w2, conv_b, bn_gamma, bn_beta)

    out, out_tiled, ref, out2, ref2 = jax.block_until_ready((out, out_tiled, ref, out2, ref2))

    assert out.shape == (N, Cout, H, W)
    assert bool(jnp.all(jnp.isfinite(out)))
    assert bool(jnp.all(out >= 0.0))                                # ReLU output non-negative
    assert bool(jnp.allclose(out, ref, atol=1e-1, rtol=1e-1))       # bf16-operand tolerance
    assert bool(jnp.allclose(out_tiled, ref, atol=1e-1, rtol=1e-1)) # multi-tile BN stats path
    assert bool(jnp.allclose(out2, ref2, atol=1e-1, rtol=1e-1))     # padded-H stats mask path
    print("KERNEL_OK")
</pallas_src>

<mosaic_0001>
module attributes {stable_mosaic.version = 11 : i64} {
  func.func @conv_stats_kernel(%arg0: i32, %arg1: memref<1x18x24x4xbf16, #tpu.memory_space<vmem>>, %arg2: memref<9x4x128xbf16, #tpu.memory_space<vmem>>, %arg3: memref<1x16x16x8xbf16, #tpu.memory_space<vmem>>, %arg4: memref<1x1x128xf32, #tpu.memory_space<vmem>>, %arg5: memref<1x1x128xf32, #tpu.memory_space<vmem>>) attributes {dimension_semantics = [#tpu.dimension_semantics<parallel>], iteration_bounds = array<i64: 2>, scalar_prefetch = 0 : i64, scratch_operands = 0 : i64, tpu.core_type = #tpu.core_type<tc>, window_params = [{transform_indices = @transform_0, window_bounds = array<i64: 1, 18, 24, 4>}, {pipeline_mode = #tpu.pipeline_mode<synchronous>, transform_indices = @transform_1, window_bounds = array<i64: 9, 4, 128>}, {transform_indices = @transform_2, window_bounds = array<i64: 1, 16, 16, 8>}, {transform_indices = @transform_3, window_bounds = array<i64: 1, 1, 128>}, {transform_indices = @transform_4, window_bounds = array<i64: 1, 1, 128>}]} {
    %c0 = arith.constant 0 : index
    %c0_0 = arith.constant 0 : index
    %c0_1 = arith.constant 0 : index
    %c0_2 = arith.constant 0 : index
    %0 = vector.load %arg1[%c0, %c0_0, %c0_1, %c0_2] : memref<1x18x24x4xbf16, #tpu.memory_space<vmem>>, vector<1x18x24x4xbf16>
    %1 = vector.shape_cast %0 : vector<1x18x24x4xbf16> to vector<18x24x4xbf16>
    %c0_3 = arith.constant 0 : index
    %c0_4 = arith.constant 0 : index
    %c0_5 = arith.constant 0 : index
    %2 = vector.load %arg2[%c0_3, %c0_4, %c0_5] : memref<9x4x128xbf16, #tpu.memory_space<vmem>>, vector<9x4x128xbf16>
    %cst = arith.constant 0.000000e+00 : f32
    %3 = vector.broadcast %cst : f32 to vector<16x16x128xf32>
    %4 = vector.extract_strided_slice %1 {offsets = [0, 0, 0], sizes = [16, 24, 4], strides = [1, 1, 1]} : vector<18x24x4xbf16> to vector<16x24x4xbf16>
    %5 = vector.shape_cast %4 : vector<16x24x4xbf16> to vector<384x4xbf16>
    %6 = vector.extract_strided_slice %2 {offsets = [0, 0, 0], sizes = [1, 4, 128], strides = [1, 1, 1]} : vector<9x4x128xbf16> to vector<1x4x128xbf16>
    %7 = vector.shape_cast %6 : vector<1x4x128xbf16> to vector<4x128xbf16>
    %cst_6 = arith.constant dense<0.000000e+00> : vector<384x128xf32>
    %8 = tpu.matmul %5, %7, %cst_6 {dimension_numbers = #tpu.dot_dimension_numbers<[1], [0], [0], [1], [0, 0, 1, 1], [], []>} : vector<384x4xbf16>, vector<4x128xbf16>, vector<384x128xf32> -> vector<384x128xf32>
    %9 = vector.shape_cast %8 : vector<384x128xf32> to vector<16x24x128xf32>
    %10 = vector.extract_strided_slice %9 {offsets = [0, 0, 0], sizes = [16, 16, 128], strides = [1, 1, 1]} : vector<16x24x128xf32> to vector<16x16x128xf32>
    %11 = arith.addf %3, %10 : vector<16x16x128xf32>
    %12 = vector.extract_strided_slice %2 {offsets = [1, 0, 0], sizes = [1, 4, 128], strides = [1, 1, 1]} : vector<9x4x128xbf16> to vector<1x4x128xbf16>
    %13 = vector.shape_cast %12 : vector<1x4x128xbf16> to vector<4x128xbf16>
    %cst_7 = arith.constant dense<0.000000e+00> : vector<384x128xf32>
    %14 = tpu.matmul %5, %13, %cst_7 {dimension_numbers = #tpu.dot_dimension_numbers<[1], [0], [0], [1], [0, 0, 1, 1], [], []>} : vector<384x4xbf16>, vector<4x128xbf16>, vector<384x128xf32> -> vector<384x128xf32>
    %15 = vector.shape_cast %14 : vector<384x128xf32> to vector<16x24x128xf32>
    %16 = vector.extract_strided_slice %15 {offsets = [0, 1, 0], sizes = [16, 16, 128], strides = [1, 1, 1]} : vector<16x24x128xf32> to vector<16x16x128xf32>
    %17 = arith.addf %11, %16 : vector<16x16x128xf32>
    %18 = vector.extract_strided_slice %2 {offsets = [2, 0, 0], sizes = [1, 4, 128], strides = [1, 1, 1]} : vector<9x4x128xbf16> to vector<1x4x128xbf16>
    %19 = vector.shape_cast %18 : vector<1x4x128xbf16> to vector<4x128xbf16>
    %cst_8 = arith.constant dense<0.000000e+00> : vector<384x128xf32>
    %20 = tpu.matmul %5, %19, %cst_8 {dimension_numbers = #tpu.dot_dimension_numbers<[1], [0], [0], [1], [0, 0, 1, 1], [], []>} : vector<384x4xbf16>, vector<4x128xbf16>, vector<384x128xf32> -> vector<384x128xf32>
    %21 = vector.shape_cast %20 : vector<384x128xf32> to vector<16x24x128xf32>
    %22 = vector.extract_strided_slice %21 {offsets = [0, 2, 0], sizes = [16, 16, 128], strides = [1, 1, 1]} : vector<16x24x128xf32> to vector<16x16x128xf32>
    %23 = arith.addf %17, %22 : vector<16x16x128xf32>
    %24 = vector.extract_strided_slice %1 {offsets = [1, 0, 0], sizes = [16, 24, 4], strides = [1, 1, 1]} : vector<18x24x4xbf16> to vector<16x24x4xbf16>
    %25 = vector.shape_cast %24 : vector<16x24x4xbf16> to vector<384x4xbf16>
    %26 = vector.extract_strided_slice %2 {offsets = [3, 0, 0], sizes = [1, 4, 128], strides = [1, 1, 1]} : vector<9x4x128xbf16> to vector<1x4x128xbf16>
    %27 = vector.shape_cast %26 : vector<1x4x128xbf16> to vector<4x128xbf16>
    %cst_9 = arith.constant dense<0.000000e+00> : vector<384x128xf32>
    %28 = tpu.matmul %25, %27, %cst_9 {dimension_numbers = #tpu.dot_dimension_numbers<[1], [0], [0], [1], [0, 0, 1, 1], [], []>} : vector<384x4xbf16>, vector<4x128xbf16>, vector<384x128xf32> -> vector<384x128xf32>
    %29 = vector.shape_cast %28 : vector<384x128xf32> to vector<16x24x128xf32>
    %30 = vector.extract_strided_slice %29 {offsets = [0, 0, 0], sizes = [16, 16, 128], strides = [1, 1, 1]} : vector<16x24x128xf32> to vector<16x16x128xf32>
    %31 = arith.addf %23, %30 : vector<16x16x128xf32>
    %32 = vector.extract_strided_slice %2 {offsets = [4, 0, 0], sizes = [1, 4, 128], strides = [1, 1, 1]} : vector<9x4x128xbf16> to vector<1x4x128xbf16>
    %33 = vector.shape_cast %32 : vector<1x4x128xbf16> to vector<4x128xbf16>
    %cst_10 = arith.constant dense<0.000000e+00> : vector<384x128xf32>
    %34 = tpu.matmul %25, %33, %cst_10 {dimension_numbers = #tpu.dot_dimension_numbers<[1], [0], [0], [1], [0, 0, 1, 1], [], []>} : vector<384x4xbf16>, vector<4x128xbf16>, vector<384x128xf32> -> vector<384x128xf32>
    %35 = vector.shape_cast %34 : vector<384x128xf32> to vector<16x24x128xf32>
    %36 = vector.extract_strided_slice %35 {offsets = [0, 1, 0], sizes = [16, 16, 128], strides = [1, 1, 1]} : vector<16x24x128xf32> to vector<16x16x128xf32>
    %37 = arith.addf %31, %36 : vector<16x16x128xf32>
    %38 = vector.extract_strided_slice %2 {offsets = [5, 0, 0], sizes = [1, 4, 128], strides = [1, 1, 1]} : vector<9x4x128xbf16> to vector<1x4x128xbf16>
    %39 = vector.shape_cast %38 : vector<1x4x128xbf16> to vector<4x128xbf16>
    %cst_11 = arith.constant dense<0.000000e+00> : vector<384x128xf32>
    %40 = tpu.matmul %25, %39, %cst_11 {dimension_numbers = #tpu.dot_dimension_numbers<[1], [0], [0], [1], [0, 0, 1, 1], [], []>} : vector<384x4xbf16>, vector<4x128xbf16>, vector<384x128xf32> -> vector<384x128xf32>
    %41 = vector.shape_cast %40 : vector<384x128xf32> to vector<16x24x128xf32>
    %42 = vector.extract_strided_slice %41 {offsets = [0, 2, 0], sizes = [16, 16, 128], strides = [1, 1, 1]} : vector<16x24x128xf32> to vector<16x16x128xf32>
    %43 = arith.addf %37, %42 : vector<16x16x128xf32>
    %44 = vector.extract_strided_slice %1 {offsets = [2, 0, 0], sizes = [16, 24, 4], strides = [1, 1, 1]} : vector<18x24x4xbf16> to vector<16x24x4xbf16>
    %45 = vector.shape_cast %44 : vector<16x24x4xbf16> to vector<384x4xbf16>
    %46 = vector.extract_strided_slice %2 {offsets = [6, 0, 0], sizes = [1, 4, 128], strides = [1, 1, 1]} : vector<9x4x128xbf16> to vector<1x4x128xbf16>
    %47 = vector.shape_cast %46 : vector<1x4x128xbf16> to vector<4x128xbf16>
    %cst_12 = arith.constant dense<0.000000e+00> : vector<384x128xf32>
    %48 = tpu.matmul %45, %47, %cst_12 {dimension_numbers = #tpu.dot_dimension_numbers<[1], [0], [0], [1], [0, 0, 1, 1], [], []>} : vector<384x4xbf16>, vector<4x128xbf16>, vector<384x128xf32> -> vector<384x128xf32>
    %49 = vector.shape_cast %48 : vector<384x128xf32> to vector<16x24x128xf32>
    %50 = vector.extract_strided_slice %49 {offsets = [0, 0, 0], sizes = [16, 16, 128], strides = [1, 1, 1]} : vector<16x24x128xf32> to vector<16x16x128xf32>
    %51 = arith.addf %43, %50 : vector<16x16x128xf32>
    %52 = vector.extract_strided_slice %2 {offsets = [7, 0, 0], sizes = [1, 4, 128], strides = [1, 1, 1]} : vector<9x4x128xbf16> to vector<1x4x128xbf16>
    %53 = vector.shape_cast %52 : vector<1x4x128xbf16> to vector<4x128xbf16>
    %cst_13 = arith.constant dense<0.000000e+00> : vector<384x128xf32>
    %54 = tpu.matmul %45, %53, %cst_13 {dimension_numbers = #tpu.dot_dimension_numbers<[1], [0], [0], [1], [0, 0, 1, 1], [], []>} : vector<384x4xbf16>, vector<4x128xbf16>, vector<384x128xf32> -> vector<384x128xf32>
    %55 = vector.shape_cast %54 : vector<384x128xf32> to vector<16x24x128xf32>
    %56 = vector.extract_strided_slice %55 {offsets = [0, 1, 0], sizes = [16, 16, 128], strides = [1, 1, 1]} : vector<16x24x128xf32> to vector<16x16x128xf32>
    %57 = arith.addf %51, %56 : vector<16x16x128xf32>
    %58 = vector.extract_strided_slice %2 {offsets = [8, 0, 0], sizes = [1, 4, 128], strides = [1, 1, 1]} : vector<9x4x128xbf16> to vector<1x4x128xbf16>
    %59 = vector.shape_cast %58 : vector<1x4x128xbf16> to vector<4x128xbf16>
    %cst_14 = arith.constant dense<0.000000e+00> : vector<384x128xf32>
    %60 = tpu.matmul %45, %59, %cst_14 {dimension_numbers = #tpu.dot_dimension_numbers<[1], [0], [0], [1], [0, 0, 1, 1], [], []>} : vector<384x4xbf16>, vector<4x128xbf16>, vector<384x128xf32> -> vector<384x128xf32>
    %61 = vector.shape_cast %60 : vector<384x128xf32> to vector<16x24x128xf32>
    %62 = vector.extract_strided_slice %61 {offsets = [0, 2, 0], sizes = [16, 16, 128], strides = [1, 1, 1]} : vector<16x24x128xf32> to vector<16x16x128xf32>
    %63 = arith.addf %57, %62 : vector<16x16x128xf32>
    %64 = vector.extract_strided_slice %63 {offsets = [0, 0, 0], sizes = [16, 16, 8], strides = [1, 1, 1]} : vector<16x16x128xf32> to vector<16x16x8xf32>
    %65 = arith.truncf %64 : vector<16x16x8xf32> to vector<16x16x8xbf16>
    %c0_15 = arith.constant 0 : index
    %c0_16 = arith.constant 0 : index
    %c0_17 = arith.constant 0 : index
    %c0_18 = arith.constant 0 : index
    %66 = vector.load %arg3[%c0_15, %c0_16, %c0_17, %c0_18] : memref<1x16x16x8xbf16, #tpu.memory_space<vmem>>, vector<1x16x16x8xbf16>
    %67 = vector.shape_cast %66 : vector<1x16x16x8xbf16> to vector<16x16x8xbf16>
    %68 = vector.shape_cast %65 : vector<16x16x8xbf16> to vector<1x16x16x8xbf16>
    tpu.vector_store %arg3[%c0_15, %c0_16, %c0_17, %c0_18], %68 {strides = array<i32>} : memref<1x16x16x8xbf16, #tpu.memory_space<vmem>>, vector<1x16x16x8xbf16>,
    %cst_19 = arith.constant dense<0.000000e+00> : vector<128xf32>
    %69 = vector.multi_reduction <add>, %63, %cst_19 [0, 1] : vector<16x16x128xf32> to vector<128xf32>
    %70 = vector.shape_cast %69 : vector<128xf32> to vector<1x1x128xf32>
    %c0_20 = arith.constant 0 : index
    %c0_21 = arith.constant 0 : index
    %c0_22 = arith.constant 0 : index
    %71 = vector.load %arg4[%c0_20, %c0_21, %c0_22] : memref<1x1x128xf32, #tpu.memory_space<vmem>>, vector<1x1x128xf32>
    tpu.vector_store %arg4[%c0_20, %c0_21, %c0_22], %70 {strides = array<i32>} : memref<1x1x128xf32, #tpu.memory_space<vmem>>, vector<1x1x128xf32>,
    %72 = arith.mulf %63, %63 : vector<16x16x128xf32>
    %cst_23 = arith.constant dense<0.000000e+00> : vector<128xf32>
    %73 = vector.multi_reduction <add>, %72, %cst_23 [0, 1] : vector<16x16x128xf32> to vector<128xf32>
    %74 = vector.shape_cast %73 : vector<128xf32> to vector<1x1x128xf32>
    %c0_24 = arith.constant 0 : index
    %c0_25 = arith.constant 0 : index
    %c0_26 = arith.constant 0 : index
    %75 = vector.load %arg5[%c0_24, %c0_25, %c0_26] : memref<1x1x128xf32, #tpu.memory_space<vmem>>, vector<1x1x128xf32>
    tpu.vector_store %arg5[%c0_24, %c0_25, %c0_26], %74 {strides = array<i32>} : memref<1x1x128xf32, #tpu.memory_space<vmem>>, vector<1x1x128xf32>,
    return
  }
  func.func @transform_0(%arg0: i32) -> (i32, i32, i32, i32) {
    %c0_i32 = arith.constant 0 : i32
    %c0_i32_0 = arith.constant 0 : i32
    %c0_i32_1 = arith.constant 0 : i32
    %c0_i32_2 = arith.constant 0 : i32
    return %arg0, %c0_i32, %c0_i32_0, %c0_i32_1 : i32, i32, i32, i32
  }
  func.func @transform_1(%arg0: i32) -> (i32, i32, i32) {
    %c0_i32 = arith.constant 0 : i32
    %c0_i32_0 = arith.constant 0 : i32
    %c0_i32_1 = arith.constant 0 : i32
    %c0_i32_2 = arith.constant 0 : i32
    return %c0_i32, %c0_i32_0, %c0_i32_1 : i32, i32, i32
  }
  func.func @transform_2(%arg0: i32) -> (i32, i32, i32, i32) {
    %c0_i32 = arith.constant 0 : i32
    %c0_i32_0 = arith.constant 0 : i32
    %c0_i32_1 = arith.constant 0 : i32
    %c0_i32_2 = arith.constant 0 : i32
    return %arg0, %c0_i32, %c0_i32_0, %c0_i32_1 : i32, i32, i32, i32
  }
  func.func @transform_3(%arg0: i32) -> (i32, i32, i32) {
    %c0_i32 = arith.constant 0 : i32
    %c0_i32_0 = arith.constant 0 : i32
    %c0_i32_1 = arith.constant 0 : i32
    return %arg0, %c0_i32, %c0_i32_0 : i32, i32, i32
  }
  func.func @transform_4(%arg0: i32) -> (i32, i32, i32) {
    %c0_i32 = arith.constant 0 : i32
    %c0_i32_0 = arith.constant 0 : i32
    %c0_i32_1 = arith.constant 0 : i32
    return %arg0, %c0_i32, %c0_i32_0 : i32, i32, i32
  }
}

module attributes {stable_mosaic.version = 11 : i64} {
  func.func @bn_relu_kernel(%arg0: i32, %arg1: memref<1x16x16x8xbf16, #tpu.memory_space<vmem>>, %arg2: memref<1x1x1x8xf32, #tpu.memory_space<vmem>>, %arg3: memref<1x1x1x8xf32, #tpu.memory_space<vmem>>, %arg4: memref<1x16x16x8xf32, #tpu.memory_space<vmem>>) attributes {dimension_semantics = [#tpu.dimension_semantics<parallel>], iteration_bounds = array<i64: 2>, scalar_prefetch = 0 : i64, scratch_operands = 0 : i64, tpu.core_type = #tpu.core_type<tc>, window_params = [{transform_indices = @transform_0, window_bounds = array<i64: 1, 16, 16, 8>}, {pipeline_mode = #tpu.pipeline_mode<synchronous>, transform_indices = @transform_1, window_bounds = array<i64: 1, 1, 1, 8>}, {pipeline_mode = #tpu.pipeline_mode<synchronous>, transform_indices = @transform_2, window_bounds = array<i64: 1, 1, 1, 8>}, {transform_indices = @transform_3, window_bounds = array<i64: 1, 16, 16, 8>}]} {
    %c0 = arith.constant 0 : index
    %c0_0 = arith.constant 0 : index
    %c0_1 = arith.constant 0 : index
    %c0_2 = arith.constant 0 : index
    %0 = vector.load %arg1[%c0, %c0_0, %c0_1, %c0_2] : memref<1x16x16x8xbf16, #tpu.memory_space<vmem>>, vector<1x16x16x8xbf16>
    %1 = arith.extf %0 : vector<1x16x16x8xbf16> to vector<1x16x16x8xf32>
    %c0_3 = arith.constant 0 : index
    %c0_4 = arith.constant 0 : index
    %c0_5 = arith.constant 0 : index
    %c0_6 = arith.constant 0 : index
    %2 = vector.load %arg2[%c0_3, %c0_4, %c0_5, %c0_6] : memref<1x1x1x8xf32, #tpu.memory_space<vmem>>, vector<1x1x1x8xf32>
    %3 = vector.broadcast %2 : vector<1x1x1x8xf32> to vector<1x16x16x8xf32>
    %4 = arith.mulf %1, %3 : vector<1x16x16x8xf32>
    %c0_7 = arith.constant 0 : index
    %c0_8 = arith.constant 0 : index
    %c0_9 = arith.constant 0 : index
    %c0_10 = arith.constant 0 : index
    %5 = vector.load %arg3[%c0_7, %c0_8, %c0_9, %c0_10] : memref<1x1x1x8xf32, #tpu.memory_space<vmem>>, vector<1x1x1x8xf32>
    %6 = vector.broadcast %5 : vector<1x1x1x8xf32> to vector<1x16x16x8xf32>
    %7 = arith.addf %4, %6 : vector<1x16x16x8xf32>
    %cst = arith.constant 0.000000e+00 : f32
    %8 = vector.broadcast %cst : f32 to vector<1x16x16x8xf32>
    %9 = arith.maximumf %7, %8 : vector<1x16x16x8xf32>
    %c0_11 = arith.constant 0 : index
    %c0_12 = arith.constant 0 : index
    %c0_13 = arith.constant 0 : index
    %c0_14 = arith.constant 0 : index
    %10 = vector.load %arg4[%c0_11, %c0_12, %c0_13, %c0_14] : memref<1x16x16x8xf32, #tpu.memory_space<vmem>>, vector<1x16x16x8xf32>
    tpu.vector_store %arg4[%c0_11, %c0_12, %c0_13, %c0_14], %9 {strides = array<i32>} : memref<1x16x16x8xf32, #tpu.memory_space<vmem>>, vector<1x16x16x8xf32>,
    return
  }
  func.func @transform_0(%arg0: i32) -> (i32, i32, i32, i32) {
    %c0_i32 = arith.constant 0 : i32
    %c0_i32_0 = arith.constant 0 : i32
    %c0_i32_1 = arith.constant 0 : i32
    %c0_i32_2 = arith.constant 0 : i32
    return %arg0, %c0_i32, %c0_i32_0, %c0_i32_1 : i32, i32, i32, i32
  }
  func.func @transform_1(%arg0: i32) -> (i32, i32, i32, i32) {
    %c0_i32 = arith.constant 0 : i32
    %c0_i32_0 = arith.constant 0 : i32
    %c0_i32_1 = arith.constant 0 : i32
    %c0_i32_2 = arith.constant 0 : i32
    %c0_i32_3 = arith.constant 0 : i32
    return %c0_i32, %c0_i32_0, %c0_i32_1, %c0_i32_2 : i32, i32, i32, i32
  }
  func.func @transform_2(%arg0: i32) -> (i32, i32, i32, i32) {
    %c0_i32 = arith.constant 0 : i32
    %c0_i32_0 = arith.constant 0 : i32
    %c0_i32_1 = arith.constant 0 : i32
    %c0_i32_2 = arith.constant 0 : i32
    %c0_i32_3 = arith.constant 0 : i32
    return %c0_i32, %c0_i32_0, %c0_i32_1, %c0_i32_2 : i32, i32, i32, i32
  }
  func.func @transform_3(%arg0: i32) -> (i32, i32, i32, i32) {
    %c0_i32 = arith.constant 0 : i32
    %c0_i32_0 = arith.constant 0 : i32
    %c0_i32_1 = arith.constant 0 : i32
    %c0_i32_2 = arith.constant 0 : i32
    return %arg0, %c0_i32, %c0_i32_0, %c0_i32_1 : i32, i32, i32, i32
  }
}

</mosaic_0001>

<llo_original>
// kernel: _cbr_forward.3
$region0: #{_cbr_forward.3}
  #allocation0 [shape = 'u32[]', space=smem, size = 0x4, offset = 0x4, fixed_abs, tag = 'smem constant byte address 0x4 - core index']
  #allocation1 [shape = 'u32[144,128]{1,0:T(1,128)}', space=vmem, size = 0x12000, scoped, tag = 'internal scratch']
  %s0 = inlined_call_operand.vmem [shape: bf16[2,16,16,8], index: 0, kind: input, shape index: {}]
  %s1 = inlined_call_operand.vmem [shape: f32[1,1,1,8], index: 1, kind: input, shape index: {}]
  %s2 = inlined_call_operand.vmem [shape: f32[1,1,1,8], index: 2, kind: input, shape index: {}]
  %s3 = inlined_call_operand.vmem [shape: f32[2,16,16,8], index: 3, kind: output, shape index: {}]
  %s4 = sld [smem:[#allocation0]]
  $region45: #{_cbr_forward.3} parent=0
    _
  %s6 = ssub.s32 1, %s4
  %s7 = scalar_select 0, %s6, %s4
  loop: start=0, step=1, limit=4
  $region2: #{_cbr_forward.3} parent=0 // loop_pre_header
    _
  $region3: #{_cbr_forward.3} parent=0 // loop_header
    %s9 = sphi 0, %s13
    %p10 = scmp.ge.s32.totalorder %s9, 4
    %s19 = sphi 0, %s21
    %s22 = sphi 0, %s19
    %s23 = sphi 0, %s22
    %s39 = sphi 0, %s23
    %s43 = sphi 0, %s43
    %s45 = sphi 0, %s43
    %s46 = sphi 0, %s45
    %s60 = sphi 0, %s46
    %s64 = sphi 0, %s64
    %s66 = sphi 0, %s64
    %s67 = sphi 0, %s66
    %s81 = sphi 0, %s67
    %s87 = sphi 0, %s89
    %s90 = sphi 0, %s87
    %s91 = sphi 0, %s90
    %s107 = sphi 0, %s91
  $region4: #{_cbr_forward.3} parent=0 // loop_header_branch
    %12 = sbr.rel (%p10) target = $region8
  $region5: #{_cbr_forward.3} parent=0 // loop_body
    %s14 = ssub.s32 %s9, 1
    %s15 = ssub.s32 %s9, 2
    %s16 = sadd.s32 %s9, 1
    %s17 = ssub.s32 %s9, %s16
    %p18 = scmp.eq.s32.totalorder %s17, 0
    %s20 = sadd.s32 %s19, 1
    %s21 = scalar_select %p18, %s19, %s20
    %p24 = pneg %p18
    %p25 = scmp.eq.s32.totalorder %s9, 1
    %p26 = por %p24, %p25
    %p27 = scmp.ne.s32.totalorder %s19, %s22
    %p28 = scmp.eq.s32.totalorder %s9, 0
    %p29 = por %p27, %p28
    %p30 = scmp.ne.s32.totalorder %s19, %s22
    %p31 = scmp.eq.s32.totalorder %s14, 1
    %p32 = por %p30, %p31
    %p33 = scmp.ne.s32.totalorder %s22, %s23
    %p34 = scmp.eq.s32.totalorder %s14, 0
    %p35 = por %p33, %p34
    %p36 = scmp.ne.s32.totalorder %s22, %s23
    %p37 = scmp.eq.s32.totalorder %s15, 1
    %p38 = por %p36, %p37
    %p40 = scmp.ne.s32.totalorder %s23, %s39
    %p41 = scmp.eq.s32.totalorder %s15, 0
    %p42 = por %p40, %p41
    %s44 = sadd.s32 %s43, 1
    %p47 = scmp.eq.s32.totalorder %s9, 1
    %p48 = scmp.ne.s32.totalorder %s43, %s45
    %p49 = scmp.eq.s32.totalorder %s9, 0
    %p50 = por %p48, %p49
    %p51 = scmp.ne.s32.totalorder %s43, %s45
    %p52 = scmp.eq.s32.totalorder %s14, 1
    %p53 = por %p51, %p52
    %p54 = scmp.ne.s32.totalorder %s45, %s46
    %p55 = scmp.eq.s32.totalorder %s14, 0
    %p56 = por %p54, %p55
    %p57 = scmp.ne.s32.totalorder %s45, %s46
    %p58 = scmp.eq.s32.totalorder %s15, 1
    %p59 = por %p57, %p58
    %p61 = scmp.ne.s32.totalorder %s46, %s60
    %p62 = scmp.eq.s32.totalorder %s15, 0
    %p63 = por %p61, %p62
    %s65 = sadd.s32 %s64, 1
    %p68 = scmp.eq.s32.totalorder %s9, 1
    %p69 = scmp.ne.s32.totalorder %s64, %s66
    %p70 = scmp.eq.s32.totalorder %s9, 0
    %p71 = por %p69, %p70
    %p72 = scmp.ne.s32.totalorder %s64, %s66
    %p73 = scmp.eq.s32.totalorder %s14, 1
    %p74 = por %p72, %p73
    %p75 = scmp.ne.s32.totalorder %s66, %s67
    %p76 = scmp.eq.s32.totalorder %s14, 0
    %p77 = por %p75, %p76
    %p78 = scmp.ne.s32.totalorder %s66, %s67
    %p79 = scmp.eq.s32.totalorder %s15, 1
    %p80 = por %p78, %p79
    %p82 = scmp.ne.s32.totalorder %s67, %s81
    %p83 = scmp.eq.s32.totalorder %s15, 0
    %p84 = por %p82, %p83
    %s85 = ssub.s32 %s9, %s16
    %p86 = scmp.eq.s32.totalorder %s85, 0
    %s88 = sadd.s32 %s87, 1
    %s89 = scalar_select %p86, %s87, %s88
    %p92 = pneg %p86
    %p93 = scmp.eq.s32.totalorder %s9, 1
    %p94 = por %p92, %p93
    %p95 = scmp.ne.s32.totalorder %s87, %s90
    %p96 = scmp.eq.s32.totalorder %s9, 0
    %p97 = por %p95, %p96
    %p98 = scmp.ne.s32.totalorder %s87, %s90
    %p99 = scmp.eq.s32.totalorder %s14, 1
    %p100 = por %p98, %p99
    %p101 = scmp.ne.s32.totalorder %s90, %s91
    %p102 = scmp.eq.s32.totalorder %s14, 0
    %p103 = por %p101, %p102
    %p104 = scmp.ne.s32.totalorder %s90, %s91
    %p105 = scmp.eq.s32.totalorder %s15, 1
    %p106 = por %p104, %p105
    %p108 = scmp.ne.s32.totalorder %s91, %s107
    %p109 = scmp.eq.s32.totalorder %s15, 0
    %p110 = por %p108, %p109
    %p111 = scmp.le.s32.totalorder 1, %s9
    %p112 = scmp.lt.s32.totalorder %s9, 3
    %p113 = pnand %p111, %p112
    %p114 = pneg %p113
    // Predicated region
    $region9: #{_cbr_forward.3} parent=5 // pred_check
      _
    $region10: #{_cbr_forward.3} parent=5 // pred_check_branch
      %116 = sbr.rel (%p113) target = $region12
    $region11: #{_cbr_forward.3} parent=5 // pred_region
      %s117 = ssub.s32 %s9, 1
      // Predicated region
      $region13: #{_cbr_forward.3} parent=11 // pred_check
        %p118 = pneg %p56
      $region14: #{_cbr_forward.3} parent=11 // pred_check_branch
        %120 = sbr.rel (%p118) target = $region16
      $region15: #{_cbr_forward.3} parent=11 // pred_region
        _
      $region16: #{_cbr_forward.3} parent=11 // pred_fallthru
        _
      // Predicated region
      $region17: #{_cbr_forward.3} parent=11 // pred_check
        %p121 = pneg %p77
      $region18: #{_cbr_forward.3} parent=11 // pred_check_branch
        %123 = sbr.rel (%p121) target = $region20
      $region19: #{_cbr_forward.3} parent=11 // pred_region
        _
      $region20: #{_cbr_forward.3} parent=11 // pred_fallthru
        _
    $region12: #{_cbr_forward.3} parent=5 // pred_fallthru
      _
    %p124 = scmp.lt.s32.totalorder %s9, 2
    // Predicated region
    $region21: #{_cbr_forward.3} parent=5 // pred_check
      %p125 = pneg %p124
    $region22: #{_cbr_forward.3} parent=5 // pred_check_branch
      %127 = sbr.rel (%p125) target = $region24
    $region23: #{_cbr_forward.3} parent=5 // pred_region
      // Predicated region
      $region25: #{_cbr_forward.3} parent=23 // pred_check
        %p128 = pneg %p29
      $region26: #{_cbr_forward.3} parent=23 // pred_check_branch
        %130 = sbr.rel (%p128) target = $region28
      $region27: #{_cbr_forward.3} parent=23 // pred_region
        %p131 = scmp.lt.s32.totalorder %s9, 1
        %s132 = scalar_select %p131, %s9, 1
        %s133 = smul.addr %s132, 32
        %s134 = smul.addr %s133, 4
        %s135 = scalar_lea.vmem %s0, %s134
      $region28: #{_cbr_forward.3} parent=23 // pred_fallthru
        _
    $region24: #{_cbr_forward.3} parent=5 // pred_fallthru
      _
    %p136 = scmp.le.s32.totalorder 1, %s9
    %p137 = scmp.lt.s32.totalorder %s9, 3
    %p138 = pnand %p136, %p137
    %p139 = pneg %p138
    // Predicated region
    $region29: #{_cbr_forward.3} parent=5 // pred_check
      _
    $region30: #{_cbr_forward.3} parent=5 // pred_check_branch
      %141 = sbr.rel (%p138) target = $region32
    $region31: #{_cbr_forward.3} parent=5 // pred_region
      %s142 = ssub.s32 %s9, 1
      %p143 = scmp.lt.s32.totalorder %s14, 1
      %s144 = scalar_select %p143, %s14, 1
      %s145 = smul.addr %s144, 32
      %s146 = smul.addr %s145, 4
      %s147 = scalar_lea.vmem %s0, %s146
      %p148 = pneg %p35
      %p149 = pneg %p32
      %p150 = pneg %p56
      %p151 = pneg %p53
      %p152 = pneg %p77
      %p153 = pneg %p74
      %p154 = pneg %p103
      %p155 = pneg %p100
      %p156 = scmp.lt.s32.totalorder %s14, 1
      %s157 = scalar_select %p156, %s14, 1
      %s158 = smul.addr %s157, 32
      %s159 = smul.addr %s158, 8
      %s160 = scalar_lea.vmem %s3, %s159
      %p161 = scmp.lt.s32.totalorder %s14, 1
      %s162 = scalar_select %p161, %s14, 1
      %s163 = smul.addr %s162, 32
      %s164 = smul.addr %s163, 4
      %s165 = scalar_lea.vmem %s0, %s164
      %p166 = scmp.lt.s32.totalorder %s14, 1
      %s167 = scalar_select %p166, %s14, 1
      %s168 = smul.addr %s167, 32
      %s169 = smul.addr %s168, 8
      %s170 = scalar_lea.vmem %s3, %s169
      %v171 = vld [vmem:[%s165] sm:$0xf]
      %v172 = vld [vmem:[%s165 + $0x4] sm:$0xf]
      %v173 = vld [vmem:[%s165 + $0x8] sm:$0xf]
      %v174 = vld [vmem:[%s165 + $0xc] sm:$0xf]
      %v175 = vld [vmem:[%s165 + $0x10] sm:$0xf]
      %v176 = vld [vmem:[%s165 + $0x14] sm:$0xf]
      %v177 = vld [vmem:[%s165 + $0x18] sm:$0xf]
      %v178 = vld [vmem:[%s165 + $0x1c] sm:$0xf]
      %v179 = vld [vmem:[%s165 + $0x20] sm:$0xf]
      %v180 = vld [vmem:[%s165 + $0x24] sm:$0xf]
      %v181 = vld [vmem:[%s165 + $0x28] sm:$0xf]
      %v182 = vld [vmem:[%s165 + $0x2c] sm:$0xf]
      %v183 = vld [vmem:[%s165 + $0x30] sm:$0xf]
      %v184 = vld [vmem:[%s165 + $0x34] sm:$0xf]
      %v185 = vld [vmem:[%s165 + $0x38] sm:$0xf]
      %v186 = vld [vmem:[%s165 + $0x3c] sm:$0xf]
      %v187 = vld [vmem:[%s165 + $0x40] sm:$0xf]
      %v188 = vld [vmem:[%s165 + $0x44] sm:$0xf]
      %v189 = vld [vmem:[%s165 + $0x48] sm:$0xf]
      %v190 = vld [vmem:[%s165 + $0x4c] sm:$0xf]
      %v191 = vld [vmem:[%s165 + $0x50] sm:$0xf]
      %v192 = vld [vmem:[%s165 + $0x54] sm:$0xf]
      %v193 = vld [vmem:[%s165 + $0x58] sm:$0xf]
      %v194 = vld [vmem:[%s165 + $0x5c] sm:$0xf]
      %v195 = vld [vmem:[%s165 + $0x60] sm:$0xf]
      %v196 = vld [vmem:[%s165 + $0x64] sm:$0xf]
      %v197 = vld [vmem:[%s165 + $0x68] sm:$0xf]
      %v198 = vld [vmem:[%s165 + $0x6c] sm:$0xf]
      %v199 = vld [vmem:[%s165 + $0x70] sm:$0xf]
      %v200 = vld [vmem:[%s165 + $0x74] sm:$0xf]
      %v201 = vld [vmem:[%s165 + $0x78] sm:$0xf]
      %v202 = vld [vmem:[%s165 + $0x7c] sm:$0xf]
      %v203 = vunpack.c.l.bf16 %v171
      %v204 = vunpack.c.l.bf16 %v172
      %v205 = vunpack.c.l.bf16 %v173
      %v206 = vunpack.c.l.bf16 %v174
      %v207 = vunpack.c.l.bf16 %v175
      %v208 = vunpack.c.l.bf16 %v176
      %v209 = vunpack.c.l.bf16 %v177
      %v210 = vunpack.c.l.bf16 %v178
      %v211 = vunpack.c.l.bf16 %v179
      %v212 = vunpack.c.l.bf16 %v180
      %v213 = vunpack.c.l.bf16 %v181
      %v214 = vunpack.c.l.bf16 %v182
      %v215 = vunpack.c.l.bf16 %v183
      %v216 = vunpack.c.l.bf16 %v184
      %v217 = vunpack.c.l.bf16 %v185
      %v218 = vunpack.c.l.bf16 %v186
      %v219 = vunpack.c.l.bf16 %v187
      %v220 = vunpack.c.l.bf16 %v188
      %v221 = vunpack.c.l.bf16 %v189
      %v222 = vunpack.c.l.bf16 %v190
      %v223 = vunpack.c.l.bf16 %v191
      %v224 = vunpack.c.l.bf16 %v192
      %v225 = vunpack.c.l.bf16 %v193
      %v226 = vunpack.c.l.bf16 %v194
      %v227 = vunpack.c.l.bf16 %v195
      %v228 = vunpack.c.l.bf16 %v196
      %v229 = vunpack.c.l.bf16 %v197
      %v230 = vunpack.c.l.bf16 %v198
      %v231 = vunpack.c.l.bf16 %v199
      %v232 = vunpack.c.l.bf16 %v200
      %v233 = vunpack.c.l.bf16 %v201
      %v234 = vunpack.c.l.bf16 %v202
      %v235 = vld [vmem:[%s1] sm:$0x1]
      %v237 = vlaneseq
      %v238 = vshrl.u32 %v237, 7
      %v239 = vsub.s32 0, %v238
      %v240 = vrot.slane %v235, %v239
      %v242 = vmul.f32 %v203, %v240
      %v243 = vmul.f32 %v204, %v240
      %v244 = vmul.f32 %v205, %v240
      %v245 = vmul.f32 %v206, %v240
      %v246 = vmul.f32 %v207, %v240
      %v247 = vmul.f32 %v208, %v240
      %v248 = vmul.f32 %v209, %v240
      %v249 = vmul.f32 %v210, %v240
      %v250 = vmul.f32 %v211, %v240
      %v251 = vmul.f32 %v212, %v240
      %v252 = vmul.f32 %v213, %v240
      %v253 = vmul.f32 %v214, %v240
      %v254 = vmul.f32 %v215, %v240
      %v255 = vmul.f32 %v216, %v240
      %v256 = vmul.f32 %v217, %v240
      %v257 = vmul.f32 %v218, %v240
      %v258 = vmul.f32 %v219, %v240
      %v259 = vmul.f32 %v220, %v240
      %v260 = vmul.f32 %v221, %v240
      %v261 = vmul.f32 %v222, %v240
      %v262 = vmul.f32 %v223, %v240
      %v263 = vmul.f32 %v224, %v240
      %v264 = vmul.f32 %v225, %v240
      %v265 = vmul.f32 %v226, %v240
      %v266 = vmul.f32 %v227, %v240
      %v267 = vmul.f32 %v228, %v240
      %v268 = vmul.f32 %v229, %v240
      %v269 = vmul.f32 %v230, %v240
      %v270 = vmul.f32 %v231, %v240
      %v271 = vmul.f32 %v232, %v240
      %v272 = vmul.f32 %v233, %v240
      %v273 = vmul.f32 %v234, %v240
      %v274 = vld [vmem:[%s2] sm:$0x1]
      %v276 = vlaneseq
      %v277 = vshrl.u32 %v276, 7
      %v278 = vsub.s32 0, %v277
      %v279 = vrot.slane %v274, %v278
      %v281 = vadd.f32 %v242, %v279
      %v282 = vadd.f32 %v243, %v279
      %v283 = vadd.f32 %v244, %v279
      %v284 = vadd.f32 %v245, %v279
      %v285 = vadd.f32 %v246, %v279
      %v286 = vadd.f32 %v247, %v279
      %v287 = vadd.f32 %v248, %v279
      %v288 = vadd.f32 %v249, %v279
      %v289 = vadd.f32 %v250, %v279
      %v290 = vadd.f32 %v251, %v279
      %v291 = vadd.f32 %v252, %v279
      %v292 = vadd.f32 %v253, %v279
      %v293 = vadd.f32 %v254, %v279
      %v294 = vadd.f32 %v255, %v279
      %v295 = vadd.f32 %v256, %v279
      %v296 = vadd.f32 %v257, %v279
      %v297 = vadd.f32 %v258, %v279
      %v298 = vadd.f32 %v259, %v279
      %v299 = vadd.f32 %v260, %v279
      %v300 = vadd.f32 %v261, %v279
      %v301 = vadd.f32 %v262, %v279
      %v302 = vadd.f32 %v263, %v279
      %v303 = vadd.f32 %v264, %v279
      %v304 = vadd.f32 %v265, %v279
      %v305 = vadd.f32 %v266, %v279
      %v306 = vadd.f32 %v267, %v279
      %v307 = vadd.f32 %v268, %v279
      %v308 = vadd.f32 %v269, %v279
      %v309 = vadd.f32 %v270, %v279
      %v310 = vadd.f32 %v271, %v279
      %v311 = vadd.f32 %v272, %v279
      %v312 = vadd.f32 %v273, %v279
      %v313 = vmax.f32 %v281, 0.0
      %v314 = vmax.f32 %v282, 0.0
      %v315 = vmax.f32 %v283, 0.0
      %v316 = vmax.f32 %v284, 0.0
      %v317 = vmax.f32 %v285, 0.0
      %v318 = vmax.f32 %v286, 0.0
      %v319 = vmax.f32 %v287, 0.0
      %v320 = vmax.f32 %v288, 0.0
      %v321 = vmax.f32 %v289, 0.0
      %v322 = vmax.f32 %v290, 0.0
      %v323 = vmax.f32 %v291, 0.0
      %v324 = vmax.f32 %v292, 0.0
      %v325 = vmax.f32 %v293, 0.0
      %v326 = vmax.f32 %v294, 0.0
      %v327 = vmax.f32 %v295, 0.0
      %v328 = vmax.f32 %v296, 0.0
      %v329 = vmax.f32 %v297, 0.0
      %v330 = vmax.f32 %v298, 0.0
      %v331 = vmax.f32 %v299, 0.0
      %v332 = vmax.f32 %v300, 0.0
      %v333 = vmax.f32 %v301, 0.0
      %v334 = vmax.f32 %v302, 0.0
      %v335 = vmax.f32 %v303, 0.0
      %v336 = vmax.f32 %v304, 0.0
      %v337 = vmax.f32 %v305, 0.0
      %v338 = vmax.f32 %v306, 0.0
      %v339 = vmax.f32 %v307, 0.0
      %v340 = vmax.f32 %v308, 0.0
      %v341 = vmax.f32 %v309, 0.0
      %v342 = vmax.f32 %v310, 0.0
      %v343 = vmax.f32 %v311, 0.0
      %v344 = vmax.f32 %v312, 0.0
      %vm345 = vcmask 64512
      %346 = vst.msk [vmem:[%s170] sm:$0xff] %vm345, %v313
      %347 = vst.msk [vmem:[%s170 + $0x8] sm:$0xff] %vm345, %v314
      %348 = vst.msk [vmem:[%s170 + $0x10] sm:$0xff] %vm345, %v315
      %349 = vst.msk [vmem:[%s170 + $0x18] sm:$0xff] %vm345, %v316
      %350 = vst.msk [vmem:[%s170 + $0x20] sm:$0xff] %vm345, %v317
      %351 = vst.msk [vmem:[%s170 + $0x28] sm:$0xff] %vm345, %v318
      %352 = vst.msk [vmem:[%s170 + $0x30] sm:$0xff] %vm345, %v319
      %353 = vst.msk [vmem:[%s170 + $0x38] sm:$0xff] %vm345, %v320
      %354 = vst.msk [vmem:[%s170 + $0x40] sm:$0xff] %vm345, %v321
      %355 = vst.msk [vmem:[%s170 + $0x48] sm:$0xff] %vm345, %v322
      %356 = vst.msk [vmem:[%s170 + $0x50] sm:$0xff] %vm345, %v323
      %357 = vst.msk [vmem:[%s170 + $0x58] sm:$0xff] %vm345, %v324
      %358 = vst.msk [vmem:[%s170 + $0x60] sm:$0xff] %vm345, %v325
      %359 = vst.msk [vmem:[%s170 + $0x68] sm:$0xff] %vm345, %v326
      %360 = vst.msk [vmem:[%s170 + $0x70] sm:$0xff] %vm345, %v327
      %361 = vst.msk [vmem:[%s170 + $0x78] sm:$0xff] %vm345, %v328
      %362 = vst.msk [vmem:[%s170 + $0x80] sm:$0xff] %vm345, %v329
      %363 = vst.msk [vmem:[%s170 + $0x88] sm:$0xff] %vm345, %v330
      %364 = vst.msk [vmem:[%s170 + $0x90] sm:$0xff] %vm345, %v331
      %365 = vst.msk [vmem:[%s170 + $0x98] sm:$0xff] %vm345, %v332
      %366 = vst.msk [vmem:[%s170 + $0xa0] sm:$0xff] %vm345, %v333
      %367 = vst.msk [vmem:[%s170 + $0xa8] sm:$0xff] %vm345, %v334
      %368 = vst.msk [vmem:[%s170 + $0xb0] sm:$0xff] %vm345, %v335
      %369 = vst.msk [vmem:[%s170 + $0xb8] sm:$0xff] %vm345, %v336
      %370 = vst.msk [vmem:[%s170 + $0xc0] sm:$0xff] %vm345, %v337
      %371 = vst.msk [vmem:[%s170 + $0xc8] sm:$0xff] %vm345, %v338
      %372 = vst.msk [vmem:[%s170 + $0xd0] sm:$0xff] %vm345, %v339
      %373 = vst.msk [vmem:[%s170 + $0xd8] sm:$0xff] %vm345, %v340
      %374 = vst.msk [vmem:[%s170 + $0xe0] sm:$0xff] %vm345, %v341
      %375 = vst.msk [vmem:[%s170 + $0xe8] sm:$0xff] %vm345, %v342
      %376 = vst.msk [vmem:[%s170 + $0xf0] sm:$0xff] %vm345, %v343
      %377 = vst.msk [vmem:[%s170 + $0xf8] sm:$0xff] %vm345, %v344
      %p378 = scmp.lt.s32.totalorder %s14, 1
      %s379 = scalar_select %p378, %s14, 1
      %s380 = smul.addr %s379, 32
      %s381 = smul.addr %s380, 8
      %s382 = scalar_lea.vmem %s3, %s381
      // Predicated region
      $region33: #{_cbr_forward.3} parent=31 // pred_check
        %p383 = pneg %p100
      $region34: #{_cbr_forward.3} parent=31 // pred_check_branch
        %385 = sbr.rel (%p383) target = $region36
      $region35: #{_cbr_forward.3} parent=31 // pred_region
        _
      $region36: #{_cbr_forward.3} parent=31 // pred_fallthru
        _
    $region32: #{_cbr_forward.3} parent=5 // pred_fallthru
      _
    %p386 = scmp.le.s32.totalorder 2, %s9
    // Predicated region
    $region37: #{_cbr_forward.3} parent=5 // pred_check
      %p387 = pneg %p386
    $region38: #{_cbr_forward.3} parent=5 // pred_check_branch
      %389 = sbr.rel (%p387) target = $region40
    $region39: #{_cbr_forward.3} parent=5 // pred_region
      %s390 = ssub.s32 %s9, 2
      // Predicated region
      $region41: #{_cbr_forward.3} parent=39 // pred_check
        %p391 = pneg %p106
      $region42: #{_cbr_forward.3} parent=39 // pred_check_branch
        %393 = sbr.rel (%p391) target = $region44
      $region43: #{_cbr_forward.3} parent=39 // pred_region
        %p394 = scmp.lt.s32.totalorder %s15, 1
        %s395 = scalar_select %p394, %s15, 1
        %s396 = smul.addr %s395, 32
        %s397 = smul.addr %s396, 8
        %s398 = scalar_lea.vmem %s3, %s397
      $region44: #{_cbr_forward.3} parent=39 // pred_fallthru
        _
    $region40: #{_cbr_forward.3} parent=5 // pred_fallthru
      _
  $region6: #{_cbr_forward.3} parent=0 // loop_footer
    %s13 = sadd.s32 1, %s9
  $region7: #{_cbr_forward.3} parent=0 // loop_footer_branch
    %8 = sbr.rel target = $region3
  $region8: #{_cbr_forward.3} parent=0 // loop_exit
    _

// kernel: _cbr_forward.2
$region0: #{_cbr_forward.2}
  #allocation0 [shape = 'u32[]', space=smem, size = 0x4, offset = 0x4, fixed_abs, tag = 'smem constant byte address 0x4 - core index']
  #allocation1 [shape = 'u32[144,128]{1,0:T(1,128)}', space=vmem, size = 0x12000, scoped, tag = 'internal scratch']
  %s0 = inlined_call_operand.vmem [shape: bf16[2,18,24,4], index: 0, kind: input, shape index: {}]
  %s1 = inlined_call_operand.vmem [shape: bf16[9,4,128], index: 1, kind: input, shape index: {}]
  %s2 = inlined_call_operand.vmem [shape: bf16[2,16,16,8], index: 2, kind: output, shape index: {0}]
  %s3 = inlined_call_operand.vmem [shape: f32[2,1,128], index: 3, kind: output, shape index: {1}]
  %s4 = inlined_call_operand.vmem [shape: f32[2,1,128], index: 4, kind: output, shape index: {2}]
  %5 = xla_tuple %s2, %s3, %s4
  %s6 = sld [smem:[#allocation0]]
  $region57: #{_cbr_forward.2} parent=0
    _
  %s8 = ssub.s32 1, %s6
  %s9 = scalar_select 0, %s8, %s6
  loop: start=0, step=1, limit=4
  $region2: #{_cbr_forward.2} parent=0 // loop_pre_header
    _
  $region3: #{_cbr_forward.2} parent=0 // loop_header
    %s11 = sphi 0, %s15
    %p12 = scmp.ge.s32.totalorder %s11, 4
    %s21 = sphi 0, %s23
    %s24 = sphi 0, %s21
    %s25 = sphi 0, %s24
    %s41 = sphi 0, %s25
    %s45 = sphi 0, %s45
    %s47 = sphi 0, %s45
    %s48 = sphi 0, %s47
    %s62 = sphi 0, %s48
    %s68 = sphi 0, %s70
    %s71 = sphi 0, %s68
    %s72 = sphi 0, %s71
    %s88 = sphi 0, %s72
    %s94 = sphi 0, %s96
    %s97 = sphi 0, %s94
    %s98 = sphi 0, %s97
    %s114 = sphi 0, %s98
    %s120 = sphi 0, %s122
    %s123 = sphi 0, %s120
    %s124 = sphi 0, %s123
    %s140 = sphi 0, %s124
  $region4: #{_cbr_forward.2} parent=0 // loop_header_branch
    %14 = sbr.rel (%p12) target = $region8
  $region5: #{_cbr_forward.2} parent=0 // loop_body
    %s16 = ssub.s32 %s11, 1
    %s17 = ssub.s32 %s11, 2
    %s18 = sadd.s32 %s11, 1
    %s19 = ssub.s32 %s11, %s18
    %p20 = scmp.eq.s32.totalorder %s19, 0
    %s22 = sadd.s32 %s21, 1
    %s23 = scalar_select %p20, %s21, %s22
    %p26 = pneg %p20
    %p27 = scmp.eq.s32.totalorder %s11, 1
    %p28 = por %p26, %p27
    %p29 = scmp.ne.s32.totalorder %s21, %s24
    %p30 = scmp.eq.s32.totalorder %s11, 0
    %p31 = por %p29, %p30
    %p32 = scmp.ne.s32.totalorder %s21, %s24
    %p33 = scmp.eq.s32.totalorder %s16, 1
    %p34 = por %p32, %p33
    %p35 = scmp.ne.s32.totalorder %s24, %s25
    %p36 = scmp.eq.s32.totalorder %s16, 0
    %p37 = por %p35, %p36
    %p38 = scmp.ne.s32.totalorder %s24, %s25
    %p39 = scmp.eq.s32.totalorder %s17, 1
    %p40 = por %p38, %p39
    %p42 = scmp.ne.s32.totalorder %s25, %s41
    %p43 = scmp.eq.s32.totalorder %s17, 0
    %p44 = por %p42, %p43
    %s46 = sadd.s32 %s45, 1
    %p49 = scmp.eq.s32.totalorder %s11, 1
    %p50 = scmp.ne.s32.totalorder %s45, %s47
    %p51 = scmp.eq.s32.totalorder %s11, 0
    %p52 = por %p50, %p51
    %p53 = scmp.ne.s32.totalorder %s45, %s47
    %p54 = scmp.eq.s32.totalorder %s16, 1
    %p55 = por %p53, %p54
    %p56 = scmp.ne.s32.totalorder %s47, %s48
    %p57 = scmp.eq.s32.totalorder %s16, 0
    %p58 = por %p56, %p57
    %p59 = scmp.ne.s32.totalorder %s47, %s48
    %p60 = scmp.eq.s32.totalorder %s17, 1
    %p61 = por %p59, %p60
    %p63 = scmp.ne.s32.totalorder %s48, %s62
    %p64 = scmp.eq.s32.totalorder %s17, 0
    %p65 = por %p63, %p64
    %s66 = ssub.s32 %s11, %s18
    %p67 = scmp.eq.s32.totalorder %s66, 0
    %s69 = sadd.s32 %s68, 1
    %s70 = scalar_select %p67, %s68, %s69
    %p73 = pneg %p67
    %p74 = scmp.eq.s32.totalorder %s11, 1
    %p75 = por %p73, %p74
    %p76 = scmp.ne.s32.totalorder %s68, %s71
    %p77 = scmp.eq.s32.totalorder %s11, 0
    %p78 = por %p76, %p77
    %p79 = scmp.ne.s32.totalorder %s68, %s71
    %p80 = scmp.eq.s32.totalorder %s16, 1
    %p81 = por %p79, %p80
    %p82 = scmp.ne.s32.totalorder %s71, %s72
    %p83 = scmp.eq.s32.totalorder %s16, 0
    %p84 = por %p82, %p83
    %p85 = scmp.ne.s32.totalorder %s71, %s72
    %p86 = scmp.eq.s32.totalorder %s17, 1
    %p87 = por %p85, %p86
    %p89 = scmp.ne.s32.totalorder %s72, %s88
    %p90 = scmp.eq.s32.totalorder %s17, 0
    %p91 = por %p89, %p90
    %s92 = ssub.s32 %s11, %s18
    %p93 = scmp.eq.s32.totalorder %s92, 0
    %s95 = sadd.s32 %s94, 1
    %s96 = scalar_select %p93, %s94, %s95
    %p99 = pneg %p93
    %p100 = scmp.eq.s32.totalorder %s11, 1
    %p101 = por %p99, %p100
    %p102 = scmp.ne.s32.totalorder %s94, %s97
    %p103 = scmp.eq.s32.totalorder %s11, 0
    %p104 = por %p102, %p103
    %p105 = scmp.ne.s32.totalorder %s94, %s97
    %p106 = scmp.eq.s32.totalorder %s16, 1
    %p107 = por %p105, %p106
    %p108 = scmp.ne.s32.totalorder %s97, %s98
    %p109 = scmp.eq.s32.totalorder %s16, 0
    %p110 = por %p108, %p109
    %p111 = scmp.ne.s32.totalorder %s97, %s98
    %p112 = scmp.eq.s32.totalorder %s17, 1
    %p113 = por %p111, %p112
    %p115 = scmp.ne.s32.totalorder %s98, %s114
    %p116 = scmp.eq.s32.totalorder %s17, 0
    %p117 = por %p115, %p116
    %s118 = ssub.s32 %s11, %s18
    %p119 = scmp.eq.s32.totalorder %s118, 0
    %s121 = sadd.s32 %s120, 1
    %s122 = scalar_select %p119, %s120, %s121
    %p125 = pneg %p119
    %p126 = scmp.eq.s32.totalorder %s11, 1
    %p127 = por %p125, %p126
    %p128 = scmp.ne.s32.totalorder %s120, %s123
    %p129 = scmp.eq.s32.totalorder %s11, 0
    %p130 = por %p128, %p129
    %p131 = scmp.ne.s32.totalorder %s120, %s123
    %p132 = scmp.eq.s32.totalorder %s16, 1
    %p133 = por %p131, %p132
    %p134 = scmp.ne.s32.totalorder %s123, %s124
    %p135 = scmp.eq.s32.totalorder %s16, 0
    %p136 = por %p134, %p135
    %p137 = scmp.ne.s32.totalorder %s123, %s124
    %p138 = scmp.eq.s32.totalorder %s17, 1
    %p139 = por %p137, %p138
    %p141 = scmp.ne.s32.totalorder %s124, %s140
    %p142 = scmp.eq.s32.totalorder %s17, 0
    %p143 = por %p141, %p142
    %p144 = scmp.le.s32.totalorder 1, %s11
    %p145 = scmp.lt.s32.totalorder %s11, 3
    %p146 = pnand %p144, %p145
    %p147 = pneg %p146
    // Predicated region
    $region9: #{_cbr_forward.2} parent=5 // pred_check
      _
    $region10: #{_cbr_forward.2} parent=5 // pred_check_branch
      %149 = sbr.rel (%p146) target = $region12
    $region11: #{_cbr_forward.2} parent=5 // pred_region
      %s150 = ssub.s32 %s11, 1
      // Predicated region
      $region13: #{_cbr_forward.2} parent=11 // pred_check
        %p151 = pneg %p58
      $region14: #{_cbr_forward.2} parent=11 // pred_check_branch
        %153 = sbr.rel (%p151) target = $region16
      $region15: #{_cbr_forward.2} parent=11 // pred_region
        _
      $region16: #{_cbr_forward.2} parent=11 // pred_fallthru
        _
    $region12: #{_cbr_forward.2} parent=5 // pred_fallthru
      _
    %p154 = scmp.lt.s32.totalorder %s11, 2
    // Predicated region
    $region17: #{_cbr_forward.2} parent=5 // pred_check
      %p155 = pneg %p154
    $region18: #{_cbr_forward.2} parent=5 // pred_check_branch
      %157 = sbr.rel (%p155) target = $region20
    $region19: #{_cbr_forward.2} parent=5 // pred_region
      // Predicated region
      $region21: #{_cbr_forward.2} parent=19 // pred_check
        %p158 = pneg %p31
      $region22: #{_cbr_forward.2} parent=19 // pred_check_branch
        %160 = sbr.rel (%p158) target = $region24
      $region23: #{_cbr_forward.2} parent=19 // pred_region
        %p161 = scmp.lt.s32.totalorder %s11, 1
        %s162 = scalar_select %p161, %s11, 1
        %s163 = smul.addr %s162, 54
        %s164 = smul.addr %s163, 4
        %s165 = scalar_lea.vmem %s0, %s164
      $region24: #{_cbr_forward.2} parent=19 // pred_fallthru
        _
    $region20: #{_cbr_forward.2} parent=5 // pred_fallthru
      _
    %p166 = scmp.le.s32.totalorder 1, %s11
    %p167 = scmp.lt.s32.totalorder %s11, 3
    %p168 = pnand %p166, %p167
    %p169 = pneg %p168
    // Predicated region
    $region25: #{_cbr_forward.2} parent=5 // pred_check
      _
    $region26: #{_cbr_forward.2} parent=5 // pred_check_branch
      %171 = sbr.rel (%p168) target = $region28
    $region27: #{_cbr_forward.2} parent=5 // pred_region
      %s172 = ssub.s32 %s11, 1
      %p173 = scmp.lt.s32.totalorder %s16, 1
      %s174 = scalar_select %p173, %s16, 1
      %s175 = smul.addr %s174, 54
      %s176 = smul.addr %s175, 4
      %s177 = scalar_lea.vmem %s0, %s176
      %p178 = pneg %p37
      %p179 = pneg %p34
      %p180 = pneg %p58
      %p181 = pneg %p55
      %p182 = pneg %p84
      %p183 = pneg %p81
      %p184 = scmp.lt.s32.totalorder %s16, 1
      %s185 = scalar_select %p184, %s16, 1
      %s186 = smul.addr %s185, 32
      %s187 = smul.addr %s186, 4
      %s188 = scalar_lea.vmem %s2, %s187
      %p189 = pneg %p110
      %p190 = pneg %p107
      %p191 = scmp.lt.s32.totalorder %s16, 1
      %s192 = scalar_select %p191, %s16, 1
      %s193 = scalar_lea.vmem %s3, %s192
      %p194 = pneg %p136
      %p195 = pneg %p133
      %p196 = scmp.lt.s32.totalorder %s16, 1
      %s197 = scalar_select %p196, %s16, 1
      %s198 = scalar_lea.vmem %s4, %s197
      %p199 = scmp.lt.s32.totalorder %s16, 1
      %s200 = scalar_select %p199, %s16, 1
      %s201 = smul.addr %s200, 54
      %s202 = smul.addr %s201, 4
      %s203 = scalar_lea.vmem %s0, %s202
      %p204 = scmp.lt.s32.totalorder %s16, 1
      %s205 = scalar_select %p204, %s16, 1
      %s206 = smul.addr %s205, 32
      %s207 = smul.addr %s206, 4
      %s208 = scalar_lea.vmem %s2, %s207
      %p209 = scmp.lt.s32.totalorder %s16, 1
      %s210 = scalar_select %p209, %s16, 1
      %s211 = scalar_lea.vmem %s3, %s210
      %p212 = scmp.lt.s32.totalorder %s16, 1
      %s213 = scalar_select %p212, %s16, 1
      %s214 = scalar_lea.vmem %s4, %s213
      %v216 = vld [vmem:[%s203] sm:$0xf]
      %v217 = vld [vmem:[%s203 + $0x4] sm:$0xf]
      %v218 = vld [vmem:[%s203 + $0x8] sm:$0xf]
      %v219 = vld [vmem:[%s203 + $0xc] sm:$0xf]
      %v220 = vld [vmem:[%s203 + $0x10] sm:$0xf]
      %v221 = vld [vmem:[%s203 + $0x14] sm:$0xf]
      %v222 = vld [vmem:[%s203 + $0x18] sm:$0xf]
      %v223 = vld [vmem:[%s203 + $0x1c] sm:$0xf]
      %v224 = vld [vmem:[%s203 + $0x20] sm:$0xf]
      %v225 = vld [vmem:[%s203 + $0x24] sm:$0xf]
      %v226 = vld [vmem:[%s203 + $0x28] sm:$0xf]
      %v227 = vld [vmem:[%s203 + $0x2c] sm:$0xf]
      %v228 = vld [vmem:[%s203 + $0x30] sm:$0xf]
      %v229 = vld [vmem:[%s203 + $0x34] sm:$0xf]
      %v230 = vld [vmem:[%s203 + $0x38] sm:$0xf]
      %v231 = vld [vmem:[%s203 + $0x3c] sm:$0xf]
      %v232 = vld [vmem:[%s203 + $0x40] sm:$0xf]
      %v233 = vld [vmem:[%s203 + $0x44] sm:$0xf]
      %v234 = vld [vmem:[%s203 + $0x48] sm:$0xf]
      %v235 = vld [vmem:[%s203 + $0x4c] sm:$0xf]
      %v236 = vld [vmem:[%s203 + $0x50] sm:$0xf]
      %v237 = vld [vmem:[%s203 + $0x54] sm:$0xf]
      %v238 = vld [vmem:[%s203 + $0x58] sm:$0xf]
      %v239 = vld [vmem:[%s203 + $0x5c] sm:$0xf]
      %v240 = vld [vmem:[%s203 + $0x60] sm:$0xf]
      %v241 = vld [vmem:[%s203 + $0x64] sm:$0xf]
      %v242 = vld [vmem:[%s203 + $0x68] sm:$0xf]
      %v243 = vld [vmem:[%s203 + $0x6c] sm:$0xf]
      %v244 = vld [vmem:[%s203 + $0x70] sm:$0xf]
      %v245 = vld [vmem:[%s203 + $0x74] sm:$0xf]
      %v246 = vld [vmem:[%s203 + $0x78] sm:$0xf]
      %v247 = vld [vmem:[%s203 + $0x7c] sm:$0xf]
      %v248 = vld [vmem:[%s203 + $0x80] sm:$0xf]
      %v249 = vld [vmem:[%s203 + $0x84] sm:$0xf]
      %v250 = vld [vmem:[%s203 + $0x88] sm:$0xf]
      %v251 = vld [vmem:[%s203 + $0x8c] sm:$0xf]
      %v252 = vld [vmem:[%s203 + $0x90] sm:$0xf]
      %v253 = vld [vmem:[%s203 + $0x94] sm:$0xf]
      %v254 = vld [vmem:[%s203 + $0x98] sm:$0xf]
      %v255 = vld [vmem:[%s203 + $0x9c] sm:$0xf]
      %v256 = vld [vmem:[%s203 + $0xa0] sm:$0xf]
      %v257 = vld [vmem:[%s203 + $0xa4] sm:$0xf]
      %v258 = vld [vmem:[%s203 + $0xa8] sm:$0xf]
      %v259 = vld [vmem:[%s203 + $0xac] sm:$0xf]
      %v260 = vld [vmem:[%s203 + $0xb0] sm:$0xf]
      %v261 = vld [vmem:[%s203 + $0xb4] sm:$0xf]
      %v262 = vld [vmem:[%s203 + $0xb8] sm:$0xf]
      %v263 = vld [vmem:[%s203 + $0xbc] sm:$0xf]
      %v264 = vld [vmem:[%s203 + $0xc0] sm:$0xf]
      %v265 = vld [vmem:[%s203 + $0xc4] sm:$0xf]
      %v266 = vld [vmem:[%s203 + $0xc8] sm:$0xf]
      %v267 = vld [vmem:[%s203 + $0xcc] sm:$0xf]
      %v268 = vld [vmem:[%s203 + $0xd0] sm:$0xf]
      %v269 = vld [vmem:[%s203 + $0xd4] sm:$0xf]
      %v270 = vld [vmem:[%s1] sm:$0x3]
      %v271 = vld [vmem:[%s1 + $0x2] sm:$0x3]
      %v272 = vld [vmem:[%s1 + $0x4] sm:$0x3]
      %v273 = vld [vmem:[%s1 + $0x6] sm:$0x3]
      %v274 = vld [vmem:[%s1 + $0x8] sm:$0x3]
      %v275 = vld [vmem:[%s1 + $0xa] sm:$0x3]
      %v276 = vld [vmem:[%s1 + $0xc] sm:$0x3]
      %v277 = vld [vmem:[%s1 + $0xe] sm:$0x3]
      %v278 = vld [vmem:[%s1 + $0x10] sm:$0x3]
      %v327 = vunpack.c.l.b16 %v216
      %v328 = vunpack.c.l.b16 %v217
      %v329 = vunpack.c.l.b16 %v218
      %v330 = vunpack.c.l.b16 %v219
      %v331 = vunpack.c.l.b16 %v220
      %v332 = vunpack.c.l.b16 %v221
      %v333 = vunpack.c.l.b16 %v222
      %v334 = vunpack.c.l.b16 %v223
      %v335 = vunpack.c.l.b16 %v224
      %v336 = vunpack.c.l.b16 %v225
      %v337 = vunpack.c.l.b16 %v226
      %v338 = vunpack.c.l.b16 %v227
      %v339 = vunpack.c.l.b16 %v228
      %v340 = vunpack.c.l.b16 %v229
      %v341 = vunpack.c.l.b16 %v230
      %v342 = vunpack.c.l.b16 %v231
      %v343 = vunpack.c.l.b16 %v232
      %v344 = vunpack.c.l.b16 %v233
      %v345 = vunpack.c.l.b16 %v234
      %v346 = vunpack.c.l.b16 %v235
      %v347 = vunpack.c.l.b16 %v236
      %v348 = vunpack.c.l.b16 %v237
      %v349 = vunpack.c.l.b16 %v238
      %v350 = vunpack.c.l.b16 %v239
      %v351 = vunpack.c.l.b16 %v240
      %v352 = vunpack.c.l.b16 %v241
      %v353 = vunpack.c.l.b16 %v242
      %v354 = vunpack.c.l.b16 %v243
      %v355 = vunpack.c.l.b16 %v244
      %v356 = vunpack.c.l.b16 %v245
      %v357 = vunpack.c.l.b16 %v246
      %v358 = vunpack.c.l.b16 %v247
      %v359 = vunpack.c.l.b16 %v248
      %v360 = vunpack.c.l.b16 %v249
      %v361 = vunpack.c.l.b16 %v250
      %v362 = vunpack.c.l.b16 %v251
      %v363 = vunpack.c.l.b16 %v252
      %v364 = vunpack.c.l.b16 %v253
      %v365 = vunpack.c.l.b16 %v254
      %v366 = vunpack.c.l.b16 %v255
      %v367 = vunpack.c.l.b16 %v256
      %v368 = vunpack.c.l.b16 %v257
      %v369 = vunpack.c.l.b16 %v258
      %v370 = vunpack.c.l.b16 %v259
      %v371 = vunpack.c.l.b16 %v260
      %v372 = vunpack.c.l.b16 %v261
      %v373 = vunpack.c.l.b16 %v262
      %v374 = vunpack.c.l.b16 %v263
      %v375 = vpack.c.b16 %v328, %v327
      %v376 = vpack.c.b16 %v330, %v329
      %v377 = vpack.c.b16 %v332, %v331
      %v378 = vpack.c.b16 %v334, %v333
      %v379 = vpack.c.b16 %v336, %v335
      %v380 = vpack.c.b16 %v338, %v337
      %v381 = vpack.c.b16 %v340, %v339
      %v382 = vpack.c.b16 %v342, %v341
      %v383 = vpack.c.b16 %v344, %v343
      %v384 = vpack.c.b16 %v346, %v345
      %v385 = vpack.c.b16 %v348, %v347
      %v386 = vpack.c.b16 %v350, %v349
      %v387 = vpack.c.b16 %v352, %v351
      %v388 = vpack.c.b16 %v354, %v353
      %v389 = vpack.c.b16 %v356, %v355
      %v390 = vpack.c.b16 %v358, %v357
      %v391 = vpack.c.b16 %v360, %v359
      %v392 = vpack.c.b16 %v362, %v361
      %v393 = vpack.c.b16 %v364, %v363
      %v394 = vpack.c.b16 %v366, %v365
      %v395 = vpack.c.b16 %v368, %v367
      %v396 = vpack.c.b16 %v370, %v369
      %v397 = vpack.c.b16 %v372, %v371
      %v398 = vpack.c.b16 %v374, %v373
      %vm399 = vcmask 31744
      %v401 = vsel %vm399, %v375, 0
      %v404 = vsel %vm399, %v376, 0
      %v407 = vsel %vm399, %v377, 0
      %v410 = vsel %vm399, %v378, 0
      %v413 = vsel %vm399, %v379, 0
      %v416 = vsel %vm399, %v380, 0
      %v419 = vsel %vm399, %v381, 0
      %v422 = vsel %vm399, %v382, 0
      %v425 = vsel %vm399, %v383, 0
      %v428 = vsel %vm399, %v384, 0
      %v431 = vsel %vm399, %v385, 0
      %v434 = vsel %vm399, %v386, 0
      %v437 = vsel %vm399, %v387, 0
      %v440 = vsel %vm399, %v388, 0
      %v443 = vsel %vm399, %v389, 0
      %v446 = vsel %vm399, %v390, 0
      %v449 = vsel %vm399, %v391, 0
      %v452 = vsel %vm399, %v392, 0
      %v455 = vsel %vm399, %v393, 0
      %v458 = vsel %vm399, %v394, 0
      %v461 = vsel %vm399, %v395, 0
      %v464 = vsel %vm399, %v396, 0
      %v467 = vsel %vm399, %v397, 0
      %v470 = vsel %vm399, %v398, 0
      %vm472 = vcmask 1041408
      %v474 = vsel %vm472, %v270, 0
      %476 = vmatprep.subr.bf16.mxu0 0
      %477 = vmatpush1.bf16.msra.mxu0 %v474
      %478 = vmatprep.subr.bf16.mxu0 0
      %479 = vmatpush1.bf16.msra.mxu0 0
      %480 = vmatprep.subr.bf16.mxu0 0
      %481 = vmatpush1.bf16.msra.mxu0 0
      %482 = vmatprep.subr.bf16.mxu0 0
      %483 = vmatpush1.bf16.msra.mxu0 0
      %484 = vmatprep.subr.bf16.mxu0 0
      %485 = vmatpush1.bf16.msra.mxu0 0
      %486 = vmatprep.subr.bf16.mxu0 0
      %487 = vmatpush1.bf16.msra.mxu0 0
      %488 = vmatprep.subr.bf16.mxu0 0
      %489 = vmatpush1.bf16.msra.mxu0 0
      %490 = vmatprep.subr.bf16.mxu0 0
      %491 = vmatpush1.bf16.msra.mxu0 0
      %492 = vmatprep.subr.bf16.mxu0 0
      %493 = vmatpush1.bf16.msra.mxu0 0
      %494 = vmatprep.subr.bf16.mxu0 0
      %495 = vmatpush1.bf16.msra.mxu0 0
      %496 = vmatprep.subr.bf16.mxu0 0
      %497 = vmatpush1.bf16.msra.mxu0 0
      %498 = vmatprep.subr.bf16.mxu0 0
      %499 = vmatpush1.bf16.msra.mxu0 0
      %500 = vmatprep.subr.bf16.mxu0 0
      %501 = vmatpush1.bf16.msra.mxu0 0
      %502 = vmatprep.subr.bf16.mxu0 0
      %503 = vmatpush1.bf16.msra.mxu0 0
      %504 = vmatprep.subr.bf16.mxu0 0
      %505 = vmatpush1.bf16.msra.mxu0 0
      %506 = vmatprep.subr.bf16.mxu0 0
      %507 = vmatpush1.bf16.msra.mxu0 0
      %508 = vmatprep.mubr.bf16.mxu0 0
      %509 = vmatmul.mubr.bf16.gmra.mrb[0].mxu0 %v401
      %v510 = vpop.f32.mrb[0].mxu0
      %v511 = vadd.f32 0.0, %v510
      %v512 = vpop.f32.mrb[0].mxu0
      %v513 = vpop.f32.mrb[0].mxu0
      %v514 = vadd.f32 0.0, %v513
      %v515 = vpop.f32.mrb[0].mxu0
      %516 = vmatprep.mubr.bf16.mxu0 0
      %517 = vmatmul.mubr.bf16.gmra.mrb[0].mxu0 %v404
      %v518 = vpop.f32.mrb[0].mxu0
      %v519 = vpop.f32.mrb[0].mxu0
      %v520 = vpop.f32.mrb[0].mxu0
      %v521 = vadd.f32 0.0, %v520
      %v522 = vpop.f32.mrb[0].mxu0
      %523 = vmatprep.mubr.bf16.mxu0 0
      %524 = vmatmul.mubr.bf16.gmra.mrb[0].mxu0 %v407
      %v525 = vpop.f32.mrb[0].mxu0
      %v526 = vadd.f32 0.0, %v525
      %v527 = vpop.f32.mrb[0].mxu0
      %v528 = vpop.f32.mrb[0].mxu0
      %v529 = vpop.f32.mrb[0].mxu0
      %530 = vmatprep.mubr.bf16.mxu0 0
      %531 = vmatmul.mubr.bf16.gmra.mrb[0].mxu0 %v410
      %v532 = vpop.f32.mrb[0].mxu0
      %v533 = vadd.f32 0.0, %v532
      %v534 = vpop.f32.mrb[0].mxu0
      %v535 = vpop.f32.mrb[0].mxu0
      %v536 = vadd.f32 0.0, %v535
      %v537 = vpop.f32.mrb[0].mxu0
      %538 = vmatprep.mubr.bf16.mxu0 0
      %539 = vmatmul.mubr.bf16.gmra.mrb[0].mxu0 %v413
      %v540 = vpop.f32.mrb[0].mxu0
      %v541 = vpop.f32.mrb[0].mxu0
      %v542 = vpop.f32.mrb[0].mxu0
      %v543 = vadd.f32 0.0, %v542
      %v544 = vpop.f32.mrb[0].mxu0
      %545 = vmatprep.mubr.bf16.mxu0 0
      %546 = vmatmul.mubr.bf16.gmra.mrb[0].mxu0 %v416
      %v547 = vpop.f32.mrb[0].mxu0
      %v548 = vadd.f32 0.0, %v547
      %v549 = vpop.f32.mrb[0].mxu0
      %v550 = vpop.f32.mrb[0].mxu0
      %v551 = vpop.f32.mrb[0].mxu0
      %552 = vmatprep.mubr.bf16.mxu0 0
      %553 = vmatmul.mubr.bf16.gmra.mrb[0].mxu0 %v419
      %v554 = vpop.f32.mrb[0].mxu0
      %v555 = vadd.f32 0.0, %v554
      %v556 = vpop.f32.mrb[0].mxu0
      %v557 = vpop.f32.mrb[0].mxu0
      %v558 = vadd.f32 0.0, %v557
      %v559 = vpop.f32.mrb[0].mxu0
      %560 = vmatprep.mubr.bf16.mxu0 0
      %561 = vmatmul.mubr.bf16.gmra.mrb[0].mxu0 %v422
      %v562 = vpop.f32.mrb[0].mxu0
      %v563 = vpop.f32.mrb[0].mxu0
      %v564 = vpop.f32.mrb[0].mxu0
      %v565 = vadd.f32 0.0, %v564
      %v566 = vpop.f32.mrb[0].mxu0
      %567 = vmatprep.mubr.bf16.mxu0 0
      %568 = vmatmul.mubr.bf16.gmra.mrb[0].mxu0 %v425
      %v569 = vpop.f32.mrb[0].mxu0
      %v570 = vadd.f32 0.0, %v569
      %v571 = vpop.f32.mrb[0].mxu0
      %v572 = vpop.f32.mrb[0].mxu0
      %v573 = vpop.f32.mrb[0].mxu0
      %574 = vmatprep.mubr.bf16.mxu0 0
      %575 = vmatmul.mubr.bf16.gmra.mrb[0].mxu0 %v428
      %v576 = vpop.f32.mrb[0].mxu0
      %v577 = vadd.f32 0.0, %v576
      %v578 = vpop.f32.mrb[0].mxu0
      %v579 = vpop.f32.mrb[0].mxu0
      %v580 = vadd.f32 0.0, %v579
      %v581 = vpop.f32.mrb[0].mxu0
      %582 = vmatprep.mubr.bf16.mxu0 0
      %583 = vmatmul.mubr.bf16.gmra.mrb[0].mxu0 %v431
      %v584 = vpop.f32.mrb[0].mxu0
      %v585 = vpop.f32.mrb[0].mxu0
      %v586 = vpop.f32.mrb[0].mxu0
      %v587 = vadd.f32 0.0, %v586
      %v588 = vpop.f32.mrb[0].mxu0
      %589 = vmatprep.mubr.bf16.mxu0 0
      %590 = vmatmul.mubr.bf16.gmra.mrb[0].mxu0 %v434
      %v591 = vpop.f32.mrb[0].mxu0
      %v592 = vadd.f32 0.0, %v591
      %v593 = vpop.f32.mrb[0].mxu0
      %v594 = vpop.f32.mrb[0].mxu0
      %v595 = vpop.f32.mrb[0].mxu0
      %596 = vmatprep.mubr.bf16.mxu0 0
      %597 = vmatmul.mubr.bf16.gmra.mrb[0].mxu0 %v437
      %v598 = vpop.f32.mrb[0].mxu0
      %v599 = vadd.f32 0.0, %v598
      %v600 = vpop.f32.mrb[0].mxu0
      %v601 = vpop.f32.mrb[0].mxu0
      %v602 = vadd.f32 0.0, %v601
      %v603 = vpop.f32.mrb[0].mxu0
      %604 = vmatprep.mubr.bf16.mxu0 0
      %605 = vmatmul.mubr.bf16.gmra.mrb[0].mxu0 %v440
      %v606 = vpop.f32.mrb[0].mxu0
      %v607 = vpop.f32.mrb[0].mxu0
      %v608 = vpop.f32.mrb[0].mxu0
      %v609 = vadd.f32 0.0, %v608
      %v610 = vpop.f32.mrb[0].mxu0
      %611 = vmatprep.mubr.bf16.mxu0 0
      %612 = vmatmul.mubr.bf16.gmra.mrb[0].mxu0 %v443
      %v613 = vpop.f32.mrb[0].mxu0
      %v614 = vadd.f32 0.0, %v613
      %v615 = vpop.f32.mrb[0].mxu0
      %v616 = vpop.f32.mrb[0].mxu0
      %v617 = vpop.f32.mrb[0].mxu0
      %618 = vmatprep.mubr.bf16.mxu0 0
      %619 = vmatmul.mubr.bf16.gmra.mrb[0].mxu0 %v446
      %v620 = vpop.f32.mrb[0].mxu0
      %v621 = vadd.f32 0.0, %v620
      %v622 = vpop.f32.mrb[0].mxu0
      %v623 = vpop.f32.mrb[0].mxu0
      %v624 = vadd.f32 0.0, %v623
      %v625 = vpop.f32.mrb[0].mxu0
      %626 = vmatprep.mubr.bf16.mxu0 0
      %627 = vmatmul.mubr.bf16.gmra.mrb[0].mxu0 %v449
      %v628 = vpop.f32.mrb[0].mxu0
      %v629 = vpop.f32.mrb[0].mxu0
      %v630 = vpop.f32.mrb[0].mxu0
      %v631 = vadd.f32 0.0, %v630
      %v632 = vpop.f32.mrb[0].mxu0
      %633 = vmatprep.mubr.bf16.mxu0 0
      %634 = vmatmul.mubr.bf16.gmra.mrb[0].mxu0 %v452
      %v635 = vpop.f32.mrb[0].mxu0
      %v636 = vadd.f32 0.0, %v635
      %v637 = vpop.f32.mrb[0].mxu0
      %v638 = vpop.f32.mrb[0].mxu0
      %v639 = vpop.f32.mrb[0].mxu0
      %640 = vmatprep.mubr.bf16.mxu0 0
      %641 = vmatmul.mubr.bf16.gmra.mrb[0].mxu0 %v455
      %v642 = vpop.f32.mrb[0].mxu0
      %v643 = vadd.f32 0.0, %v642
      %v644 = vpop.f32.mrb[0].mxu0
      %v645 = vpop.f32.mrb[0].mxu0
      %v646 = vadd.f32 0.0, %v645
      %v647 = vpop.f32.mrb[0].mxu0
      %648 = vmatprep.mubr.bf16.mxu0 0
      %649 = vmatmul.mubr.bf16.gmra.mrb[0].mxu0 %v458
      %v650 = vpop.f32.mrb[0].mxu0
      %v651 = vpop.f32.mrb[0].mxu0
      %v652 = vpop.f32.mrb[0].mxu0
      %v653 = vadd.f32 0.0, %v652
      %v654 = vpop.f32.mrb[0].mxu0
      %655 = vmatprep.mubr.bf16.mxu0 0
      %656 = vmatmul.mubr.bf16.gmra.mrb[0].mxu0 %v461
      %v657 = vpop.f32.mrb[0].mxu0
      %v658 = vadd.f32 0.0, %v657
      %v659 = vpop.f32.mrb[0].mxu0
      %v660 = vpop.f32.mrb[0].mxu0
      %v661 = vpop.f32.mrb[0].mxu0
      %662 = vmatprep.mubr.bf16.mxu0 0
      %663 = vmatmul.mubr.bf16.gmra.mrb[0].mxu0 %v464
      %v664 = vpop.f32.mrb[0].mxu0
      %v665 = vadd.f32 0.0, %v664
      %v666 = vpop.f32.mrb[0].mxu0
      %v667 = vpop.f32.mrb[0].mxu0
      %v668 = vadd.f32 0.0, %v667
      %v669 = vpop.f32.mrb[0].mxu0
      %670 = vmatprep.mubr.bf16.mxu0 0
      %671 = vmatmul.mubr.bf16.gmra.mrb[0].mxu0 %v467
      %v672 = vpop.f32.mrb[0].mxu0
      %v673 = vpop.f32.mrb[0].mxu0
      %v674 = vpop.f32.mrb[0].mxu0
      %v675 = vadd.f32 0.0, %v674
      %v676 = vpop.f32.mrb[0].mxu0
      %677 = vmatprep.mubr.bf16.mxu0 0
      %678 = vmatmul.mubr.bf16.gmra.mrb[0].mxu0 %v470
      %v679 = vpop.f32.mrb[0].mxu0
      %v680 = vadd.f32 0.0, %v679
      %v681 = vpop.f32.mrb[0].mxu0
      %v682 = vpop.f32.mrb[0].mxu0
      %v683 = vpop.f32.mrb[0].mxu0
      %684 = vdwg.mxu0
      %v685 = vadd.f32 %v511, 0.0
      %v686 = vadd.f32 %v514, 0.0
      %v687 = vadd.f32 %v521, 0.0
      %v688 = vadd.f32 %v526, 0.0
      %v689 = vadd.f32 %v533, 0.0
      %v690 = vadd.f32 %v536, 0.0
      %v691 = vadd.f32 %v543, 0.0
      %v692 = vadd.f32 %v548, 0.0
      %v693 = vadd.f32 %v555, 0.0
      %v694 = vadd.f32 %v558, 0.0
      %v695 = vadd.f32 %v565, 0.0
      %v696 = vadd.f32 %v570, 0.0
      %v697 = vadd.f32 %v577, 0.0
      %v698 = vadd.f32 %v580, 0.0
      %v699 = vadd.f32 %v587, 0.0
      %v700 = vadd.f32 %v592, 0.0
      %v701 = vadd.f32 %v599, 0.0
      %v702 = vadd.f32 %v602, 0.0
      %v703 = vadd.f32 %v609, 0.0
      %v704 = vadd.f32 %v614, 0.0
      %v705 = vadd.f32 %v621, 0.0
      %v706 = vadd.f32 %v624, 0.0
      %v707 = vadd.f32 %v631, 0.0
      %v708 = vadd.f32 %v636, 0.0
      %v709 = vadd.f32 %v643, 0.0
      %v710 = vadd.f32 %v646, 0.0
      %v711 = vadd.f32 %v653, 0.0
      %v712 = vadd.f32 %v658, 0.0
      %v713 = vadd.f32 %v665, 0.0
      %v714 = vadd.f32 %v668, 0.0
      %v715 = vadd.f32 %v675, 0.0
      %v716 = vadd.f32 %v680, 0.0
      %v718 = vsel %vm472, %v271, 0
      %720 = vmatprep.subr.bf16.mxu0 0
      %721 = vmatpush1.bf16.msra.mxu0 %v718
      %722 = vmatprep.subr.bf16.mxu0 0
      %723 = vmatpush1.bf16.msra.mxu0 0
      %724 = vmatprep.subr.bf16.mxu0 0
      %725 = vmatpush1.bf16.msra.mxu0 0
      %726 = vmatprep.subr.bf16.mxu0 0
      %727 = vmatpush1.bf16.msra.mxu0 0
      %728 = vmatprep.subr.bf16.mxu0 0
      %729 = vmatpush1.bf16.msra.mxu0 0
      %730 = vmatprep.subr.bf16.mxu0 0
      %731 = vmatpush1.bf16.msra.mxu0 0
      %732 = vmatprep.subr.bf16.mxu0 0
      %733 = vmatpush1.bf16.msra.mxu0 0
      %734 = vmatprep.subr.bf16.mxu0 0
      %735 = vmatpush1.bf16.msra.mxu0 0
      %736 = vmatprep.subr.bf16.mxu0 0
      %737 = vmatpush1.bf16.msra.mxu0 0
      %738 = vmatprep.subr.bf16.mxu0 0
      %739 = vmatpush1.bf16.msra.mxu0 0
      %740 = vmatprep.subr.bf16.mxu0 0
      %741 = vmatpush1.bf16.msra.mxu0 0
      %742 = vmatprep.subr.bf16.mxu0 0
      %743 = vmatpush1.bf16.msra.mxu0 0
      %744 = vmatprep.subr.bf16.mxu0 0
      %745 = vmatpush1.bf16.msra.mxu0 0
      %746 = vmatprep.subr.bf16.mxu0 0
      %747 = vmatpush1.bf16.msra.mxu0 0
      %748 = vmatprep.subr.bf16.mxu0 0
      %749 = vmatpush1.bf16.msra.mxu0 0
      %750 = vmatprep.subr.bf16.mxu0 0
      %751 = vmatpush1.bf16.msra.mxu0 0
      %752 = vmatprep.mubr.bf16.mxu0 0
      %753 = vmatmul.mubr.bf16.gmra.mrb[0].mxu0 %v401
      %v754 = vpop.f32.mrb[0].mxu0
      %v755 = vadd.f32 0.0, %v754
      %v756 = vpop.f32.mrb[0].mxu0
      %v757 = vpop.f32.mrb[0].mxu0
      %v758 = vadd.f32 0.0, %v757
      %v759 = vpop.f32.mrb[0].mxu0
      %760 = vmatprep.mubr.bf16.mxu0 0
      %761 = vmatmul.mubr.bf16.gmra.mrb[0].mxu0 %v404
      %v762 = vpop.f32.mrb[0].mxu0
      %v763 = vadd.f32 0.0, %v762
      %v764 = vpop.f32.mrb[0].mxu0
      %v765 = vpop.f32.mrb[0].mxu0
      %v766 = vadd.f32 0.0, %v765
      %v767 = vpop.f32.mrb[0].mxu0
      %768 = vmatprep.mubr.bf16.mxu0 0
      %769 = vmatmul.mubr.bf16.gmra.mrb[0].mxu0 %v407
      %v770 = vpop.f32.mrb[0].mxu0
      %v771 = vadd.f32 0.0, %v770
      %v772 = vpop.f32.mrb[0].mxu0
      %v773 = vpop.f32.mrb[0].mxu0
      %v774 = vadd.f32 0.0, %v773
      %v775 = vpop.f32.mrb[0].mxu0
      %776 = vmatprep.mubr.bf16.mxu0 0
      %777 = vmatmul.mubr.bf16.gmra.mrb[0].mxu0 %v410
      %v778 = vpop.f32.mrb[0].mxu0
      %v779 = vadd.f32 0.0, %v778
      %v780 = vpop.f32.mrb[0].mxu0
      %v781 = vpop.f32.mrb[0].mxu0
      %v782 = vadd.f32 0.0, %v781
      %v783 = vpop.f32.mrb[0].mxu0
      %784 = vmatprep.mubr.bf16.mxu0 0
      %785 = vmatmul.mubr.bf16.gmra.mrb[0].mxu0 %v413
      %v786 = vpop.f32.mrb[0].mxu0
      %v787 = vadd.f32 0.0, %v786
      %v788 = vpop.f32.mrb[0].mxu0
      %v789 = vpop.f32.mrb[0].mxu0
      %v790 = vadd.f32 0.0, %v789
      %v791 = vpop.f32.mrb[0].mxu0
      %792 = vmatprep.mubr.bf16.mxu0 0
      %793 = vmatmul.mubr.bf16.gmra.mrb[0].mxu0 %v416
      %v794 = vpop.f32.mrb[0].mxu0
      %v795 = vadd.f32 0.0, %v794
      %v796 = vpop.f32.mrb[0].mxu0
      %v797 = vpop.f32.mrb[0].mxu0
      %v798 = vadd.f32 0.0, %v797
      %v799 = vpop.f32.mrb[0].mxu0
      %800 = vmatprep.mubr.bf16.mxu0 0
      %801 = vmatmul.mubr.bf16.gmra.mrb[0].mxu0 %v419
      %v802 = vpop.f32.mrb[0].mxu0
      %v803 = vadd.f32 0.0, %v802
      %v804 = vpop.f32.mrb[0].mxu0
      %v805 = vpop.f32.mrb[0].mxu0
      %v806 = vadd.f32 0.0, %v805
      %v807 = vpop.f32.mrb[0].mxu0
      %808 = vmatprep.mubr.bf16.mxu0 0
      %809 = vmatmul.mubr.bf16.gmra.mrb[0].mxu0 %v422
      %v810 = vpop.f32.mrb[0].mxu0
      %v811 = vadd.f32 0.0, %v810
      %v812 = vpop.f32.mrb[0].mxu0
      %v813 = vpop.f32.mrb[0].mxu0
      %v814 = vadd.f32 0.0, %v813
      %v815 = vpop.f32.mrb[0].mxu0
      %816 = vmatprep.mubr.bf16.mxu0 0
      %817 = vmatmul.mubr.bf16.gmra.mrb[0].mxu0 %v425
      %v818 = vpop.f32.mrb[0].mxu0
      %v819 = vadd.f32 0.0, %v818
      %v820 = vpop.f32.mrb[0].mxu0
      %v821 = vpop.f32.mrb[0].mxu0
      %v822 = vadd.f32 0.0, %v821
      %v823 = vpop.f32.mrb[0].mxu0
      %824 = vmatprep.mubr.bf16.mxu0 0
      %825 = vmatmul.mubr.bf16.gmra.mrb[0].mxu0 %v428
      %v826 = vpop.f32.mrb[0].mxu0
      %v827 = vadd.f32 0.0, %v826
      %v828 = vpop.f32.mrb[0].mxu0
      %v829 = vpop.f32.mrb[0].mxu0
      %v830 = vadd.f32 0.0, %v829
      %v831 = vpop.f32.mrb[0].mxu0
      %832 = vmatprep.mubr.bf16.mxu0 0
      %833 = vmatmul.mubr.bf16.gmra.mrb[0].mxu0 %v431
      %v834 = vpop.f32.mrb[0].mxu0
      %v835 = vadd.f32 0.0, %v834
      %v836 = vpop.f32.mrb[0].mxu0
      %v837 = vpop.f32.mrb[0].mxu0
      %v838 = vadd.f32 0.0, %v837
      %v839 = vpop.f32.mrb[0].mxu0
      %840 = vmatprep.mubr.bf16.mxu0 0
      %841 = vmatmul.mubr.bf16.gmra.mrb[0].mxu0 %v434
      %v842 = vpop.f32.mrb[0].mxu0
      %v843 = vadd.f32 0.0, %v842
      %v844 = vpop.f32.mrb[0].mxu0
      %v845 = vpop.f32.mrb[0].mxu0
      %v846 = vadd.f32 0.0, %v845
      %v847 = vpop.f32.mrb[0].mxu0
      %848 = vmatprep.mubr.bf16.mxu0 0
      %849 = vmatmul.mubr.bf16.gmra.mrb[0].mxu0 %v437
      %v850 = vpop.f32.mrb[0].mxu0
      %v851 = vadd.f32 0.0, %v850
      %v852 = vpop.f32.mrb[0].mxu0
      %v853 = vpop.f32.mrb[0].mxu0
      %v854 = vadd.f32 0.0, %v853
      %v855 = vpop.f32.mrb[0].mxu0
      %856 = vmatprep.mubr.bf16.mxu0 0
      %857 = vmatmul.mubr.bf16.gmra.mrb[0].mxu0 %v440
      %v858 = vpop.f32.mrb[0].mxu0
      %v859 = vadd.f32 0.0, %v858
      %v860 = vpop.f32.mrb[0].mxu0
      %v861 = vpop.f32.mrb[0].mxu0
      %v862 = vadd.f32 0.0, %v861
      %v863 = vpop.f32.mrb[0].mxu0
      %864 = vmatprep.mubr.bf16.mxu0 0
      %865 = vmatmul.mubr.bf16.gmra.mrb[0].mxu0 %v443
      %v866 = vpop.f32.mrb[0].mxu0
      %v867 = vadd.f32 0.0, %v866
      %v868 = vpop.f32.mrb[0].mxu0
      %v869 = vpop.f32.mrb[0].mxu0
      %v870 = vadd.f32 0.0, %v869
      %v871 = vpop.f32.mrb[0].mxu0
      %872 = vmatprep.mubr.bf16.mxu0 0
      %873 = vmatmul.mubr.bf16.gmra.mrb[0].mxu0 %v446
      %v874 = vpop.f32.mrb[0].mxu0
      %v875 = vadd.f32 0.0, %v874
      %v876 = vpop.f32.mrb[0].mxu0
      %v877 = vpop.f32.mrb[0].mxu0
      %v878 = vadd.f32 0.0, %v877
      %v879 = vpop.f32.mrb[0].mxu0
      %880 = vmatprep.mubr.bf16.mxu0 0
      %881 = vmatmul.mubr.bf16.gmra.mrb[0].mxu0 %v449
      %v882 = vpop.f32.mrb[0].mxu0
      %v883 = vadd.f32 0.0, %v882
      %v884 = vpop.f32.mrb[0].mxu0
      %v885 = vpop.f32.mrb[0].mxu0
      %v886 = vadd.f32 0.0, %v885
      %v887 = vpop.f32.mrb[0].mxu0
      %888 = vmatprep.mubr.bf16.mxu0 0
      %889 = vmatmul.mubr.bf16.gmra.mrb[0].mxu0 %v452
      %v890 = vpop.f32.mrb[0].mxu0
      %v891 = vadd.f32 0.0, %v890
      %v892 = vpop.f32.mrb[0].mxu0
      %v893 = vpop.f32.mrb[0].mxu0
      %v894 = vadd.f32 0.0, %v893
      %v895 = vpop.f32.mrb[0].mxu0
      %896 = vmatprep.mubr.bf16.mxu0 0
      %897 = vmatmul.mubr.bf16.gmra.mrb[0].mxu0 %v455
      %v898 = vpop.f32.mrb[0].mxu0
      %v899 = vadd.f32 0.0, %v898
      %v900 = vpop.f32.mrb[0].mxu0
      %v901 = vpop.f32.mrb[0].mxu0
      %v902 = vadd.f32 0.0, %v901
      %v903 = vpop.f32.mrb[0].mxu0
      %904 = vmatprep.mubr.bf16.mxu0 0
      %905 = vmatmul.mubr.bf16.gmra.mrb[0].mxu0 %v458
      %v906 = vpop.f32.mrb[0].mxu0
      %v907 = vadd.f32 0.0, %v906
      %v908 = vpop.f32.mrb[0].mxu0
      %v909 = vpop.f32.mrb[0].mxu0
      %v910 = vadd.f32 0.0, %v909
      %v911 = vpop.f32.mrb[0].mxu0
      %912 = vmatprep.mubr.bf16.mxu0 0
      %913 = vmatmul.mubr.bf16.gmra.mrb[0].mxu0 %v461
      %v914 = vpop.f32.mrb[0].mxu0
      %v915 = vadd.f32 0.0, %v914
      %v916 = vpop.f32.mrb[0].mxu0
      %v917 = vpop.f32.mrb[0].mxu0
      %v918 = vadd.f32 0.0, %v917
      %v919 = vpop.f32.mrb[0].mxu0
      %920 = vmatprep.mubr.bf16.mxu0 0
      %921 = vmatmul.mubr.bf16.gmra.mrb[0].mxu0 %v464
      %v922 = vpop.f32.mrb[0].mxu0
      %v923 = vadd.f32 0.0, %v922
      %v924 = vpop.f32.mrb[0].mxu0
      %v925 = vpop.f32.mrb[0].mxu0
      %v926 = vadd.f32 0.0, %v925
      %v927 = vpop.f32.mrb[0].mxu0
      %928 = vmatprep.mubr.bf16.mxu0 0
      %929 = vmatmul.mubr.bf16.gmra.mrb[0].mxu0 %v467
      %v930 = vpop.f32.mrb[0].mxu0
      %v931 = vadd.f32 0.0, %v930
      %v932 = vpop.f32.mrb[0].mxu0
      %v933 = vpop.f32.mrb[0].mxu0
      %v934 = vadd.f32 0.0, %v933
      %v935 = vpop.f32.mrb[0].mxu0
      %936 = vmatprep.mubr.bf16.mxu0 0
      %937 = vmatmul.mubr.bf16.gmra.mrb[0].mxu0 %v470
      %v938 = vpop.f32.mrb[0].mxu0
      %v939 = vadd.f32 0.0, %v938
      %v940 = vpop.f32.mrb[0].mxu0
      %v941 = vpop.f32.mrb[0].mxu0
      %v942 = vadd.f32 0.0, %v941
      %v943 = vpop.f32.mrb[0].mxu0
      %944 = vdwg.mxu0
      %vm993 = vcmask 1046528
      %v994 = vrot.slane %v755, 1
      %v995 = vrot.slane %v758, 1
      %v996 = vsel %vm993, %v994, %v995
      %v997 = vrot.slane %v763, 1
      %v998 = vsel %vm993, %v995, %v997
      %v999 = vrot.slane %v766, 1
      %v1000 = vrot.slane %v771, 1
      %v1001 = vsel %vm993, %v999, %v1000
      %v1002 = vrot.slane %v774, 1
      %v1003 = vsel %vm993, %v1000, %v1002
      %v1004 = vrot.slane %v779, 1
      %v1005 = vrot.slane %v782, 1
      %v1006 = vsel %vm993, %v1004, %v1005
      %v1007 = vrot.slane %v787, 1
      %v1008 = vsel %vm993, %v1005, %v1007
      %v1009 = vrot.slane %v790, 1
      %v1010 = vrot.slane %v795, 1
      %v1011 = vsel %vm993, %v1009, %v1010
      %v1012 = vrot.slane %v798, 1
      %v1013 = vsel %vm993, %v1010, %v1012
      %v1014 = vrot.slane %v803, 1
      %v1015 = vrot.slane %v806, 1
      %v1016 = vsel %vm993, %v1014, %v1015
      %v1017 = vrot.slane %v811, 1
      %v1018 = vsel %vm993, %v1015, %v1017
      %v1019 = vrot.slane %v814, 1
      %v1020 = vrot.slane %v819, 1
      %v1021 = vsel %vm993, %v1019, %v1020
      %v1022 = vrot.slane %v822, 1
      %v1023 = vsel %vm993, %v1020, %v1022
      %v1024 = vrot.slane %v827, 1
      %v1025 = vrot.slane %v830, 1
      %v1026 = vsel %vm993, %v1024, %v1025
      %v1027 = vrot.slane %v835, 1
      %v1028 = vsel %vm993, %v1025, %v1027
      %v1029 = vrot.slane %v838, 1
      %v1030 = vrot.slane %v843, 1
      %v1031 = vsel %vm993, %v1029, %v1030
      %v1032 = vrot.slane %v846, 1
      %v1033 = vsel %vm993, %v1030, %v1032
      %v1034 = vrot.slane %v851, 1
      %v1035 = vrot.slane %v854, 1
      %v1036 = vsel %vm993, %v1034, %v1035
      %v1037 = vrot.slane %v859, 1
      %v1038 = vsel %vm993, %v1035, %v1037
      %v1039 = vrot.slane %v862, 1
      %v1040 = vrot.slane %v867, 1
      %v1041 = vsel %vm993, %v1039, %v1040
      %v1042 = vrot.slane %v870, 1
      %v1043 = vsel %vm993, %v1040, %v1042
      %v1044 = vrot.slane %v875, 1
      %v1045 = vrot.slane %v878, 1
      %v1046 = vsel %vm993, %v1044, %v1045
      %v1047 = vrot.slane %v883, 1
      %v1048 = vsel %vm993, %v1045, %v1047
      %v1049 = vrot.slane %v886, 1
      %v1050 = vrot.slane %v891, 1
      %v1051 = vsel %vm993, %v1049, %v1050
      %v1052 = vrot.slane %v894, 1
      %v1053 = vsel %vm993, %v1050, %v1052
      %v1054 = vrot.slane %v899, 1
      %v1055 = vrot.slane %v902, 1
      %v1056 = vsel %vm993, %v1054, %v1055
      %v1057 = vrot.slane %v907, 1
      %v1058 = vsel %vm993, %v1055, %v1057
      %v1059 = vrot.slane %v910, 1
      %v1060 = vrot.slane %v915, 1
      %v1061 = vsel %vm993, %v1059, %v1060
      %v1062 = vrot.slane %v918, 1
      %v1063 = vsel %vm993, %v1060, %v1062
      %v1064 = vrot.slane %v923, 1
      %v1065 = vrot.slane %v926, 1
      %v1066 = vsel %vm993, %v1064, %v1065
      %v1067 = vrot.slane %v931, 1
      %v1068 = vsel %vm993, %v1065, %v1067
      %v1069 = vrot.slane %v934, 1
      %v1070 = vrot.slane %v939, 1
      %v1071 = vsel %vm993, %v1069, %v1070
      %v1072 = vrot.slane %v942, 1
      %v1073 = vsel %vm993, %v1070, %v1072
      %v1106 = vadd.f32 %v685, %v996
      %v1107 = vadd.f32 %v686, %v998
      %v1108 = vadd.f32 %v687, %v1001
      %v1109 = vadd.f32 %v688, %v1003
      %v1110 = vadd.f32 %v689, %v1006
      %v1111 = vadd.f32 %v690, %v1008
      %v1112 = vadd.f32 %v691, %v1011
      %v1113 = vadd.f32 %v692, %v1013
      %v1114 = vadd.f32 %v693, %v1016
      %v1115 = vadd.f32 %v694, %v1018
      %v1116 = vadd.f32 %v695, %v1021
      %v1117 = vadd.f32 %v696, %v1023
      %v1118 = vadd.f32 %v697, %v1026
      %v1119 = vadd.f32 %v698, %v1028
      %v1120 = vadd.f32 %v699, %v1031
      %v1121 = vadd.f32 %v700, %v1033
      %v1122 = vadd.f32 %v701, %v1036
      %v1123 = vadd.f32 %v702, %v1038
      %v1124 = vadd.f32 %v703, %v1041
      %v1125 = vadd.f32 %v704, %v1043
      %v1126 = vadd.f32 %v705, %v1046
      %v1127 = vadd.f32 %v706, %v1048
      %v1128 = vadd.f32 %v707, %v1051
      %v1129 = vadd.f32 %v708, %v1053
      %v1130 = vadd.f32 %v709, %v1056
      %v1131 = vadd.f32 %v710, %v1058
      %v1132 = vadd.f32 %v711, %v1061
      %v1133 = vadd.f32 %v712, %v1063
      %v1134 = vadd.f32 %v713, %v1066
      %v1135 = vadd.f32 %v714, %v1068
      %v1136 = vadd.f32 %v715, %v1071
      %v1137 = vadd.f32 %v716, %v1073
      %v1139 = vsel %vm472, %v272, 0
      %1141 = vmatprep.subr.bf16.mxu0 0
      %1142 = vmatpush1.bf16.msra.mxu0 %v1139
      %1143 = vmatprep.subr.bf16.mxu0 0
      %1144 = vmatpush1.bf16.msra.mxu0 0
      %1145 = vmatprep.subr.bf16.mxu0 0
      %1146 = vmatpush1.bf16.msra.mxu0 0
      %1147 = vmatprep.subr.bf16.mxu0 0
      %1148 = vmatpush1.bf16.msra.mxu0 0
      %1149 = vmatprep.subr.bf16.mxu0 0
      %1150 = vmatpush1.bf16.msra.mxu0 0
      %1151 = vmatprep.subr.bf16.mxu0 0
      %1152 = vmatpush1.bf16.msra.mxu0 0
      %1153 = vmatprep.subr.bf16.mxu0 0
      %1154 = vmatpush1.bf16.msra.mxu0 0
      %1155 = vmatprep.subr.bf16.mxu0 0
      %1156 = vmatpush1.bf16.msra.mxu0 0
      %1157 = vmatprep.subr.bf16.mxu0 0
      %1158 = vmatpush1.bf16.msra.mxu0 0
      %1159 = vmatprep.subr.bf16.mxu0 0
      %1160 = vmatpush1.bf16.msra.mxu0 0
      %1161 = vmatprep.subr.bf16.mxu0 0
      %1162 = vmatpush1.bf16.msra.mxu0 0
      %1163 = vmatprep.subr.bf16.mxu0 0
      %1164 = vmatpush1.bf16.msra.mxu0 0
      %1165 = vmatprep.subr.bf16.mxu0 0
      %1166 = vmatpush1.bf16.msra.mxu0 0
      %1167 = vmatprep.subr.bf16.mxu0 0
      %1168 = vmatpush1.bf16.msra.mxu0 0
      %1169 = vmatprep.subr.bf16.mxu0 0
      %1170 = vmatpush1.bf16.msra.mxu0 0
      %1171 = vmatprep.subr.bf16.mxu0 0
      %1172 = vmatpush1.bf16.msra.mxu0 0
      %1173 = vmatprep.mubr.bf16.mxu0 0
      %1174 = vmatmul.mubr.bf16.gmra.mrb[0].mxu0 %v401
      %v1175 = vpop.f32.mrb[0].mxu0
      %v1176 = vadd.f32 0.0, %v1175
      %v1177 = vpop.f32.mrb[0].mxu0
      %v1178 = vpop.f32.mrb[0].mxu0
      %v1179 = vadd.f32 0.0, %v1178
      %v1180 = vpop.f32.mrb[0].mxu0
      %1181 = vmatprep.mubr.bf16.mxu0 0
      %1182 = vmatmul.mubr.bf16.gmra.mrb[0].mxu0 %v404
      %v1183 = vpop.f32.mrb[0].mxu0
      %v1184 = vadd.f32 0.0, %v1183
      %v1185 = vpop.f32.mrb[0].mxu0
      %v1186 = vpop.f32.mrb[0].mxu0
      %v1187 = vadd.f32 0.0, %v1186
      %v1188 = vpop.f32.mrb[0].mxu0
      %1189 = vmatprep.mubr.bf16.mxu0 0
      %1190 = vmatmul.mubr.bf16.gmra.mrb[0].mxu0 %v407
      %v1191 = vpop.f32.mrb[0].mxu0
      %v1192 = vadd.f32 0.0, %v1191
      %v1193 = vpop.f32.mrb[0].mxu0
      %v1194 = vpop.f32.mrb[0].mxu0
      %v1195 = vadd.f32 0.0, %v1194
      %v1196 = vpop.f32.mrb[0].mxu0
      %1197 = vmatprep.mubr.bf16.mxu0 0
      %1198 = vmatmul.mubr.bf16.gmra.mrb[0].mxu0 %v410
      %v1199 = vpop.f32.mrb[0].mxu0
      %v1200 = vadd.f32 0.0, %v1199
      %v1201 = vpop.f32.mrb[0].mxu0
      %v1202 = vpop.f32.mrb[0].mxu0
      %v1203 = vadd.f32 0.0, %v1202
      %v1204 = vpop.f32.mrb[0].mxu0
      %1205 = vmatprep.mubr.bf16.mxu0 0
      %1206 = vmatmul.mubr.bf16.gmra.mrb[0].mxu0 %v413
      %v1207 = vpop.f32.mrb[0].mxu0
      %v1208 = vadd.f32 0.0, %v1207
      %v1209 = vpop.f32.mrb[0].mxu0
      %v1210 = vpop.f32.mrb[0].mxu0
      %v1211 = vadd.f32 0.0, %v1210
      %v1212 = vpop.f32.mrb[0].mxu0
      %1213 = vmatprep.mubr.bf16.mxu0 0
      %1214 = vmatmul.mubr.bf16.gmra.mrb[0].mxu0 %v416
      %v1215 = vpop.f32.mrb[0].mxu0
      %v1216 = vadd.f32 0.0, %v1215
      %v1217 = vpop.f32.mrb[0].mxu0
      %v1218 = vpop.f32.mrb[0].mxu0
      %v1219 = vadd.f32 0.0, %v1218
      %v1220 = vpop.f32.mrb[0].mxu0
      %1221 = vmatprep.mubr.bf16.mxu0 0
      %1222 = vmatmul.mubr.bf16.gmra.mrb[0].mxu0 %v419
      %v1223 = vpop.f32.mrb[0].mxu0
      %v1224 = vadd.f32 0.0, %v1223
      %v1225 = vpop.f32.mrb[0].mxu0
      %v1226 = vpop.f32.mrb[0].mxu0
      %v1227 = vadd.f32 0.0, %v1226
      %v1228 = vpop.f32.mrb[0].mxu0
      %1229 = vmatprep.mubr.bf16.mxu0 0
      %1230 = vmatmul.mubr.bf16.gmra.mrb[0].mxu0 %v422
      %v1231 = vpop.f32.mrb[0].mxu0
      %v1232 = vadd.f32 0.0, %v1231
      %v1233 = vpop.f32.mrb[0].mxu0
      %v1234 = vpop.f32.mrb[0].mxu0
      %v1235 = vadd.f32 0.0, %v1234
      %v1236 = vpop.f32.mrb[0].mxu0
      %1237 = vmatprep.mubr.bf16.mxu0 0
      %1238 = vmatmul.mubr.bf16.gmra.mrb[0].mxu0 %v425
      %v1239 = vpop.f32.mrb[0].mxu0
      %v1240 = vadd.f32 0.0, %v1239
      %v1241 = vpop.f32.mrb[0].mxu0
      %v1242 = vpop.f32.mrb[0].mxu0
      %v1243 = vadd.f32 0.0, %v1242
      %v1244 = vpop.f32.mrb[0].mxu0
      %1245 = vmatprep.mubr.bf16.mxu0 0
      %1246 = vmatmul.mubr.bf16.gmra.mrb[0].mxu0 %v428
      %v1247 = vpop.f32.mrb[0].mxu0
      %v1248 = vadd.f32 0.0, %v1247
      %v1249 = vpop.f32.mrb[0].mxu0
      %v1250 = vpop.f32.mrb[0].mxu0
      %v1251 = vadd.f32 0.0, %v1250
      %v1252 = vpop.f32.mrb[0].mxu0
      %1253 = vmatprep.mubr.bf16.mxu0 0
      %1254 = vmatmul.mubr.bf16.gmra.mrb[0].mxu0 %v431
      %v1255 = vpop.f32.mrb[0].mxu0
      %v1256 = vadd.f32 0.0, %v1255
      %v1257 = vpop.f32.mrb[0].mxu0
      %v1258 = vpop.f32.mrb[0].mxu0
      %v1259 = vadd.f32 0.0, %v1258
      %v1260 = vpop.f32.mrb[0].mxu0
      %1261 = vmatprep.mubr.bf16.mxu0 0
      %1262 = vmatmul.mubr.bf16.gmra.mrb[0].mxu0 %v434
      %v1263 = vpop.f32.mrb[0].mxu0
      %v1264 = vadd.f32 0.0, %v1263
      %v1265 = vpop.f32.mrb[0].mxu0
      %v1266 = vpop.f32.mrb[0].mxu0
      %v1267 = vadd.f32 0.0, %v1266
      %v1268 = vpop.f32.mrb[0].mxu0
      %1269 = vmatprep.mubr.bf16.mxu0 0
      %1270 = vmatmul.mubr.bf16.gmra.mrb[0].mxu0 %v437
      %v1271 = vpop.f32.mrb[0].mxu0
      %v1272 = vadd.f32 0.0, %v1271
      %v1273 = vpop.f32.mrb[0].mxu0
      %v1274 = vpop.f32.mrb[0].mxu0
      %v1275 = vadd.f32 0.0, %v1274
      %v1276 = vpop.f32.mrb[0].mxu0
      %1277 = vmatprep.mubr.bf16.mxu0 0
      %1278 = vmatmul.mubr.bf16.gmra.mrb[0].mxu0 %v440
      %v1279 = vpop.f32.mrb[0].mxu0
      %v1280 = vadd.f32 0.0, %v1279
      %v1281 = vpop.f32.mrb[0].mxu0
      %v1282 = vpop.f32.mrb[0].mxu0
      %v1283 = vadd.f32 0.0, %v1282
      %v1284 = vpop.f32.mrb[0].mxu0
      %1285 = vmatprep.mubr.bf16.mxu0 0
      %1286 = vmatmul.mubr.bf16.gmra.mrb[0].mxu0 %v443
      %v1287 = vpop.f32.mrb[0].mxu0
      %v1288 = vadd.f32 0.0, %v1287
      %v1289 = vpop.f32.mrb[0].mxu0
      %v1290 = vpop.f32.mrb[0].mxu0
      %v1291 = vadd.f32 0.0, %v1290
      %v1292 = vpop.f32.mrb[0].mxu0
      %1293 = vmatprep.mubr.bf16.mxu0 0
      %1294 = vmatmul.mubr.bf16.gmra.mrb[0].mxu0 %v446
      %v1295 = vpop.f32.mrb[0].mxu0
      %v1296 = vadd.f32 0.0, %v1295
      %v1297 = vpop.f32.mrb[0].mxu0
      %v1298 = vpop.f32.mrb[0].mxu0
      %v1299 = vadd.f32 0.0, %v1298
      %v1300 = vpop.f32.mrb[0].mxu0
      %1301 = vmatprep.mubr.bf16.mxu0 0
      %1302 = vmatmul.mubr.bf16.gmra.mrb[0].mxu0 %v449
      %v1303 = vpop.f32.mrb[0].mxu0
      %v1304 = vadd.f32 0.0, %v1303
      %v1305 = vpop.f32.mrb[0].mxu0
      %v1306 = vpop.f32.mrb[0].mxu0
      %v1307 = vadd.f32 0.0, %v1306
      %v1308 = vpop.f32.mrb[0].mxu0
      %1309 = vmatprep.mubr.bf16.mxu0 0
      %1310 = vmatmul.mubr.bf16.gmra.mrb[0].mxu0 %v452
      %v1311 = vpop.f32.mrb[0].mxu0
      %v1312 = vadd.f32 0.0, %v1311
      %v1313 = vpop.f32.mrb[0].mxu0
      %v1314 = vpop.f32.mrb[0].mxu0
      %v1315 = vadd.f32 0.0, %v1314
      %v1316 = vpop.f32.mrb[0].mxu0
      %1317 = vmatprep.mubr.bf16.mxu0 0
      %1318 = vmatmul.mubr.bf16.gmra.mrb[0].mxu0 %v455
      %v1319 = vpop.f32.mrb[0].mxu0
      %v1320 = vadd.f32 0.0, %v1319
      %v1321 = vpop.f32.mrb[0].mxu0
      %v1322 = vpop.f32.mrb[0].mxu0
      %v1323 = vadd.f32 0.0, %v1322
      %v1324 = vpop.f32.mrb[0].mxu0
      %1325 = vmatprep.mubr.bf16.mxu0 0
      %1326 = vmatmul.mubr.bf16.gmra.mrb[0].mxu0 %v458
      %v1327 = vpop.f32.mrb[0].mxu0
      %v1328 = vadd.f32 0.0, %v1327
      %v1329 = vpop.f32.mrb[0].mxu0
      %v1330 = vpop.f32.mrb[0].mxu0
      %v1331 = vadd.f32 0.0, %v1330
      %v1332 = vpop.f32.mrb[0].mxu0
      %1333 = vmatprep.mubr.bf16.mxu0 0
      %1334 = vmatmul.mubr.bf16.gmra.mrb[0].mxu0 %v461
      %v1335 = vpop.f32.mrb[0].mxu0
      %v1336 = vadd.f32 0.0, %v1335
      %v1337 = vpop.f32.mrb[0].mxu0
      %v1338 = vpop.f32.mrb[0].mxu0
      %v1339 = vadd.f32 0.0, %v1338
      %v1340 = vpop.f32.mrb[0].mxu0
      %1341 = vmatprep.mubr.bf16.mxu0 0
      %1342 = vmatmul.mubr.bf16.gmra.mrb[0].mxu0 %v464
      %v1343 = vpop.f32.mrb[0].mxu0
      %v1344 = vadd.f32 0.0, %v1343
      %v1345 = vpop.f32.mrb[0].mxu0
      %v1346 = vpop.f32.mrb[0].mxu0
      %v1347 = vadd.f32 0.0, %v1346
      %v1348 = vpop.f32.mrb[0].mxu0
      %1349 = vmatprep.mubr.bf16.mxu0 0
      %1350 = vmatmul.mubr.bf16.gmra.mrb[0].mxu0 %v467
      %v1351 = vpop.f32.mrb[0].mxu0
      %v1352 = vadd.f32 0.0, %v1351
      %v1353 = vpop.f32.mrb[0].mxu0
      %v1354 = vpop.f32.mrb[0].mxu0
      %v1355 = vadd.f32 0.0, %v1354
      %v1356 = vpop.f32.mrb[0].mxu0
      %1357 = vmatprep.mubr.bf16.mxu0 0
      %1358 = vmatmul.mubr.bf16.gmra.mrb[0].mxu0 %v470
      %v1359 = vpop.f32.mrb[0].mxu0
      %v1360 = vadd.f32 0.0, %v1359
      %v1361 = vpop.f32.mrb[0].mxu0
      %v1362 = vpop.f32.mrb[0].mxu0
      %v1363 = vadd.f32 0.0, %v1362
      %v1364 = vpop.f32.mrb[0].mxu0
      %1365 = vdwg.mxu0
      %vm1414 = vcmask 1045504
      %v1415 = vrot.slane %v1176, 2
      %v1416 = vrot.slane %v1179, 2
      %v1417 = vsel %vm1414, %v1415, %v1416
      %v1418 = vrot.slane %v1184, 2
      %v1419 = vsel %vm1414, %v1416, %v1418
      %v1420 = vrot.slane %v1187, 2
      %v1421 = vrot.slane %v1192, 2
      %v1422 = vsel %vm1414, %v1420, %v1421
      %v1423 = vrot.slane %v1195, 2
      %v1424 = vsel %vm1414, %v1421, %v1423
      %v1425 = vrot.slane %v1200, 2
      %v1426 = vrot.slane %v1203, 2
      %v1427 = vsel %vm1414, %v1425, %v1426
      %v1428 = vrot.slane %v1208, 2
      %v1429 = vsel %vm1414, %v1426, %v1428
      %v1430 = vrot.slane %v1211, 2
      %v1431 = vrot.slane %v1216, 2
      %v1432 = vsel %vm1414, %v1430, %v1431
      %v1433 = vrot.slane %v1219, 2
      %v1434 = vsel %vm1414, %v1431, %v1433
      %v1435 = vrot.slane %v1224, 2
      %v1436 = vrot.slane %v1227, 2
      %v1437 = vsel %vm1414, %v1435, %v1436
      %v1438 = vrot.slane %v1232, 2
      %v1439 = vsel %vm1414, %v1436, %v1438
      %v1440 = vrot.slane %v1235, 2
      %v1441 = vrot.slane %v1240, 2
      %v1442 = vsel %vm1414, %v1440, %v1441
      %v1443 = vrot.slane %v1243, 2
      %v1444 = vsel %vm1414, %v1441, %v1443
      %v1445 = vrot.slane %v1248, 2
      %v1446 = vrot.slane %v1251, 2
      %v1447 = vsel %vm1414, %v1445, %v1446
      %v1448 = vrot.slane %v1256, 2
      %v1449 = vsel %vm1414, %v1446, %v1448
      %v1450 = vrot.slane %v1259, 2
      %v1451 = vrot.slane %v1264, 2
      %v1452 = vsel %vm1414, %v1450, %v1451
      %v1453 = vrot.slane %v1267, 2
      %v1454 = vsel %vm1414, %v1451, %v1453
      %v1455 = vrot.slane %v1272, 2
      %v1456 = vrot.slane %v1275, 2
      %v1457 = vsel %vm1414, %v1455, %v1456
      %v1458 = vrot.slane %v1280, 2
      %v1459 = vsel %vm1414, %v1456, %v1458
      %v1460 = vrot.slane %v1283, 2
      %v1461 = vrot.slane %v1288, 2
      %v1462 = vsel %vm1414, %v1460, %v1461
      %v1463 = vrot.slane %v1291, 2
      %v1464 = vsel %vm1414, %v1461, %v1463
      %v1465 = vrot.slane %v1296, 2
      %v1466 = vrot.slane %v1299, 2
      %v1467 = vsel %vm1414, %v1465, %v1466
      %v1468 = vrot.slane %v1304, 2
      %v1469 = vsel %vm1414, %v1466, %v1468
      %v1470 = vrot.slane %v1307, 2
      %v1471 = vrot.slane %v1312, 2
      %v1472 = vsel %vm1414, %v1470, %v1471
      %v1473 = vrot.slane %v1315, 2
      %v1474 = vsel %vm1414, %v1471, %v1473
      %v1475 = vrot.slane %v1320, 2
      %v1476 = vrot.slane %v1323, 2
      %v1477 = vsel %vm1414, %v1475, %v1476
      %v1478 = vrot.slane %v1328, 2
      %v1479 = vsel %vm1414, %v1476, %v1478
      %v1480 = vrot.slane %v1331, 2
      %v1481 = vrot.slane %v1336, 2
      %v1482 = vsel %vm1414, %v1480, %v1481
      %v1483 = vrot.slane %v1339, 2
      %v1484 = vsel %vm1414, %v1481, %v1483
      %v1485 = vrot.slane %v1344, 2
      %v1486 = vrot.slane %v1347, 2
      %v1487 = vsel %vm1414, %v1485, %v1486
      %v1488 = vrot.slane %v1352, 2
      %v1489 = vsel %vm1414, %v1486, %v1488
      %v1490 = vrot.slane %v1355, 2
      %v1491 = vrot.slane %v1360, 2
      %v1492 = vsel %vm1414, %v1490, %v1491
      %v1493 = vrot.slane %v1363, 2
      %v1494 = vsel %vm1414, %v1491, %v1493
      %v1527 = vadd.f32 %v1106, %v1417
      %v1528 = vadd.f32 %v1107, %v1419
      %v1529 = vadd.f32 %v1108, %v1422
      %v1530 = vadd.f32 %v1109, %v1424
      %v1531 = vadd.f32 %v1110, %v1427
      %v1532 = vadd.f32 %v1111, %v1429
      %v1533 = vadd.f32 %v1112, %v1432
      %v1534 = vadd.f32 %v1113, %v1434
      %v1535 = vadd.f32 %v1114, %v1437
      %v1536 = vadd.f32 %v1115, %v1439
      %v1537 = vadd.f32 %v1116, %v1442
      %v1538 = vadd.f32 %v1117, %v1444
      %v1539 = vadd.f32 %v1118, %v1447
      %v1540 = vadd.f32 %v1119, %v1449
      %v1541 = vadd.f32 %v1120, %v1452
      %v1542 = vadd.f32 %v1121, %v1454
      %v1543 = vadd.f32 %v1122, %v1457
      %v1544 = vadd.f32 %v1123, %v1459
      %v1545 = vadd.f32 %v1124, %v1462
      %v1546 = vadd.f32 %v1125, %v1464
      %v1547 = vadd.f32 %v1126, %v1467
      %v1548 = vadd.f32 %v1127, %v1469
      %v1549 = vadd.f32 %v1128, %v1472
      %v1550 = vadd.f32 %v1129, %v1474
      %v1551 = vadd.f32 %v1130, %v1477
      %v1552 = vadd.f32 %v1131, %v1479
      %v1553 = vadd.f32 %v1132, %v1482
      %v1554 = vadd.f32 %v1133, %v1484
      %v1555 = vadd.f32 %v1134, %v1487
      %v1556 = vadd.f32 %v1135, %v1489
      %v1557 = vadd.f32 %v1136, %v1492
      %v1558 = vadd.f32 %v1137, %v1494
      %v1562 = vunpack.c.l.b16 %v264
      %v1563 = vunpack.c.l.b16 %v265
      %v1564 = vunpack.c.l.b16 %v266
      %v1565 = vpack.c.b16 %v331, %v330
      %v1566 = vpack.c.b16 %v333, %v332
      %v1567 = vpack.c.b16 %v335, %v334
      %v1568 = vpack.c.b16 %v337, %v336
      %v1569 = vpack.c.b16 %v339, %v338
      %v1570 = vpack.c.b16 %v341, %v340
      %v1571 = vpack.c.b16 %v343, %v342
      %v1572 = vpack.c.b16 %v345, %v344
      %v1573 = vpack.c.b16 %v347, %v346
      %v1574 = vpack.c.b16 %v349, %v348
      %v1575 = vpack.c.b16 %v351, %v350
      %v1576 = vpack.c.b16 %v353, %v352
      %v1577 = vpack.c.b16 %v355, %v354
      %v1578 = vpack.c.b16 %v357, %v356
      %v1579 = vpack.c.b16 %v359, %v358
      %v1580 = vpack.c.b16 %v361, %v360
      %v1581 = vpack.c.b16 %v363, %v362
      %v1582 = vpack.c.b16 %v365, %v364
      %v1583 = vpack.c.b16 %v367, %v366
      %v1584 = vpack.c.b16 %v369, %v368
      %v1585 = vpack.c.b16 %v371, %v370
      %v1586 = vpack.c.b16 %v373, %v372
      %v1587 = vpack.c.b16 %v1562, %v374
      %v1588 = vpack.c.b16 %v1564, %v1563
      %v1590 = vsel %vm399, %v1565, 0
      %v1593 = vsel %vm399, %v1566, 0
      %v1596 = vsel %vm399, %v1567, 0
      %v1599 = vsel %vm399, %v1568, 0
      %v1602 = vsel %vm399, %v1569, 0
      %v1605 = vsel %vm399, %v1570, 0
      %v1608 = vsel %vm399, %v1571, 0
      %v1611 = vsel %vm399, %v1572, 0
      %v1614 = vsel %vm399, %v1573, 0
      %v1617 = vsel %vm399, %v1574, 0
      %v1620 = vsel %vm399, %v1575, 0
      %v1623 = vsel %vm399, %v1576, 0
      %v1626 = vsel %vm399, %v1577, 0
      %v1629 = vsel %vm399, %v1578, 0
      %v1632 = vsel %vm399, %v1579, 0
      %v1635 = vsel %vm399, %v1580, 0
      %v1638 = vsel %vm399, %v1581, 0
      %v1641 = vsel %vm399, %v1582, 0
      %v1644 = vsel %vm399, %v1583, 0
      %v1647 = vsel %vm399, %v1584, 0
      %v1650 = vsel %vm399, %v1585, 0
      %v1653 = vsel %vm399, %v1586, 0
      %v1656 = vsel %vm399, %v1587, 0
      %v1659 = vsel %vm399, %v1588, 0
      %v1662 = vsel %vm472, %v273, 0
      %1664 = vmatprep.subr.bf16.mxu0 0
      %1665 = vmatpush1.bf16.msra.mxu0 %v1662
      %1666 = vmatprep.subr.bf16.mxu0 0
      %1667 = vmatpush1.bf16.msra.mxu0 0
      %1668 = vmatprep.subr.bf16.mxu0 0
      %1669 = vmatpush1.bf16.msra.mxu0 0
      %1670 = vmatprep.subr.bf16.mxu0 0
      %1671 = vmatpush1.bf16.msra.mxu0 0
      %1672 = vmatprep.subr.bf16.mxu0 0
      %1673 = vmatpush1.bf16.msra.mxu0 0
      %1674 = vmatprep.subr.bf16.mxu0 0
      %1675 = vmatpush1.bf16.msra.mxu0 0
      %1676 = vmatprep.subr.bf16.mxu0 0
      %1677 = vmatpush1.bf16.msra.mxu0 0
      %1678 = vmatprep.subr.bf16.mxu0 0
      %1679 = vmatpush1.bf16.msra.mxu0 0
      %1680 = vmatprep.subr.bf16.mxu0 0
      %1681 = vmatpush1.bf16.msra.mxu0 0
      %1682 = vmatprep.subr.bf16.mxu0 0
      %1683 = vmatpush1.bf16.msra.mxu0 0
      %1684 = vmatprep.subr.bf16.mxu0 0
      %1685 = vmatpush1.bf16.msra.mxu0 0
      %1686 = vmatprep.subr.bf16.mxu0 0
      %1687 = vmatpush1.bf16.msra.mxu0 0
      %1688 = vmatprep.subr.bf16.mxu0 0
      %1689 = vmatpush1.bf16.msra.mxu0 0
      %1690 = vmatprep.subr.bf16.mxu0 0
      %1691 = vmatpush1.bf16.msra.mxu0 0
      %1692 = vmatprep.subr.bf16.mxu0 0
      %1693 = vmatpush1.bf16.msra.mxu0 0
      %1694 = vmatprep.subr.bf16.mxu0 0
      %1695 = vmatpush1.bf16.msra.mxu0 0
      %1696 = vmatprep.mubr.bf16.mxu0 0
      %1697 = vmatmul.mubr.bf16.gmra.mrb[0].mxu0 %v1590
      %v1698 = vpop.f32.mrb[0].mxu0
      %v1699 = vadd.f32 0.0, %v1698
      %v1700 = vpop.f32.mrb[0].mxu0
      %v1701 = vpop.f32.mrb[0].mxu0
      %v1702 = vadd.f32 0.0, %v1701
      %v1703 = vpop.f32.mrb[0].mxu0
      %1704 = vmatprep.mubr.bf16.mxu0 0
      %1705 = vmatmul.mubr.bf16.gmra.mrb[0].mxu0 %v1593
      %v1706 = vpop.f32.mrb[0].mxu0
      %v1707 = vpop.f32.mrb[0].mxu0
      %v1708 = vpop.f32.mrb[0].mxu0
      %v1709 = vadd.f32 0.0, %v1708
      %v1710 = vpop.f32.mrb[0].mxu0
      %1711 = vmatprep.mubr.bf16.mxu0 0
      %1712 = vmatmul.mubr.bf16.gmra.mrb[0].mxu0 %v1596
      %v1713 = vpop.f32.mrb[0].mxu0
      %v1714 = vadd.f32 0.0, %v1713
      %v1715 = vpop.f32.mrb[0].mxu0
      %v1716 = vpop.f32.mrb[0].mxu0
      %v1717 = vpop.f32.mrb[0].mxu0
      %1718 = vmatprep.mubr.bf16.mxu0 0
      %1719 = vmatmul.mubr.bf16.gmra.mrb[0].mxu0 %v1599
      %v1720 = vpop.f32.mrb[0].mxu0
      %v1721 = vadd.f32 0.0, %v1720
      %v1722 = vpop.f32.mrb[0].mxu0
      %v1723 = vpop.f32.mrb[0].mxu0
      %v1724 = vadd.f32 0.0, %v1723
      %v1725 = vpop.f32.mrb[0].mxu0
      %1726 = vmatprep.mubr.bf16.mxu0 0
      %1727 = vmatmul.mubr.bf16.gmra.mrb[0].mxu0 %v1602
      %v1728 = vpop.f32.mrb[0].mxu0
      %v1729 = vpop.f32.mrb[0].mxu0
      %v1730 = vpop.f32.mrb[0].mxu0
      %v1731 = vadd.f32 0.0, %v1730
      %v1732 = vpop.f32.mrb[0].mxu0
      %1733 = vmatprep.mubr.bf16.mxu0 0
      %1734 = vmatmul.mubr.bf16.gmra.mrb[0].mxu0 %v1605
      %v1735 = vpop.f32.mrb[0].mxu0
      %v1736 = vadd.f32 0.0, %v1735
      %v1737 = vpop.f32.mrb[0].mxu0
      %v1738 = vpop.f32.mrb[0].mxu0
      %v1739 = vpop.f32.mrb[0].mxu0
      %1740 = vmatprep.mubr.bf16.mxu0 0
      %1741 = vmatmul.mubr.bf16.gmra.mrb[0].mxu0 %v1608
      %v1742 = vpop.f32.mrb[0].mxu0
      %v1743 = vadd.f32 0.0, %v1742
      %v1744 = vpop.f32.mrb[0].mxu0
      %v1745 = vpop.f32.mrb[0].mxu0
      %v1746 = vadd.f32 0.0, %v1745
      %v1747 = vpop.f32.mrb[0].mxu0
      %1748 = vmatprep.mubr.bf16.mxu0 0
      %1749 = vmatmul.mubr.bf16.gmra.mrb[0].mxu0 %v1611
      %v1750 = vpop.f32.mrb[0].mxu0
      %v1751 = vpop.f32.mrb[0].mxu0
      %v1752 = vpop.f32.mrb[0].mxu0
      %v1753 = vadd.f32 0.0, %v1752
      %v1754 = vpop.f32.mrb[0].mxu0
      %1755 = vmatprep.mubr.bf16.mxu0 0
      %1756 = vmatmul.mubr.bf16.gmra.mrb[0].mxu0 %v1614
      %v1757 = vpop.f32.mrb[0].mxu0
      %v1758 = vadd.f32 0.0, %v1757
      %v1759 = vpop.f32.mrb[0].mxu0
      %v1760 = vpop.f32.mrb[0].mxu0
      %v1761 = vpop.f32.mrb[0].mxu0
      %1762 = vmatprep.mubr.bf16.mxu0 0
      %1763 = vmatmul.mubr.bf16.gmra.mrb[0].mxu0 %v1617
      %v1764 = vpop.f32.mrb[0].mxu0
      %v1765 = vadd.f32 0.0, %v1764
      %v1766 = vpop.f32.mrb[0].mxu0
      %v1767 = vpop.f32.mrb[0].mxu0
      %v1768 = vadd.f32 0.0, %v1767
      %v1769 = vpop.f32.mrb[0].mxu0
      %1770 = vmatprep.mubr.bf16.mxu0 0
      %1771 = vmatmul.mubr.bf16.gmra.mrb[0].mxu0 %v1620
      %v1772 = vpop.f32.mrb[0].mxu0
      %v1773 = vpop.f32.mrb[0].mxu0
      %v1774 = vpop.f32.mrb[0].mxu0
      %v1775 = vadd.f32 0.0, %v1774
      %v1776 = vpop.f32.mrb[0].mxu0
      %1777 = vmatprep.mubr.bf16.mxu0 0
      %1778 = vmatmul.mubr.bf16.gmra.mrb[0].mxu0 %v1623
      %v1779 = vpop.f32.mrb[0].mxu0
      %v1780 = vadd.f32 0.0, %v1779
      %v1781 = vpop.f32.mrb[0].mxu0
      %v1782 = vpop.f32.mrb[0].mxu0
      %v1783 = vpop.f32.mrb[0].mxu0
      %1784 = vmatprep.mubr.bf16.mxu0 0
      %1785 = vmatmul.mubr.bf16.gmra.mrb[0].mxu0 %v1626
      %v1786 = vpop.f32.mrb[0].mxu0
      %v1787 = vadd.f32 0.0, %v1786
      %v1788 = vpop.f32.mrb[0].mxu0
      %v1789 = vpop.f32.mrb[0].mxu0
      %v1790 = vadd.f32 0.0, %v1789
      %v1791 = vpop.f32.mrb[0].mxu0
      %1792 = vmatprep.mubr.bf16.mxu0 0
      %1793 = vmatmul.mubr.bf16.gmra.mrb[0].mxu0 %v1629
      %v1794 = vpop.f32.mrb[0].mxu0
      %v1795 = vpop.f32.mrb[0].mxu0
      %v1796 = vpop.f32.mrb[0].mxu0
      %v1797 = vadd.f32 0.0, %v1796
      %v1798 = vpop.f32.mrb[0].mxu0
      %1799 = vmatprep.mubr.bf16.mxu0 0
      %1800 = vmatmul.mubr.bf16.gmra.mrb[0].mxu0 %v1632
      %v1801 = vpop.f32.mrb[0].mxu0
      %v1802 = vadd.f32 0.0, %v1801
      %v1803 = vpop.f32.mrb[0].mxu0
      %v1804 = vpop.f32.mrb[0].mxu0
      %v1805 = vpop.f32.mrb[0].mxu0
      %1806 = vmatprep.mubr.bf16.mxu0 0
      %1807 = vmatmul.mubr.bf16.gmra.mrb[0].mxu0 %v1635
      %v1808 = vpop.f32.mrb[0].mxu0
      %v1809 = vadd.f32 0.0, %v1808
      %v1810 = vpop.f32.mrb[0].mxu0
      %v1811 = vpop.f32.mrb[0].mxu0
      %v1812 = vadd.f32 0.0, %v1811
      %v1813 = vpop.f32.mrb[0].mxu0
      %1814 = vmatprep.mubr.bf16.mxu0 0
      %1815 = vmatmul.mubr.bf16.gmra.mrb[0].mxu0 %v1638
      %v1816 = vpop.f32.mrb[0].mxu0
      %v1817 = vpop.f32.mrb[0].mxu0
      %v1818 = vpop.f32.mrb[0].mxu0
      %v1819 = vadd.f32 0.0, %v1818
      %v1820 = vpop.f32.mrb[0].mxu0
      %1821 = vmatprep.mubr.bf16.mxu0 0
      %1822 = vmatmul.mubr.bf16.gmra.mrb[0].mxu0 %v1641
      %v1823 = vpop.f32.mrb[0].mxu0
      %v1824 = vadd.f32 0.0, %v1823
      %v1825 = vpop.f32.mrb[0].mxu0
      %v1826 = vpop.f32.mrb[0].mxu0
      %v1827 = vpop.f32.mrb[0].mxu0
      %1828 = vmatprep.mubr.bf16.mxu0 0
      %1829 = vmatmul.mubr.bf16.gmra.mrb[0].mxu0 %v1644
      %v1830 = vpop.f32.mrb[0].mxu0
      %v1831 = vadd.f32 0.0, %v1830
      %v1832 = vpop.f32.mrb[0].mxu0
      %v1833 = vpop.f32.mrb[0].mxu0
      %v1834 = vadd.f32 0.0, %v1833
      %v1835 = vpop.f32.mrb[0].mxu0
      %1836 = vmatprep.mubr.bf16.mxu0 0
      %1837 = vmatmul.mubr.bf16.gmra.mrb[0].mxu0 %v1647
      %v1838 = vpop.f32.mrb[0].mxu0
      %v1839 = vpop.f32.mrb[0].mxu0
      %v1840 = vpop.f32.mrb[0].mxu0
      %v1841 = vadd.f32 0.0, %v1840
      %v1842 = vpop.f32.mrb[0].mxu0
      %1843 = vmatprep.mubr.bf16.mxu0 0
      %1844 = vmatmul.mubr.bf16.gmra.mrb[0].mxu0 %v1650
      %v1845 = vpop.f32.mrb[0].mxu0
      %v1846 = vadd.f32 0.0, %v1845
      %v1847 = vpop.f32.mrb[0].mxu0
      %v1848 = vpop.f32.mrb[0].mxu0
      %v1849 = vpop.f32.mrb[0].mxu0
      %1850 = vmatprep.mubr.bf16.mxu0 0
      %1851 = vmatmul.mubr.bf16.gmra.mrb[0].mxu0 %v1653
      %v1852 = vpop.f32.mrb[0].mxu0
      %v1853 = vadd.f32 0.0, %v1852
      %v1854 = vpop.f32.mrb[0].mxu0
      %v1855 = vpop.f32.mrb[0].mxu0
      %v1856 = vadd.f32 0.0, %v1855
      %v1857 = vpop.f32.mrb[0].mxu0
      %1858 = vmatprep.mubr.bf16.mxu0 0
      %1859 = vmatmul.mubr.bf16.gmra.mrb[0].mxu0 %v1656
      %v1860 = vpop.f32.mrb[0].mxu0
      %v1861 = vpop.f32.mrb[0].mxu0
      %v1862 = vpop.f32.mrb[0].mxu0
      %v1863 = vadd.f32 0.0, %v1862
      %v1864 = vpop.f32.mrb[0].mxu0
      %1865 = vmatprep.mubr.bf16.mxu0 0
      %1866 = vmatmul.mubr.bf16.gmra.mrb[0].mxu0 %v1659
      %v1867 = vpop.f32.mrb[0].mxu0
      %v1868 = vadd.f32 0.0, %v1867
      %v1869 = vpop.f32.mrb[0].mxu0
      %v1870 = vpop.f32.mrb[0].mxu0
      %v1871 = vpop.f32.mrb[0].mxu0
      %1872 = vdwg.mxu0
      %v1873 = vadd.f32 %v1527, %v1699
      %v1874 = vadd.f32 %v1528, %v1702
      %v1875 = vadd.f32 %v1529, %v1709
      %v1876 = vadd.f32 %v1530, %v1714
      %v1877 = vadd.f32 %v1531, %v1721
      %v1878 = vadd.f32 %v1532, %v1724
      %v1879 = vadd.f32 %v1533, %v1731
      %v1880 = vadd.f32 %v1534, %v1736
      %v1881 = vadd.f32 %v1535, %v1743
      %v1882 = vadd.f32 %v1536, %v1746
      %v1883 = vadd.f32 %v1537, %v1753
      %v1884 = vadd.f32 %v1538, %v1758
      %v1885 = vadd.f32 %v1539, %v1765
      %v1886 = vadd.f32 %v1540, %v1768
      %v1887 = vadd.f32 %v1541, %v1775
      %v1888 = vadd.f32 %v1542, %v1780
      %v1889 = vadd.f32 %v1543, %v1787
      %v1890 = vadd.f32 %v1544, %v1790
      %v1891 = vadd.f32 %v1545, %v1797
      %v1892 = vadd.f32 %v1546, %v1802
      %v1893 = vadd.f32 %v1547, %v1809
      %v1894 = vadd.f32 %v1548, %v1812
      %v1895 = vadd.f32 %v1549, %v1819
      %v1896 = vadd.f32 %v1550, %v1824
      %v1897 = vadd.f32 %v1551, %v1831
      %v1898 = vadd.f32 %v1552, %v1834
      %v1899 = vadd.f32 %v1553, %v1841
      %v1900 = vadd.f32 %v1554, %v1846
      %v1901 = vadd.f32 %v1555, %v1853
      %v1902 = vadd.f32 %v1556, %v1856
      %v1903 = vadd.f32 %v1557, %v1863
      %v1904 = vadd.f32 %v1558, %v1868
      %v1906 = vsel %vm472, %v274, 0
      %1908 = vmatprep.subr.bf16.mxu0 0
      %1909 = vmatpush1.bf16.msra.mxu0 %v1906
      %1910 = vmatprep.subr.bf16.mxu0 0
      %1911 = vmatpush1.bf16.msra.mxu0 0
      %1912 = vmatprep.subr.bf16.mxu0 0
      %1913 = vmatpush1.bf16.msra.mxu0 0
      %1914 = vmatprep.subr.bf16.mxu0 0
      %1915 = vmatpush1.bf16.msra.mxu0 0
      %1916 = vmatprep.subr.bf16.mxu0 0
      %1917 = vmatpush1.bf16.msra.mxu0 0
      %1918 = vmatprep.subr.bf16.mxu0 0
      %1919 = vmatpush1.bf16.msra.mxu0 0
      %1920 = vmatprep.subr.bf16.mxu0 0
      %1921 = vmatpush1.bf16.msra.mxu0 0
      %1922 = vmatprep.subr.bf16.mxu0 0
      %1923 = vmatpush1.bf16.msra.mxu0 0
      %1924 = vmatprep.subr.bf16.mxu0 0
      %1925 = vmatpush1.bf16.msra.mxu0 0
      %1926 = vmatprep.subr.bf16.mxu0 0
      %1927 = vmatpush1.bf16.msra.mxu0 0
      %1928 = vmatprep.subr.bf16.mxu0 0
      %1929 = vmatpush1.bf16.msra.mxu0 0
      %1930 = vmatprep.subr.bf16.mxu0 0
      %1931 = vmatpush1.bf16.msra.mxu0 0
      %1932 = vmatprep.subr.bf16.mxu0 0
      %1933 = vmatpush1.bf16.msra.mxu0 0
      %1934 = vmatprep.subr.bf16.mxu0 0
      %1935 = vmatpush1.bf16.msra.mxu0 0
      %1936 = vmatprep.subr.bf16.mxu0 0
      %1937 = vmatpush1.bf16.msra.mxu0 0
      %1938 = vmatprep.subr.bf16.mxu0 0
      %1939 = vmatpush1.bf16.msra.mxu0 0
      %1940 = vmatprep.mubr.bf16.mxu0 0
      %1941 = vmatmul.mubr.bf16.gmra.mrb[0].mxu0 %v1590
      %v1942 = vpop.f32.mrb[0].mxu0
      %v1943 = vadd.f32 0.0, %v1942
      %v1944 = vpop.f32.mrb[0].mxu0
      %v1945 = vpop.f32.mrb[0].mxu0
      %v1946 = vadd.f32 0.0, %v1945
      %v1947 = vpop.f32.mrb[0].mxu0
      %1948 = vmatprep.mubr.bf16.mxu0 0
      %1949 = vmatmul.mubr.bf16.gmra.mrb[0].mxu0 %v1593
      %v1950 = vpop.f32.mrb[0].mxu0
      %v1951 = vadd.f32 0.0, %v1950
      %v1952 = vpop.f32.mrb[0].mxu0
      %v1953 = vpop.f32.mrb[0].mxu0
      %v1954 = vadd.f32 0.0, %v1953
      %v1955 = vpop.f32.mrb[0].mxu0
      %1956 = vmatprep.mubr.bf16.mxu0 0
      %1957 = vmatmul.mubr.bf16.gmra.mrb[0].mxu0 %v1596
      %v1958 = vpop.f32.mrb[0].mxu0
      %v1959 = vadd.f32 0.0, %v1958
      %v1960 = vpop.f32.mrb[0].mxu0
      %v1961 = vpop.f32.mrb[0].mxu0
      %v1962 = vadd.f32 0.0, %v1961
      %v1963 = vpop.f32.mrb[0].mxu0
      %1964 = vmatprep.mubr.bf16.mxu0 0
      %1965 = vmatmul.mubr.bf16.gmra.mrb[0].mxu0 %v1599
      %v1966 = vpop.f32.mrb[0].mxu0
      %v1967 = vadd.f32 0.0, %v1966
      %v1968 = vpop.f32.mrb[0].mxu0
      %v1969 = vpop.f32.mrb[0].mxu0
      %v1970 = vadd.f32 0.0, %v1969
      %v1971 = vpop.f32.mrb[0].mxu0
      %1972 = vmatprep.mubr.bf16.mxu0 0
      %1973 = vmatmul.mubr.bf16.gmra.mrb[0].mxu0 %v1602
      %v1974 = vpop.f32.mrb[0].mxu0
      %v1975 = vadd.f32 0.0, %v1974
      %v1976 = vpop.f32.mrb[0].mxu0
      %v1977 = vpop.f32.mrb[0].mxu0
      %v1978 = vadd.f32 0.0, %v1977
      %v1979 = vpop.f32.mrb[0].mxu0
      %1980 = vmatprep.mubr.bf16.mxu0 0
      %1981 = vmatmul.mubr.bf16.gmra.mrb[0].mxu0 %v1605
      %v1982 = vpop.f32.mrb[0].mxu0
      %v1983 = vadd.f32 0.0, %v1982
      %v1984 = vpop.f32.mrb[0].mxu0
      %v1985 = vpop.f32.mrb[0].mxu0
      %v1986 = vadd.f32 0.0, %v1985
      %v1987 = vpop.f32.mrb[0].mxu0
      %1988 = vmatprep.mubr.bf16.mxu0 0
      %1989 = vmatmul.mubr.bf16.gmra.mrb[0].mxu0 %v1608
      %v1990 = vpop.f32.mrb[0].mxu0
      %v1991 = vadd.f32 0.0, %v1990
      %v1992 = vpop.f32.mrb[0].mxu0
      %v1993 = vpop.f32.mrb[0].mxu0
      %v1994 = vadd.f32 0.0, %v1993
      %v1995 = vpop.f32.mrb[0].mxu0
      %1996 = vmatprep.mubr.bf16.mxu0 0
      %1997 = vmatmul.mubr.bf16.gmra.mrb[0].mxu0 %v1611
      %v1998 = vpop.f32.mrb[0].mxu0
      %v1999 = vadd.f32 0.0, %v1998
      %v2000 = vpop.f32.mrb[0].mxu0
      %v2001 = vpop.f32.mrb[0].mxu0
      %v2002 = vadd.f32 0.0, %v2001
      %v2003 = vpop.f32.mrb[0].mxu0
      %2004 = vmatprep.mubr.bf16.mxu0 0
      %2005 = vmatmul.mubr.bf16.gmra.mrb[0].mxu0 %v1614
      %v2006 = vpop.f32.mrb[0].mxu0
      %v2007 = vadd.f32 0.0, %v2006
      %v2008 = vpop.f32.mrb[0].mxu0
      %v2009 = vpop.f32.mrb[0].mxu0
      %v2010 = vadd.f32 0.0, %v2009
      %v2011 = vpop.f32.mrb[0].mxu0
      %2012 = vmatprep.mubr.bf16.mxu0 0
      %2013 = vmatmul.mubr.bf16.gmra.mrb[0].mxu0 %v1617
      %v2014 = vpop.f32.mrb[0].mxu0
      %v2015 = vadd.f32 0.0, %v2014
      %v2016 = vpop.f32.mrb[0].mxu0
      %v2017 = vpop.f32.mrb[0].mxu0
      %v2018 = vadd.f32 0.0, %v2017
      %v2019 = vpop.f32.mrb[0].mxu0
      %2020 = vmatprep.mubr.bf16.mxu0 0
      %2021 = vmatmul.mubr.bf16.gmra.mrb[0].mxu0 %v1620
      %v2022 = vpop.f32.mrb[0].mxu0
      %v2023 = vadd.f32 0.0, %v2022
      %v2024 = vpop.f32.mrb[0].mxu0
      %v2025 = vpop.f32.mrb[0].mxu0
      %v2026 = vadd.f32 0.0, %v2025
      %v2027 = vpop.f32.mrb[0].mxu0
      %2028 = vmatprep.mubr.bf16.mxu0 0
      %2029 = vmatmul.mubr.bf16.gmra.mrb[0].mxu0 %v1623
      %v2030 = vpop.f32.mrb[0].mxu0
      %v2031 = vadd.f32 0.0, %v2030
      %v2032 = vpop.f32.mrb[0].mxu0
      %v2033 = vpop.f32.mrb[0].mxu0
      %v2034 = vadd.f32 0.0, %v2033
      %v2035 = vpop.f32.mrb[0].mxu0
      %2036 = vmatprep.mubr.bf16.mxu0 0
      %2037 = vmatmul.mubr.bf16.gmra.mrb[0].mxu0 %v1626
      %v2038 = vpop.f32.mrb[0].mxu0
      %v2039 = vadd.f32 0.0, %v2038
      %v2040 = vpop.f32.mrb[0].mxu0
      %v2041 = vpop.f32.mrb[0].mxu0
      %v2042 = vadd.f32 0.0, %v2041
      %v2043 = vpop.f32.mrb[0].mxu0
      %2044 = vmatprep.mubr.bf16.mxu0 0
      %2045 = vmatmul.mubr.bf16.gmra.mrb[0].mxu0 %v1629
      %v2046 = vpop.f32.mrb[0].mxu0
      %v2047 = vadd.f32 0.0, %v2046
      %v2048 = vpop.f32.mrb[0].mxu0
      %v2049 = vpop.f32.mrb[0].mxu0
      %v2050 = vadd.f32 0.0, %v2049
      %v2051 = vpop.f32.mrb[0].mxu0
      %2052 = vmatprep.mubr.bf16.mxu0 0
      %2053 = vmatmul.mubr.bf16.gmra.mrb[0].mxu0 %v1632
      %v2054 = vpop.f32.mrb[0].mxu0
      %v2055 = vadd.f32 0.0, %v2054
      %v2056 = vpop.f32.mrb[0].mxu0
      %v2057 = vpop.f32.mrb[0].mxu0
      %v2058 = vadd.f32 0.0, %v2057
      %v2059 = vpop.f32.mrb[0].mxu0
      %2060 = vmatprep.mubr.bf16.mxu0 0
      %2061 = vmatmul.mubr.bf16.gmra.mrb[0].mxu0 %v1635
      %v2062 = vpop.f32.mrb[0].mxu0
      %v2063 = vadd.f32 0.0, %v2062
      %v2064 = vpop.f32.mrb[0].mxu0
      %v2065 = vpop.f32.mrb[0].mxu0
      %v2066 = vadd.f32 0.0, %v2065
      %v2067 = vpop.f32.mrb[0].mxu0
      %2068 = vmatprep.mubr.bf16.mxu0 0
      %2069 = vmatmul.mubr.bf16.gmra.mrb[0].mxu0 %v1638
      %v2070 = vpop.f32.mrb[0].mxu0
      %v2071 = vadd.f32 0.0, %v2070
      %v2072 = vpop.f32.mrb[0].mxu0
      %v2073 = vpop.f32.mrb[0].mxu0
      %v2074 = vadd.f32 0.0, %v2073
      %v2075 = vpop.f32.mrb[0].mxu0
      %2076 = vmatprep.mubr.bf16.mxu0 0
      %2077 = vmatmul.mubr.bf16.gmra.mrb[0].mxu0 %v1641
      %v2078 = vpop.f32.mrb[0].mxu0
      %v2079 = vadd.f32 0.0, %v2078
      %v2080 = vpop.f32.mrb[0].mxu0
      %v2081 = vpop.f32.mrb[0].mxu0
      %v2082 = vadd.f32 0.0, %v2081
      %v2083 = vpop.f32.mrb[0].mxu0
      %2084 = vmatprep.mubr.bf16.mxu0 0
      %2085 = vmatmul.mubr.bf16.gmra.mrb[0].mxu0 %v1644
      %v2086 = vpop.f32.mrb[0].mxu0
      %v2087 = vadd.f32 0.0, %v2086
      %v2088 = vpop.f32.mrb[0].mxu0
      %v2089 = vpop.f32.mrb[0].mxu0
      %v2090 = vadd.f32 0.0, %v2089
      %v2091 = vpop.f32.mrb[0].mxu0
      %2092 = vmatprep.mubr.bf16.mxu0 0
      %2093 = vmatmul.mubr.bf16.gmra.mrb[0].mxu0 %v1647
      %v2094 = vpop.f32.mrb[0].mxu0
      %v2095 = vadd.f32 0.0, %v2094
      %v2096 = vpop.f32.mrb[0].mxu0
      %v2097 = vpop.f32.mrb[0].mxu0
      %v2098 = vadd.f32 0.0, %v2097
      %v2099 = vpop.f32.mrb[0].mxu0
      %2100 = vmatprep.mubr.bf16.mxu0 0
      %2101 = vmatmul.mubr.bf16.gmra.mrb[0].mxu0 %v1650
      %v2102 = vpop.f32.mrb[0].mxu0
      %v2103 = vadd.f32 0.0, %v2102
      %v2104 = vpop.f32.mrb[0].mxu0
      %v2105 = vpop.f32.mrb[0].mxu0
      %v2106 = vadd.f32 0.0, %v2105
      %v2107 = vpop.f32.mrb[0].mxu0
      %2108 = vmatprep.mubr.bf16.mxu0 0
      %2109 = vmatmul.mubr.bf16.gmra.mrb[0].mxu0 %v1653
      %v2110 = vpop.f32.mrb[0].mxu0
      %v2111 = vadd.f32 0.0, %v2110
      %v2112 = vpop.f32.mrb[0].mxu0
      %v2113 = vpop.f32.mrb[0].mxu0
      %v2114 = vadd.f32 0.0, %v2113
      %v2115 = vpop.f32.mrb[0].mxu0
      %2116 = vmatprep.mubr.bf16.mxu0 0
      %2117 = vmatmul.mubr.bf16.gmra.mrb[0].mxu0 %v1656
      %v2118 = vpop.f32.mrb[0].mxu0
      %v2119 = vadd.f32 0.0, %v2118
      %v2120 = vpop.f32.mrb[0].mxu0
      %v2121 = vpop.f32.mrb[0].mxu0
      %v2122 = vadd.f32 0.0, %v2121
      %v2123 = vpop.f32.mrb[0].mxu0
      %2124 = vmatprep.mubr.bf16.mxu0 0
      %2125 = vmatmul.mubr.bf16.gmra.mrb[0].mxu0 %v1659
      %v2126 = vpop.f32.mrb[0].mxu0
      %v2127 = vadd.f32 0.0, %v2126
      %v2128 = vpop.f32.mrb[0].mxu0
      %v2129 = vpop.f32.mrb[0].mxu0
      %v2130 = vadd.f32 0.0, %v2129
      %v2131 = vpop.f32.mrb[0].mxu0
      %2132 = vdwg.mxu0
      %v2181 = vrot.slane %v1943, 1
      %v2182 = vrot.slane %v1946, 1
      %v2183 = vsel %vm993, %v2181, %v2182
      %v2184 = vrot.slane %v1951, 1
      %v2185 = vsel %vm993, %v2182, %v2184
      %v2186 = vrot.slane %v1954, 1
      %v2187 = vrot.slane %v1959, 1
      %v2188 = vsel %vm993, %v2186, %v2187
      %v2189 = vrot.slane %v1962, 1
      %v2190 = vsel %vm993, %v2187, %v2189
      %v2191 = vrot.slane %v1967, 1
      %v2192 = vrot.slane %v1970, 1
      %v2193 = vsel %vm993, %v2191, %v2192
      %v2194 = vrot.slane %v1975, 1
      %v2195 = vsel %vm993, %v2192, %v2194
      %v2196 = vrot.slane %v1978, 1
      %v2197 = vrot.slane %v1983, 1
      %v2198 = vsel %vm993, %v2196, %v2197
      %v2199 = vrot.slane %v1986, 1
      %v2200 = vsel %vm993, %v2197, %v2199
      %v2201 = vrot.slane %v1991, 1
      %v2202 = vrot.slane %v1994, 1
      %v2203 = vsel %vm993, %v2201, %v2202
      %v2204 = vrot.slane %v1999, 1
      %v2205 = vsel %vm993, %v2202, %v2204
      %v2206 = vrot.slane %v2002, 1
      %v2207 = vrot.slane %v2007, 1
      %v2208 = vsel %vm993, %v2206, %v2207
      %v2209 = vrot.slane %v2010, 1
      %v2210 = vsel %vm993, %v2207, %v2209
      %v2211 = vrot.slane %v2015, 1
      %v2212 = vrot.slane %v2018, 1
      %v2213 = vsel %vm993, %v2211, %v2212
      %v2214 = vrot.slane %v2023, 1
      %v2215 = vsel %vm993, %v2212, %v2214
      %v2216 = vrot.slane %v2026, 1
      %v2217 = vrot.slane %v2031, 1
      %v2218 = vsel %vm993, %v2216, %v2217
      %v2219 = vrot.slane %v2034, 1
      %v2220 = vsel %vm993, %v2217, %v2219
      %v2221 = vrot.slane %v2039, 1
      %v2222 = vrot.slane %v2042, 1
      %v2223 = vsel %vm993, %v2221, %v2222
      %v2224 = vrot.slane %v2047, 1
      %v2225 = vsel %vm993, %v2222, %v2224
      %v2226 = vrot.slane %v2050, 1
      %v2227 = vrot.slane %v2055, 1
      %v2228 = vsel %vm993, %v2226, %v2227
      %v2229 = vrot.slane %v2058, 1
      %v2230 = vsel %vm993, %v2227, %v2229
      %v2231 = vrot.slane %v2063, 1
      %v2232 = vrot.slane %v2066, 1
      %v2233 = vsel %vm993, %v2231, %v2232
      %v2234 = vrot.slane %v2071, 1
      %v2235 = vsel %vm993, %v2232, %v2234
      %v2236 = vrot.slane %v2074, 1
      %v2237 = vrot.slane %v2079, 1
      %v2238 = vsel %vm993, %v2236, %v2237
      %v2239 = vrot.slane %v2082, 1
      %v2240 = vsel %vm993, %v2237, %v2239
      %v2241 = vrot.slane %v2087, 1
      %v2242 = vrot.slane %v2090, 1
      %v2243 = vsel %vm993, %v2241, %v2242
      %v2244 = vrot.slane %v2095, 1
      %v2245 = vsel %vm993, %v2242, %v2244
      %v2246 = vrot.slane %v2098, 1
      %v2247 = vrot.slane %v2103, 1
      %v2248 = vsel %vm993, %v2246, %v2247
      %v2249 = vrot.slane %v2106, 1
      %v2250 = vsel %vm993, %v2247, %v2249
      %v2251 = vrot.slane %v2111, 1
      %v2252 = vrot.slane %v2114, 1
      %v2253 = vsel %vm993, %v2251, %v2252
      %v2254 = vrot.slane %v2119, 1
      %v2255 = vsel %vm993, %v2252, %v2254
      %v2256 = vrot.slane %v2122, 1
      %v2257 = vrot.slane %v2127, 1
      %v2258 = vsel %vm993, %v2256, %v2257
      %v2259 = vrot.slane %v2130, 1
      %v2260 = vsel %vm993, %v2257, %v2259
      %v2293 = vadd.f32 %v1873, %v2183
      %v2294 = vadd.f32 %v1874, %v2185
      %v2295 = vadd.f32 %v1875, %v2188
      %v2296 = vadd.f32 %v1876, %v2190
      %v2297 = vadd.f32 %v1877, %v2193
      %v2298 = vadd.f32 %v1878, %v2195
      %v2299 = vadd.f32 %v1879, %v2198
      %v2300 = vadd.f32 %v1880, %v2200
      %v2301 = vadd.f32 %v1881, %v2203
      %v2302 = vadd.f32 %v1882, %v2205
      %v2303 = vadd.f32 %v1883, %v2208
      %v2304 = vadd.f32 %v1884, %v2210
      %v2305 = vadd.f32 %v1885, %v2213
      %v2306 = vadd.f32 %v1886, %v2215
      %v2307 = vadd.f32 %v1887, %v2218
      %v2308 = vadd.f32 %v1888, %v2220
      %v2309 = vadd.f32 %v1889, %v2223
      %v2310 = vadd.f32 %v1890, %v2225
      %v2311 = vadd.f32 %v1891, %v2228
      %v2312 = vadd.f32 %v1892, %v2230
      %v2313 = vadd.f32 %v1893, %v2233
      %v2314 = vadd.f32 %v1894, %v2235
      %v2315 = vadd.f32 %v1895, %v2238
      %v2316 = vadd.f32 %v1896, %v2240
      %v2317 = vadd.f32 %v1897, %v2243
      %v2318 = vadd.f32 %v1898, %v2245
      %v2319 = vadd.f32 %v1899, %v2248
      %v2320 = vadd.f32 %v1900, %v2250
      %v2321 = vadd.f32 %v1901, %v2253
      %v2322 = vadd.f32 %v1902, %v2255
      %v2323 = vadd.f32 %v1903, %v2258
      %v2324 = vadd.f32 %v1904, %v2260
      %v2326 = vsel %vm472, %v275, 0
      %2328 = vmatprep.subr.bf16.mxu0 0
      %2329 = vmatpush1.bf16.msra.mxu0 %v2326
      %2330 = vmatprep.subr.bf16.mxu0 0
      %2331 = vmatpush1.bf16.msra.mxu0 0
      %2332 = vmatprep.subr.bf16.mxu0 0
      %2333 = vmatpush1.bf16.msra.mxu0 0
      %2334 = vmatprep.subr.bf16.mxu0 0
      %2335 = vmatpush1.bf16.msra.mxu0 0
      %2336 = vmatprep.subr.bf16.mxu0 0
      %2337 = vmatpush1.bf16.msra.mxu0 0
      %2338 = vmatprep.subr.bf16.mxu0 0
      %2339 = vmatpush1.bf16.msra.mxu0 0
      %2340 = vmatprep.subr.bf16.mxu0 0
      %2341 = vmatpush1.bf16.msra.mxu0 0
      %2342 = vmatprep.subr.bf16.mxu0 0
      %2343 = vmatpush1.bf16.msra.mxu0 0
      %2344 = vmatprep.subr.bf16.mxu0 0
      %2345 = vmatpush1.bf16.msra.mxu0 0
      %2346 = vmatprep.subr.bf16.mxu0 0
      %2347 = vmatpush1.bf16.msra.mxu0 0
      %2348 = vmatprep.subr.bf16.mxu0 0
      %2349 = vmatpush1.bf16.msra.mxu0 0
      %2350 = vmatprep.subr.bf16.mxu0 0
      %2351 = vmatpush1.bf16.msra.mxu0 0
      %2352 = vmatprep.subr.bf16.mxu0 0
      %2353 = vmatpush1.bf16.msra.mxu0 0
      %2354 = vmatprep.subr.bf16.mxu0 0
      %2355 = vmatpush1.bf16.msra.mxu0 0
      %2356 = vmatprep.subr.bf16.mxu0 0
      %2357 = vmatpush1.bf16.msra.mxu0 0
      %2358 = vmatprep.subr.bf16.mxu0 0
      %2359 = vmatpush1.bf16.msra.mxu0 0
      %2360 = vmatprep.mubr.bf16.mxu0 0
      %2361 = vmatmul.mubr.bf16.gmra.mrb[0].mxu0 %v1590
      %v2362 = vpop.f32.mrb[0].mxu0
      %v2363 = vadd.f32 0.0, %v2362
      %v2364 = vpop.f32.mrb[0].mxu0
      %v2365 = vpop.f32.mrb[0].mxu0
      %v2366 = vadd.f32 0.0, %v2365
      %v2367 = vpop.f32.mrb[0].mxu0
      %2368 = vmatprep.mubr.bf16.mxu0 0
      %2369 = vmatmul.mubr.bf16.gmra.mrb[0].mxu0 %v1593
      %v2370 = vpop.f32.mrb[0].mxu0
      %v2371 = vadd.f32 0.0, %v2370
      %v2372 = vpop.f32.mrb[0].mxu0
      %v2373 = vpop.f32.mrb[0].mxu0
      %v2374 = vadd.f32 0.0, %v2373
      %v2375 = vpop.f32.mrb[0].mxu0
      %2376 = vmatprep.mubr.bf16.mxu0 0
      %2377 = vmatmul.mubr.bf16.gmra.mrb[0].mxu0 %v1596
      %v2378 = vpop.f32.mrb[0].mxu0
      %v2379 = vadd.f32 0.0, %v2378
      %v2380 = vpop.f32.mrb[0].mxu0
      %v2381 = vpop.f32.mrb[0].mxu0
      %v2382 = vadd.f32 0.0, %v2381
      %v2383 = vpop.f32.mrb[0].mxu0
      %2384 = vmatprep.mubr.bf16.mxu0 0
      %2385 = vmatmul.mubr.bf16.gmra.mrb[0].mxu0 %v1599
      %v2386 = vpop.f32.mrb[0].mxu0
      %v2387 = vadd.f32 0.0, %v2386
      %v2388 = vpop.f32.mrb[0].mxu0
      %v2389 = vpop.f32.mrb[0].mxu0
      %v2390 = vadd.f32 0.0, %v2389
      %v2391 = vpop.f32.mrb[0].mxu0
      %2392 = vmatprep.mubr.bf16.mxu0 0
      %2393 = vmatmul.mubr.bf16.gmra.mrb[0].mxu0 %v1602
      %v2394 = vpop.f32.mrb[0].mxu0
      %v2395 = vadd.f32 0.0, %v2394
      %v2396 = vpop.f32.mrb[0].mxu0
      %v2397 = vpop.f32.mrb[0].mxu0
      %v2398 = vadd.f32 0.0, %v2397
      %v2399 = vpop.f32.mrb[0].mxu0
      %2400 = vmatprep.mubr.bf16.mxu0 0
      %2401 = vmatmul.mubr.bf16.gmra.mrb[0].mxu0 %v1605
      %v2402 = vpop.f32.mrb[0].mxu0
      %v2403 = vadd.f32 0.0, %v2402
      %v2404 = vpop.f32.mrb[0].mxu0
      %v2405 = vpop.f32.mrb[0].mxu0
      %v2406 = vadd.f32 0.0, %v2405
      %v2407 = vpop.f32.mrb[0].mxu0
      %2408 = vmatprep.mubr.bf16.mxu0 0
      %2409 = vmatmul.mubr.bf16.gmra.mrb[0].mxu0 %v1608
      %v2410 = vpop.f32.mrb[0].mxu0
      %v2411 = vadd.f32 0.0, %v2410
      %v2412 = vpop.f32.mrb[0].mxu0
      %v2413 = vpop.f32.mrb[0].mxu0
      %v2414 = vadd.f32 0.0, %v2413
      %v2415 = vpop.f32.mrb[0].mxu0
      %2416 = vmatprep.mubr.bf16.mxu0 0
      %2417 = vmatmul.mubr.bf16.gmra.mrb[0].mxu0 %v1611
      %v2418 = vpop.f32.mrb[0].mxu0
      %v2419 = vadd.f32 0.0, %v2418
      %v2420 = vpop.f32.mrb[0].mxu0
      %v2421 = vpop.f32.mrb[0].mxu0
      %v2422 = vadd.f32 0.0, %v2421
      %v2423 = vpop.f32.mrb[0].mxu0
      %2424 = vmatprep.mubr.bf16.mxu0 0
      %2425 = vmatmul.mubr.bf16.gmra.mrb[0].mxu0 %v1614
      %v2426 = vpop.f32.mrb[0].mxu0
      %v2427 = vadd.f32 0.0, %v2426
      %v2428 = vpop.f32.mrb[0].mxu0
      %v2429 = vpop.f32.mrb[0].mxu0
      %v2430 = vadd.f32 0.0, %v2429
      %v2431 = vpop.f32.mrb[0].mxu0
      %2432 = vmatprep.mubr.bf16.mxu0 0
      %2433 = vmatmul.mubr.bf16.gmra.mrb[0].mxu0 %v1617
      %v2434 = vpop.f32.mrb[0].mxu0
      %v2435 = vadd.f32 0.0, %v2434
      %v2436 = vpop.f32.mrb[0].mxu0
      %v2437 = vpop.f32.mrb[0].mxu0
      %v2438 = vadd.f32 0.0, %v2437
      %v2439 = vpop.f32.mrb[0].mxu0
      %2440 = vmatprep.mubr.bf16.mxu0 0
      %2441 = vmatmul.mubr.bf16.gmra.mrb[0].mxu0 %v1620
      %v2442 = vpop.f32.mrb[0].mxu0
      %v2443 = vadd.f32 0.0, %v2442
      %v2444 = vpop.f32.mrb[0].mxu0
      %v2445 = vpop.f32.mrb[0].mxu0
      %v2446 = vadd.f32 0.0, %v2445
      %v2447 = vpop.f32.mrb[0].mxu0
      %2448 = vmatprep.mubr.bf16.mxu0 0
      %2449 = vmatmul.mubr.bf16.gmra.mrb[0].mxu0 %v1623
      %v2450 = vpop.f32.mrb[0].mxu0
      %v2451 = vadd.f32 0.0, %v2450
      %v2452 = vpop.f32.mrb[0].mxu0
      %v2453 = vpop.f32.mrb[0].mxu0
      %v2454 = vadd.f32 0.0, %v2453
      %v2455 = vpop.f32.mrb[0].mxu0
      %2456 = vmatprep.mubr.bf16.mxu0 0
      %2457 = vmatmul.mubr.bf16.gmra.mrb[0].mxu0 %v1626
      %v2458 = vpop.f32.mrb[0].mxu0
      %v2459 = vadd.f32 0.0, %v2458
      %v2460 = vpop.f32.mrb[0].mxu0
      %v2461 = vpop.f32.mrb[0].mxu0
      %v2462 = vadd.f32 0.0, %v2461
      %v2463 = vpop.f32.mrb[0].mxu0
      %2464 = vmatprep.mubr.bf16.mxu0 0
      %2465 = vmatmul.mubr.bf16.gmra.mrb[0].mxu0 %v1629
      %v2466 = vpop.f32.mrb[0].mxu0
      %v2467 = vadd.f32 0.0, %v2466
      %v2468 = vpop.f32.mrb[0].mxu0
      %v2469 = vpop.f32.mrb[0].mxu0
      %v2470 = vadd.f32 0.0, %v2469
      %v2471 = vpop.f32.mrb[0].mxu0
      %2472 = vmatprep.mubr.bf16.mxu0 0
      %2473 = vmatmul.mubr.bf16.gmra.mrb[0].mxu0 %v1632
      %v2474 = vpop.f32.mrb[0].mxu0
      %v2475 = vadd.f32 0.0, %v2474
      %v2476 = vpop.f32.mrb[0].mxu0
      %v2477 = vpop.f32.mrb[0].mxu0
      %v2478 = vadd.f32 0.0, %v2477
      %v2479 = vpop.f32.mrb[0].mxu0
      %2480 = vmatprep.mubr.bf16.mxu0 0
      %2481 = vmatmul.mubr.bf16.gmra.mrb[0].mxu0 %v1635
      %v2482 = vpop.f32.mrb[0].mxu0
      %v2483 = vadd.f32 0.0, %v2482
      %v2484 = vpop.f32.mrb[0].mxu0
      %v2485 = vpop.f32.mrb[0].mxu0
      %v2486 = vadd.f32 0.0, %v2485
      %v2487 = vpop.f32.mrb[0].mxu0
      %2488 = vmatprep.mubr.bf16.mxu0 0
      %2489 = vmatmul.mubr.bf16.gmra.mrb[0].mxu0 %v1638
      %v2490 = vpop.f32.mrb[0].mxu0
      %v2491 = vadd.f32 0.0, %v2490
      %v2492 = vpop.f32.mrb[0].mxu0
      %v2493 = vpop.f32.mrb[0].mxu0
      %v2494 = vadd.f32 0.0, %v2493
      %v2495 = vpop.f32.mrb[0].mxu0
      %2496 = vmatprep.mubr.bf16.mxu0 0
      %2497 = vmatmul.mubr.bf16.gmra.mrb[0].mxu0 %v1641
      %v2498 = vpop.f32.mrb[0].mxu0
      %v2499 = vadd.f32 0.0, %v2498
      %v2500 = vpop.f32.mrb[0].mxu0
      %v2501 = vpop.f32.mrb[0].mxu0
      %v2502 = vadd.f32 0.0, %v2501
      %v2503 = vpop.f32.mrb[0].mxu0
      %2504 = vmatprep.mubr.bf16.mxu0 0
      %2505 = vmatmul.mubr.bf16.gmra.mrb[0].mxu0 %v1644
      %v2506 = vpop.f32.mrb[0].mxu0
      %v2507 = vadd.f32 0.0, %v2506
      %v2508 = vpop.f32.mrb[0].mxu0
      %v2509 = vpop.f32.mrb[0].mxu0
      %v2510 = vadd.f32 0.0, %v2509
      %v2511 = vpop.f32.mrb[0].mxu0
      %2512 = vmatprep.mubr.bf16.mxu0 0
      %2513 = vmatmul.mubr.bf16.gmra.mrb[0].mxu0 %v1647
      %v2514 = vpop.f32.mrb[0].mxu0
      %v2515 = vadd.f32 0.0, %v2514
      %v2516 = vpop.f32.mrb[0].mxu0
      %v2517 = vpop.f32.mrb[0].mxu0
      %v2518 = vadd.f32 0.0, %v2517
      %v2519 = vpop.f32.mrb[0].mxu0
      %2520 = vmatprep.mubr.bf16.mxu0 0
      %2521 = vmatmul.mubr.bf16.gmra.mrb[0].mxu0 %v1650
      %v2522 = vpop.f32.mrb[0].mxu0
      %v2523 = vadd.f32 0.0, %v2522
      %v2524 = vpop.f32.mrb[0].mxu0
      %v2525 = vpop.f32.mrb[0].mxu0
      %v2526 = vadd.f32 0.0, %v2525
      %v2527 = vpop.f32.mrb[0].mxu0
      %2528 = vmatprep.mubr.bf16.mxu0 0
      %2529 = vmatmul.mubr.bf16.gmra.mrb[0].mxu0 %v1653
      %v2530 = vpop.f32.mrb[0].mxu0
      %v2531 = vadd.f32 0.0, %v2530
      %v2532 = vpop.f32.mrb[0].mxu0
      %v2533 = vpop.f32.mrb[0].mxu0
      %v2534 = vadd.f32 0.0, %v2533
      %v2535 = vpop.f32.mrb[0].mxu0
      %2536 = vmatprep.mubr.bf16.mxu0 0
      %2537 = vmatmul.mubr.bf16.gmra.mrb[0].mxu0 %v1656
      %v2538 = vpop.f32.mrb[0].mxu0
      %v2539 = vadd.f32 0.0, %v2538
      %v2540 = vpop.f32.mrb[0].mxu0
      %v2541 = vpop.f32.mrb[0].mxu0
      %v2542 = vadd.f32 0.0, %v2541
      %v2543 = vpop.f32.mrb[0].mxu0
      %2544 = vmatprep.mubr.bf16.mxu0 0
      %2545 = vmatmul.mubr.bf16.gmra.mrb[0].mxu0 %v1659
      %v2546 = vpop.f32.mrb[0].mxu0
      %v2547 = vadd.f32 0.0, %v2546
      %v2548 = vpop.f32.mrb[0].mxu0
      %v2549 = vpop.f32.mrb[0].mxu0
      %v2550 = vadd.f32 0.0, %v2549
      %v2551 = vpop.f32.mrb[0].mxu0
      %2552 = vdwg.mxu0
      %v2601 = vrot.slane %v2363, 2
      %v2602 = vrot.slane %v2366, 2
      %v2603 = vsel %vm1414, %v2601, %v2602
      %v2604 = vrot.slane %v2371, 2
      %v2605 = vsel %vm1414, %v2602, %v2604
      %v2606 = vrot.slane %v2374, 2
      %v2607 = vrot.slane %v2379, 2
      %v2608 = vsel %vm1414, %v2606, %v2607
      %v2609 = vrot.slane %v2382, 2
      %v2610 = vsel %vm1414, %v2607, %v2609
      %v2611 = vrot.slane %v2387, 2
      %v2612 = vrot.slane %v2390, 2
      %v2613 = vsel %vm1414, %v2611, %v2612
      %v2614 = vrot.slane %v2395, 2
      %v2615 = vsel %vm1414, %v2612, %v2614
      %v2616 = vrot.slane %v2398, 2
      %v2617 = vrot.slane %v2403, 2
      %v2618 = vsel %vm1414, %v2616, %v2617
      %v2619 = vrot.slane %v2406, 2
      %v2620 = vsel %vm1414, %v2617, %v2619
      %v2621 = vrot.slane %v2411, 2
      %v2622 = vrot.slane %v2414, 2
      %v2623 = vsel %vm1414, %v2621, %v2622
      %v2624 = vrot.slane %v2419, 2
      %v2625 = vsel %vm1414, %v2622, %v2624
      %v2626 = vrot.slane %v2422, 2
      %v2627 = vrot.slane %v2427, 2
      %v2628 = vsel %vm1414, %v2626, %v2627
      %v2629 = vrot.slane %v2430, 2
      %v2630 = vsel %vm1414, %v2627, %v2629
      %v2631 = vrot.slane %v2435, 2
      %v2632 = vrot.slane %v2438, 2
      %v2633 = vsel %vm1414, %v2631, %v2632
      %v2634 = vrot.slane %v2443, 2
      %v2635 = vsel %vm1414, %v2632, %v2634
      %v2636 = vrot.slane %v2446, 2
      %v2637 = vrot.slane %v2451, 2
      %v2638 = vsel %vm1414, %v2636, %v2637
      %v2639 = vrot.slane %v2454, 2
      %v2640 = vsel %vm1414, %v2637, %v2639
      %v2641 = vrot.slane %v2459, 2
      %v2642 = vrot.slane %v2462, 2
      %v2643 = vsel %vm1414, %v2641, %v2642
      %v2644 = vrot.slane %v2467, 2
      %v2645 = vsel %vm1414, %v2642, %v2644
      %v2646 = vrot.slane %v2470, 2
      %v2647 = vrot.slane %v2475, 2
      %v2648 = vsel %vm1414, %v2646, %v2647
      %v2649 = vrot.slane %v2478, 2
      %v2650 = vsel %vm1414, %v2647, %v2649
      %v2651 = vrot.slane %v2483, 2
      %v2652 = vrot.slane %v2486, 2
      %v2653 = vsel %vm1414, %v2651, %v2652
      %v2654 = vrot.slane %v2491, 2
      %v2655 = vsel %vm1414, %v2652, %v2654
      %v2656 = vrot.slane %v2494, 2
      %v2657 = vrot.slane %v2499, 2
      %v2658 = vsel %vm1414, %v2656, %v2657
      %v2659 = vrot.slane %v2502, 2
      %v2660 = vsel %vm1414, %v2657, %v2659
      %v2661 = vrot.slane %v2507, 2
      %v2662 = vrot.slane %v2510, 2
      %v2663 = vsel %vm1414, %v2661, %v2662
      %v2664 = vrot.slane %v2515, 2
      %v2665 = vsel %vm1414, %v2662, %v2664
      %v2666 = vrot.slane %v2518, 2
      %v2667 = vrot.slane %v2523, 2
      %v2668 = vsel %vm1414, %v2666, %v2667
      %v2669 = vrot.slane %v2526, 2
      %v2670 = vsel %vm1414, %v2667, %v2669
      %v2671 = vrot.slane %v2531, 2
      %v2672 = vrot.slane %v2534, 2
      %v2673 = vsel %vm1414, %v2671, %v2672
      %v2674 = vrot.slane %v2539, 2
      %v2675 = vsel %vm1414, %v2672, %v2674
      %v2676 = vrot.slane %v2542, 2
      %v2677 = vrot.slane %v2547, 2
      %v2678 = vsel %vm1414, %v2676, %v2677
      %v2679 = vrot.slane %v2550, 2
      %v2680 = vsel %vm1414, %v2677, %v2679
      %v2713 = vadd.f32 %v2293, %v2603
      %v2714 = vadd.f32 %v2294, %v2605
      %v2715 = vadd.f32 %v2295, %v2608
      %v2716 = vadd.f32 %v2296, %v2610
      %v2717 = vadd.f32 %v2297, %v2613
      %v2718 = vadd.f32 %v2298, %v2615
      %v2719 = vadd.f32 %v2299, %v2618
      %v2720 = vadd.f32 %v2300, %v2620
      %v2721 = vadd.f32 %v2301, %v2623
      %v2722 = vadd.f32 %v2302, %v2625
      %v2723 = vadd.f32 %v2303, %v2628
      %v2724 = vadd.f32 %v2304, %v2630
      %v2725 = vadd.f32 %v2305, %v2633
      %v2726 = vadd.f32 %v2306, %v2635
      %v2727 = vadd.f32 %v2307, %v2638
      %v2728 = vadd.f32 %v2308, %v2640
      %v2729 = vadd.f32 %v2309, %v2643
      %v2730 = vadd.f32 %v2310, %v2645
      %v2731 = vadd.f32 %v2311, %v2648
      %v2732 = vadd.f32 %v2312, %v2650
      %v2733 = vadd.f32 %v2313, %v2653
      %v2734 = vadd.f32 %v2314, %v2655
      %v2735 = vadd.f32 %v2315, %v2658
      %v2736 = vadd.f32 %v2316, %v2660
      %v2737 = vadd.f32 %v2317, %v2663
      %v2738 = vadd.f32 %v2318, %v2665
      %v2739 = vadd.f32 %v2319, %v2668
      %v2740 = vadd.f32 %v2320, %v2670
      %v2741 = vadd.f32 %v2321, %v2673
      %v2742 = vadd.f32 %v2322, %v2675
      %v2743 = vadd.f32 %v2323, %v2678
      %v2744 = vadd.f32 %v2324, %v2680
      %v2748 = vunpack.c.l.b16 %v267
      %v2749 = vunpack.c.l.b16 %v268
      %v2750 = vunpack.c.l.b16 %v269
      %v2751 = vpack.c.b16 %v1563, %v1562
      %v2752 = vpack.c.b16 %v2748, %v1564
      %v2753 = vpack.c.b16 %v2750, %v2749
      %v2755 = vsel %vm399, %v2751, 0
      %v2758 = vsel %vm399, %v2752, 0
      %v2761 = vsel %vm399, %v2753, 0
      %v2764 = vsel %vm472, %v276, 0
      %2766 = vmatprep.subr.bf16.mxu0 0
      %2767 = vmatpush1.bf16.msra.mxu0 %v2764
      %2768 = vmatprep.subr.bf16.mxu0 0
      %2769 = vmatpush1.bf16.msra.mxu0 0
      %2770 = vmatprep.subr.bf16.mxu0 0
      %2771 = vmatpush1.bf16.msra.mxu0 0
      %2772 = vmatprep.subr.bf16.mxu0 0
      %2773 = vmatpush1.bf16.msra.mxu0 0
      %2774 = vmatprep.subr.bf16.mxu0 0
      %2775 = vmatpush1.bf16.msra.mxu0 0
      %2776 = vmatprep.subr.bf16.mxu0 0
      %2777 = vmatpush1.bf16.msra.mxu0 0
      %2778 = vmatprep.subr.bf16.mxu0 0
      %2779 = vmatpush1.bf16.msra.mxu0 0
      %2780 = vmatprep.subr.bf16.mxu0 0
      %2781 = vmatpush1.bf16.msra.mxu0 0
      %2782 = vmatprep.subr.bf16.mxu0 0
      %2783 = vmatpush1.bf16.msra.mxu0 0
      %2784 = vmatprep.subr.bf16.mxu0 0
      %2785 = vmatpush1.bf16.msra.mxu0 0
      %2786 = vmatprep.subr.bf16.mxu0 0
      %2787 = vmatpush1.bf16.msra.mxu0 0
      %2788 = vmatprep.subr.bf16.mxu0 0
      %2789 = vmatpush1.bf16.msra.mxu0 0
      %2790 = vmatprep.subr.bf16.mxu0 0
      %2791 = vmatpush1.bf16.msra.mxu0 0
      %2792 = vmatprep.subr.bf16.mxu0 0
      %2793 = vmatpush1.bf16.msra.mxu0 0
      %2794 = vmatprep.subr.bf16.mxu0 0
      %2795 = vmatpush1.bf16.msra.mxu0 0
      %2796 = vmatprep.subr.bf16.mxu0 0
      %2797 = vmatpush1.bf16.msra.mxu0 0
      %2798 = vmatprep.mubr.bf16.mxu0 0
      %2799 = vmatmul.mubr.bf16.gmra.mrb[0].mxu0 %v410
      %v2800 = vpop.f32.mrb[0].mxu0
      %v2801 = vadd.f32 0.0, %v2800
      %v2802 = vpop.f32.mrb[0].mxu0
      %v2803 = vpop.f32.mrb[0].mxu0
      %v2804 = vadd.f32 0.0, %v2803
      %v2805 = vpop.f32.mrb[0].mxu0
      %2806 = vmatprep.mubr.bf16.mxu0 0
      %2807 = vmatmul.mubr.bf16.gmra.mrb[0].mxu0 %v413
      %v2808 = vpop.f32.mrb[0].mxu0
      %v2809 = vpop.f32.mrb[0].mxu0
      %v2810 = vpop.f32.mrb[0].mxu0
      %v2811 = vadd.f32 0.0, %v2810
      %v2812 = vpop.f32.mrb[0].mxu0
      %2813 = vmatprep.mubr.bf16.mxu0 0
      %2814 = vmatmul.mubr.bf16.gmra.mrb[0].mxu0 %v416
      %v2815 = vpop.f32.mrb[0].mxu0
      %v2816 = vadd.f32 0.0, %v2815
      %v2817 = vpop.f32.mrb[0].mxu0
      %v2818 = vpop.f32.mrb[0].mxu0
      %v2819 = vpop.f32.mrb[0].mxu0
      %2820 = vmatprep.mubr.bf16.mxu0 0
      %2821 = vmatmul.mubr.bf16.gmra.mrb[0].mxu0 %v419
      %v2822 = vpop.f32.mrb[0].mxu0
      %v2823 = vadd.f32 0.0, %v2822
      %v2824 = vpop.f32.mrb[0].mxu0
      %v2825 = vpop.f32.mrb[0].mxu0
      %v2826 = vadd.f32 0.0, %v2825
      %v2827 = vpop.f32.mrb[0].mxu0
      %2828 = vmatprep.mubr.bf16.mxu0 0
      %2829 = vmatmul.mubr.bf16.gmra.mrb[0].mxu0 %v422
      %v2830 = vpop.f32.mrb[0].mxu0
      %v2831 = vpop.f32.mrb[0].mxu0
      %v2832 = vpop.f32.mrb[0].mxu0
      %v2833 = vadd.f32 0.0, %v2832
      %v2834 = vpop.f32.mrb[0].mxu0
      %2835 = vmatprep.mubr.bf16.mxu0 0
      %2836 = vmatmul.mubr.bf16.gmra.mrb[0].mxu0 %v425
      %v2837 = vpop.f32.mrb[0].mxu0
      %v2838 = vadd.f32 0.0, %v2837
      %v2839 = vpop.f32.mrb[0].mxu0
      %v2840 = vpop.f32.mrb[0].mxu0
      %v2841 = vpop.f32.mrb[0].mxu0
      %2842 = vmatprep.mubr.bf16.mxu0 0
      %2843 = vmatmul.mubr.bf16.gmra.mrb[0].mxu0 %v428
      %v2844 = vpop.f32.mrb[0].mxu0
      %v2845 = vadd.f32 0.0, %v2844
      %v2846 = vpop.f32.mrb[0].mxu0
      %v2847 = vpop.f32.mrb[0].mxu0
      %v2848 = vadd.f32 0.0, %v2847
      %v2849 = vpop.f32.mrb[0].mxu0
      %2850 = vmatprep.mubr.bf16.mxu0 0
      %2851 = vmatmul.mubr.bf16.gmra.mrb[0].mxu0 %v431
      %v2852 = vpop.f32.mrb[0].mxu0
      %v2853 = vpop.f32.mrb[0].mxu0
      %v2854 = vpop.f32.mrb[0].mxu0
      %v2855 = vadd.f32 0.0, %v2854
      %v2856 = vpop.f32.mrb[0].mxu0
      %2857 = vmatprep.mubr.bf16.mxu0 0
      %2858 = vmatmul.mubr.bf16.gmra.mrb[0].mxu0 %v434
      %v2859 = vpop.f32.mrb[0].mxu0
      %v2860 = vadd.f32 0.0, %v2859
      %v2861 = vpop.f32.mrb[0].mxu0
      %v2862 = vpop.f32.mrb[0].mxu0
      %v2863 = vpop.f32.mrb[0].mxu0
      %2864 = vmatprep.mubr.bf16.mxu0 0
      %2865 = vmatmul.mubr.bf16.gmra.mrb[0].mxu0 %v437
      %v2866 = vpop.f32.mrb[0].mxu0
      %v2867 = vadd.f32 0.0, %v2866
      %v2868 = vpop.f32.mrb[0].mxu0
      %v2869 = vpop.f32.mrb[0].mxu0
      %v2870 = vadd.f32 0.0, %v2869
      %v2871 = vpop.f32.mrb[0].mxu0
      %2872 = vmatprep.mubr.bf16.mxu0 0
      %2873 = vmatmul.mubr.bf16.gmra.mrb[0].mxu0 %v440
      %v2874 = vpop.f32.mrb[0].mxu0
      %v2875 = vpop.f32.mrb[0].mxu0
      %v2876 = vpop.f32.mrb[0].mxu0
      %v2877 = vadd.f32 0.0, %v2876
      %v2878 = vpop.f32.mrb[0].mxu0
      %2879 = vmatprep.mubr.bf16.mxu0 0
      %2880 = vmatmul.mubr.bf16.gmra.mrb[0].mxu0 %v443
      %v2881 = vpop.f32.mrb[0].mxu0
      %v2882 = vadd.f32 0.0, %v2881
      %v2883 = vpop.f32.mrb[0].mxu0
      %v2884 = vpop.f32.mrb[0].mxu0
      %v2885 = vpop.f32.mrb[0].mxu0
      %2886 = vmatprep.mubr.bf16.mxu0 0
      %2887 = vmatmul.mubr.bf16.gmra.mrb[0].mxu0 %v446
      %v2888 = vpop.f32.mrb[0].mxu0
      %v2889 = vadd.f32 0.0, %v2888
      %v2890 = vpop.f32.mrb[0].mxu0
      %v2891 = vpop.f32.mrb[0].mxu0
      %v2892 = vadd.f32 0.0, %v2891
      %v2893 = vpop.f32.mrb[0].mxu0
      %2894 = vmatprep.mubr.bf16.mxu0 0
      %2895 = vmatmul.mubr.bf16.gmra.mrb[0].mxu0 %v449
      %v2896 = vpop.f32.mrb[0].mxu0
      %v2897 = vpop.f32.mrb[0].mxu0
      %v2898 = vpop.f32.mrb[0].mxu0
      %v2899 = vadd.f32 0.0, %v2898
      %v2900 = vpop.f32.mrb[0].mxu0
      %2901 = vmatprep.mubr.bf16.mxu0 0
      %2902 = vmatmul.mubr.bf16.gmra.mrb[0].mxu0 %v452
      %v2903 = vpop.f32.mrb[0].mxu0
      %v2904 = vadd.f32 0.0, %v2903
      %v2905 = vpop.f32.mrb[0].mxu0
      %v2906 = vpop.f32.mrb[0].mxu0
      %v2907 = vpop.f32.mrb[0].mxu0
      %2908 = vmatprep.mubr.bf16.mxu0 0
      %2909 = vmatmul.mubr.bf16.gmra.mrb[0].mxu0 %v455
      %v2910 = vpop.f32.mrb[0].mxu0
      %v2911 = vadd.f32 0.0, %v2910
      %v2912 = vpop.f32.mrb[0].mxu0
      %v2913 = vpop.f32.mrb[0].mxu0
      %v2914 = vadd.f32 0.0, %v2913
      %v2915 = vpop.f32.mrb[0].mxu0
      %2916 = vmatprep.mubr.bf16.mxu0 0
      %2917 = vmatmul.mubr.bf16.gmra.mrb[0].mxu0 %v458
      %v2918 = vpop.f32.mrb[0].mxu0
      %v2919 = vpop.f32.mrb[0].mxu0
      %v2920 = vpop.f32.mrb[0].mxu0
      %v2921 = vadd.f32 0.0, %v2920
      %v2922 = vpop.f32.mrb[0].mxu0
      %2923 = vmatprep.mubr.bf16.mxu0 0
      %2924 = vmatmul.mubr.bf16.gmra.mrb[0].mxu0 %v461
      %v2925 = vpop.f32.mrb[0].mxu0
      %v2926 = vadd.f32 0.0, %v2925
      %v2927 = vpop.f32.mrb[0].mxu0
      %v2928 = vpop.f32.mrb[0].mxu0
      %v2929 = vpop.f32.mrb[0].mxu0
      %2930 = vmatprep.mubr.bf16.mxu0 0
      %2931 = vmatmul.mubr.bf16.gmra.mrb[0].mxu0 %v464
      %v2932 = vpop.f32.mrb[0].mxu0
      %v2933 = vadd.f32 0.0, %v2932
      %v2934 = vpop.f32.mrb[0].mxu0
      %v2935 = vpop.f32.mrb[0].mxu0
      %v2936 = vadd.f32 0.0, %v2935
      %v2937 = vpop.f32.mrb[0].mxu0
      %2938 = vmatprep.mubr.bf16.mxu0 0
      %2939 = vmatmul.mubr.bf16.gmra.mrb[0].mxu0 %v467
      %v2940 = vpop.f32.mrb[0].mxu0
      %v2941 = vpop.f32.mrb[0].mxu0
      %v2942 = vpop.f32.mrb[0].mxu0
      %v2943 = vadd.f32 0.0, %v2942
      %v2944 = vpop.f32.mrb[0].mxu0
      %2945 = vmatprep.mubr.bf16.mxu0 0
      %2946 = vmatmul.mubr.bf16.gmra.mrb[0].mxu0 %v470
      %v2947 = vpop.f32.mrb[0].mxu0
      %v2948 = vadd.f32 0.0, %v2947
      %v2949 = vpop.f32.mrb[0].mxu0
      %v2950 = vpop.f32.mrb[0].mxu0
      %v2951 = vpop.f32.mrb[0].mxu0
      %2952 = vmatprep.mubr.bf16.mxu0 0
      %2953 = vmatmul.mubr.bf16.gmra.mrb[0].mxu0 %v2755
      %v2954 = vpop.f32.mrb[0].mxu0
      %v2955 = vadd.f32 0.0, %v2954
      %v2956 = vpop.f32.mrb[0].mxu0
      %v2957 = vpop.f32.mrb[0].mxu0
      %v2958 = vadd.f32 0.0, %v2957
      %v2959 = vpop.f32.mrb[0].mxu0
      %2960 = vmatprep.mubr.bf16.mxu0 0
      %2961 = vmatmul.mubr.bf16.gmra.mrb[0].mxu0 %v2758
      %v2962 = vpop.f32.mrb[0].mxu0
      %v2963 = vpop.f32.mrb[0].mxu0
      %v2964 = vpop.f32.mrb[0].mxu0
      %v2965 = vadd.f32 0.0, %v2964
      %v2966 = vpop.f32.mrb[0].mxu0
      %2967 = vmatprep.mubr.bf16.mxu0 0
      %2968 = vmatmul.mubr.bf16.gmra.mrb[0].mxu0 %v2761
      %v2969 = vpop.f32.mrb[0].mxu0
      %v2970 = vadd.f32 0.0, %v2969
      %v2971 = vpop.f32.mrb[0].mxu0
      %v2972 = vpop.f32.mrb[0].mxu0
      %v2973 = vpop.f32.mrb[0].mxu0
      %2974 = vdwg.mxu0
      %v2975 = vadd.f32 %v2713, %v2801
      %v2976 = vadd.f32 %v2714, %v2804
      %v2977 = vadd.f32 %v2715, %v2811
      %v2978 = vadd.f32 %v2716, %v2816
      %v2979 = vadd.f32 %v2717, %v2823
      %v2980 = vadd.f32 %v2718, %v2826
      %v2981 = vadd.f32 %v2719, %v2833
      %v2982 = vadd.f32 %v2720, %v2838
      %v2983 = vadd.f32 %v2721, %v2845
      %v2984 = vadd.f32 %v2722, %v2848
      %v2985 = vadd.f32 %v2723, %v2855
      %v2986 = vadd.f32 %v2724, %v2860
      %v2987 = vadd.f32 %v2725, %v2867
      %v2988 = vadd.f32 %v2726, %v2870
      %v2989 = vadd.f32 %v2727, %v2877
      %v2990 = vadd.f32 %v2728, %v2882
      %v2991 = vadd.f32 %v2729, %v2889
      %v2992 = vadd.f32 %v2730, %v2892
      %v2993 = vadd.f32 %v2731, %v2899
      %v2994 = vadd.f32 %v2732, %v2904
      %v2995 = vadd.f32 %v2733, %v2911
      %v2996 = vadd.f32 %v2734, %v2914
      %v2997 = vadd.f32 %v2735, %v2921
      %v2998 = vadd.f32 %v2736, %v2926
      %v2999 = vadd.f32 %v2737, %v2933
      %v3000 = vadd.f32 %v2738, %v2936
      %v3001 = vadd.f32 %v2739, %v2943
      %v3002 = vadd.f32 %v2740, %v2948
      %v3003 = vadd.f32 %v2741, %v2955
      %v3004 = vadd.f32 %v2742, %v2958
      %v3005 = vadd.f32 %v2743, %v2965
      %v3006 = vadd.f32 %v2744, %v2970
      %v3008 = vsel %vm472, %v277, 0
      %3010 = vmatprep.subr.bf16.mxu0 0
      %3011 = vmatpush1.bf16.msra.mxu0 %v3008
      %3012 = vmatprep.subr.bf16.mxu0 0
      %3013 = vmatpush1.bf16.msra.mxu0 0
      %3014 = vmatprep.subr.bf16.mxu0 0
      %3015 = vmatpush1.bf16.msra.mxu0 0
      %3016 = vmatprep.subr.bf16.mxu0 0
      %3017 = vmatpush1.bf16.msra.mxu0 0
      %3018 = vmatprep.subr.bf16.mxu0 0
      %3019 = vmatpush1.bf16.msra.mxu0 0
      %3020 = vmatprep.subr.bf16.mxu0 0
      %3021 = vmatpush1.bf16.msra.mxu0 0
      %3022 = vmatprep.subr.bf16.mxu0 0
      %3023 = vmatpush1.bf16.msra.mxu0 0
      %3024 = vmatprep.subr.bf16.mxu0 0
      %3025 = vmatpush1.bf16.msra.mxu0 0
      %3026 = vmatprep.subr.bf16.mxu0 0
      %3027 = vmatpush1.bf16.msra.mxu0 0
      %3028 = vmatprep.subr.bf16.mxu0 0
      %3029 = vmatpush1.bf16.msra.mxu0 0
      %3030 = vmatprep.subr.bf16.mxu0 0
      %3031 = vmatpush1.bf16.msra.mxu0 0
      %3032 = vmatprep.subr.bf16.mxu0 0
      %3033 = vmatpush1.bf16.msra.mxu0 0
      %3034 = vmatprep.subr.bf16.mxu0 0
      %3035 = vmatpush1.bf16.msra.mxu0 0
      %3036 = vmatprep.subr.bf16.mxu0 0
      %3037 = vmatpush1.bf16.msra.mxu0 0
      %3038 = vmatprep.subr.bf16.mxu0 0
      %3039 = vmatpush1.bf16.msra.mxu0 0
      %3040 = vmatprep.subr.bf16.mxu0 0
      %3041 = vmatpush1.bf16.msra.mxu0 0
      %3042 = vmatprep.mubr.bf16.mxu0 0
      %3043 = vmatmul.mubr.bf16.gmra.mrb[0].mxu0 %v410
      %v3044 = vpop.f32.mrb[0].mxu0
      %v3045 = vadd.f32 0.0, %v3044
      %v3046 = vpop.f32.mrb[0].mxu0
      %v3047 = vpop.f32.mrb[0].mxu0
      %v3048 = vadd.f32 0.0, %v3047
      %v3049 = vpop.f32.mrb[0].mxu0
      %3050 = vmatprep.mubr.bf16.mxu0 0
      %3051 = vmatmul.mubr.bf16.gmra.mrb[0].mxu0 %v413
      %v3052 = vpop.f32.mrb[0].mxu0
      %v3053 = vadd.f32 0.0, %v3052
      %v3054 = vpop.f32.mrb[0].mxu0
      %v3055 = vpop.f32.mrb[0].mxu0
      %v3056 = vadd.f32 0.0, %v3055
      %v3057 = vpop.f32.mrb[0].mxu0
      %3058 = vmatprep.mubr.bf16.mxu0 0
      %3059 = vmatmul.mubr.bf16.gmra.mrb[0].mxu0 %v416
      %v3060 = vpop.f32.mrb[0].mxu0
      %v3061 = vadd.f32 0.0, %v3060
      %v3062 = vpop.f32.mrb[0].mxu0
      %v3063 = vpop.f32.mrb[0].mxu0
      %v3064 = vadd.f32 0.0, %v3063
      %v3065 = vpop.f32.mrb[0].mxu0
      %3066 = vmatprep.mubr.bf16.mxu0 0
      %3067 = vmatmul.mubr.bf16.gmra.mrb[0].mxu0 %v419
      %v3068 = vpop.f32.mrb[0].mxu0
      %v3069 = vadd.f32 0.0, %v3068
      %v3070 = vpop.f32.mrb[0].mxu0
      %v3071 = vpop.f32.mrb[0].mxu0
      %v3072 = vadd.f32 0.0, %v3071
      %v3073 = vpop.f32.mrb[0].mxu0
      %3074 = vmatprep.mubr.bf16.mxu0 0
      %3075 = vmatmul.mubr.bf16.gmra.mrb[0].mxu0 %v422
      %v3076 = vpop.f32.mrb[0].mxu0
      %v3077 = vadd.f32 0.0, %v3076
      %v3078 = vpop.f32.mrb[0].mxu0
      %v3079 = vpop.f32.mrb[0].mxu0
      %v3080 = vadd.f32 0.0, %v3079
      %v3081 = vpop.f32.mrb[0].mxu0
      %3082 = vmatprep.mubr.bf16.mxu0 0
      %3083 = vmatmul.mubr.bf16.gmra.mrb[0].mxu0 %v425
      %v3084 = vpop.f32.mrb[0].mxu0
      %v3085 = vadd.f32 0.0, %v3084
      %v3086 = vpop.f32.mrb[0].mxu0
      %v3087 = vpop.f32.mrb[0].mxu0
      %v3088 = vadd.f32 0.0, %v3087
      %v3089 = vpop.f32.mrb[0].mxu0
      %3090 = vmatprep.mubr.bf16.mxu0 0
      %3091 = vmatmul.mubr.bf16.gmra.mrb[0].mxu0 %v428
      %v3092 = vpop.f32.mrb[0].mxu0
      %v3093 = vadd.f32 0.0, %v3092
      %v3094 = vpop.f32.mrb[0].mxu0
      %v3095 = vpop.f32.mrb[0].mxu0
      %v3096 = vadd.f32 0.0, %v3095
      %v3097 = vpop.f32.mrb[0].mxu0
      %3098 = vmatprep.mubr.bf16.mxu0 0
      %3099 = vmatmul.mubr.bf16.gmra.mrb[0].mxu0 %v431
      %v3100 = vpop.f32.mrb[0].mxu0
      %v3101 = vadd.f32 0.0, %v3100
      %v3102 = vpop.f32.mrb[0].mxu0
      %v3103 = vpop.f32.mrb[0].mxu0
      %v3104 = vadd.f32 0.0, %v3103
      %v3105 = vpop.f32.mrb[0].mxu0
      %3106 = vmatprep.mubr.bf16.mxu0 0
      %3107 = vmatmul.mubr.bf16.gmra.mrb[0].mxu0 %v434
      %v3108 = vpop.f32.mrb[0].mxu0
      %v3109 = vadd.f32 0.0, %v3108
      %v3110 = vpop.f32.mrb[0].mxu0
      %v3111 = vpop.f32.mrb[0].mxu0
      %v3112 = vadd.f32 0.0, %v3111
      %v3113 = vpop.f32.mrb[0].mxu0
      %3114 = vmatprep.mubr.bf16.mxu0 0
      %3115 = vmatmul.mubr.bf16.gmra.mrb[0].mxu0 %v437
      %v3116 = vpop.f32.mrb[0].mxu0
      %v3117 = vadd.f32 0.0, %v3116
      %v3118 = vpop.f32.mrb[0].mxu0
      %v3119 = vpop.f32.mrb[0].mxu0
      %v3120 = vadd.f32 0.0, %v3119
      %v3121 = vpop.f32.mrb[0].mxu0
      %3122 = vmatprep.mubr.bf16.mxu0 0
      %3123 = vmatmul.mubr.bf16.gmra.mrb[0].mxu0 %v440
      %v3124 = vpop.f32.mrb[0].mxu0
      %v3125 = vadd.f32 0.0, %v3124
      %v3126 = vpop.f32.mrb[0].mxu0
      %v3127 = vpop.f32.mrb[0].mxu0
      %v3128 = vadd.f32 0.0, %v3127
      %v3129 = vpop.f32.mrb[0].mxu0
      %3130 = vmatprep.mubr.bf16.mxu0 0
      %3131 = vmatmul.mubr.bf16.gmra.mrb[0].mxu0 %v443
      %v3132 = vpop.f32.mrb[0].mxu0
      %v3133 = vadd.f32 0.0, %v3132
      %v3134 = vpop.f32.mrb[0].mxu0
      %v3135 = vpop.f32.mrb[0].mxu0
      %v3136 = vadd.f32 0.0, %v3135
      %v3137 = vpop.f32.mrb[0].mxu0
      %3138 = vmatprep.mubr.bf16.mxu0 0
      %3139 = vmatmul.mubr.bf16.gmra.mrb[0].mxu0 %v446
      %v3140 = vpop.f32.mrb[0].mxu0
      %v3141 = vadd.f32 0.0, %v3140
      %v3142 = vpop.f32.mrb[0].mxu0
      %v3143 = vpop.f32.mrb[0].mxu0
      %v3144 = vadd.f32 0.0, %v3143
      %v3145 = vpop.f32.mrb[0].mxu0
      %3146 = vmatprep.mubr.bf16.mxu0 0
      %3147 = vmatmul.mubr.bf16.gmra.mrb[0].mxu0 %v449
      %v3148 = vpop.f32.mrb[0].mxu0
      %v3149 = vadd.f32 0.0, %v3148
      %v3150 = vpop.f32.mrb[0].mxu0
      %v3151 = vpop.f32.mrb[0].mxu0
      %v3152 = vadd.f32 0.0, %v3151
      %v3153 = vpop.f32.mrb[0].mxu0
      %3154 = vmatprep.mubr.bf16.mxu0 0
      %3155 = vmatmul.mubr.bf16.gmra.mrb[0].mxu0 %v452
      %v3156 = vpop.f32.mrb[0].mxu0
      %v3157 = vadd.f32 0.0, %v3156
      %v3158 = vpop.f32.mrb[0].mxu0
      %v3159 = vpop.f32.mrb[0].mxu0
      %v3160 = vadd.f32 0.0, %v3159
      %v3161 = vpop.f32.mrb[0].mxu0
      %3162 = vmatprep.mubr.bf16.mxu0 0
      %3163 = vmatmul.mubr.bf16.gmra.mrb[0].mxu0 %v455
      %v3164 = vpop.f32.mrb[0].mxu0
      %v3165 = vadd.f32 0.0, %v3164
      %v3166 = vpop.f32.mrb[0].mxu0
      %v3167 = vpop.f32.mrb[0].mxu0
      %v3168 = vadd.f32 0.0, %v3167
      %v3169 = vpop.f32.mrb[0].mxu0
      %3170 = vmatprep.mubr.bf16.mxu0 0
      %3171 = vmatmul.mubr.bf16.gmra.mrb[0].mxu0 %v458
      %v3172 = vpop.f32.mrb[0].mxu0
      %v3173 = vadd.f32 0.0, %v3172
      %v3174 = vpop.f32.mrb[0].mxu0
      %v3175 = vpop.f32.mrb[0].mxu0
      %v3176 = vadd.f32 0.0, %v3175
      %v3177 = vpop.f32.mrb[0].mxu0
      %3178 = vmatprep.mubr.bf16.mxu0 0
      %3179 = vmatmul.mubr.bf16.gmra.mrb[0].mxu0 %v461
      %v3180 = vpop.f32.mrb[0].mxu0
      %v3181 = vadd.f32 0.0, %v3180
      %v3182 = vpop.f32.mrb[0].mxu0
      %v3183 = vpop.f32.mrb[0].mxu0
      %v3184 = vadd.f32 0.0, %v3183
      %v3185 = vpop.f32.mrb[0].mxu0
      %3186 = vmatprep.mubr.bf16.mxu0 0
      %3187 = vmatmul.mubr.bf16.gmra.mrb[0].mxu0 %v464
      %v3188 = vpop.f32.mrb[0].mxu0
      %v3189 = vadd.f32 0.0, %v3188
      %v3190 = vpop.f32.mrb[0].mxu0
      %v3191 = vpop.f32.mrb[0].mxu0
      %v3192 = vadd.f32 0.0, %v3191
      %v3193 = vpop.f32.mrb[0].mxu0
      %3194 = vmatprep.mubr.bf16.mxu0 0
      %3195 = vmatmul.mubr.bf16.gmra.mrb[0].mxu0 %v467
      %v3196 = vpop.f32.mrb[0].mxu0
      %v3197 = vadd.f32 0.0, %v3196
      %v3198 = vpop.f32.mrb[0].mxu0
      %v3199 = vpop.f32.mrb[0].mxu0
      %v3200 = vadd.f32 0.0, %v3199
      %v3201 = vpop.f32.mrb[0].mxu0
      %3202 = vmatprep.mubr.bf16.mxu0 0
      %3203 = vmatmul.mubr.bf16.gmra.mrb[0].mxu0 %v470
      %v3204 = vpop.f32.mrb[0].mxu0
      %v3205 = vadd.f32 0.0, %v3204
      %v3206 = vpop.f32.mrb[0].mxu0
      %v3207 = vpop.f32.mrb[0].mxu0
      %v3208 = vadd.f32 0.0, %v3207
      %v3209 = vpop.f32.mrb[0].mxu0
      %3210 = vmatprep.mubr.bf16.mxu0 0
      %3211 = vmatmul.mubr.bf16.gmra.mrb[0].mxu0 %v2755
      %v3212 = vpop.f32.mrb[0].mxu0
      %v3213 = vadd.f32 0.0, %v3212
      %v3214 = vpop.f32.mrb[0].mxu0
      %v3215 = vpop.f32.mrb[0].mxu0
      %v3216 = vadd.f32 0.0, %v3215
      %v3217 = vpop.f32.mrb[0].mxu0
      %3218 = vmatprep.mubr.bf16.mxu0 0
      %3219 = vmatmul.mubr.bf16.gmra.mrb[0].mxu0 %v2758
      %v3220 = vpop.f32.mrb[0].mxu0
      %v3221 = vadd.f32 0.0, %v3220
      %v3222 = vpop.f32.mrb[0].mxu0
      %v3223 = vpop.f32.mrb[0].mxu0
      %v3224 = vadd.f32 0.0, %v3223
      %v3225 = vpop.f32.mrb[0].mxu0
      %3226 = vmatprep.mubr.bf16.mxu0 0
      %3227 = vmatmul.mubr.bf16.gmra.mrb[0].mxu0 %v2761
      %v3228 = vpop.f32.mrb[0].mxu0
      %v3229 = vadd.f32 0.0, %v3228
      %v3230 = vpop.f32.mrb[0].mxu0
      %v3231 = vpop.f32.mrb[0].mxu0
      %v3232 = vadd.f32 0.0, %v3231
      %v3233 = vpop.f32.mrb[0].mxu0
      %3234 = vdwg.mxu0
      %v3283 = vrot.slane %v3045, 1
      %v3284 = vrot.slane %v3048, 1
      %v3285 = vsel %vm993, %v3283, %v3284
      %v3286 = vrot.slane %v3053, 1
      %v3287 = vsel %vm993, %v3284, %v3286
      %v3288 = vrot.slane %v3056, 1
      %v3289 = vrot.slane %v3061, 1
      %v3290 = vsel %vm993, %v3288, %v3289
      %v3291 = vrot.slane %v3064, 1
      %v3292 = vsel %vm993, %v3289, %v3291
      %v3293 = vrot.slane %v3069, 1
      %v3294 = vrot.slane %v3072, 1
      %v3295 = vsel %vm993, %v3293, %v3294
      %v3296 = vrot.slane %v3077, 1
      %v3297 = vsel %vm993, %v3294, %v3296
      %v3298 = vrot.slane %v3080, 1
      %v3299 = vrot.slane %v3085, 1
      %v3300 = vsel %vm993, %v3298, %v3299
      %v3301 = vrot.slane %v3088, 1
      %v3302 = vsel %vm993, %v3299, %v3301
      %v3303 = vrot.slane %v3093, 1
      %v3304 = vrot.slane %v3096, 1
      %v3305 = vsel %vm993, %v3303, %v3304
      %v3306 = vrot.slane %v3101, 1
      %v3307 = vsel %vm993, %v3304, %v3306
      %v3308 = vrot.slane %v3104, 1
      %v3309 = vrot.slane %v3109, 1
      %v3310 = vsel %vm993, %v3308, %v3309
      %v3311 = vrot.slane %v3112, 1
      %v3312 = vsel %vm993, %v3309, %v3311
      %v3313 = vrot.slane %v3117, 1
      %v3314 = vrot.slane %v3120, 1
      %v3315 = vsel %vm993, %v3313, %v3314
      %v3316 = vrot.slane %v3125, 1
      %v3317 = vsel %vm993, %v3314, %v3316
      %v3318 = vrot.slane %v3128, 1
      %v3319 = vrot.slane %v3133, 1
      %v3320 = vsel %vm993, %v3318, %v3319
      %v3321 = vrot.slane %v3136, 1
      %v3322 = vsel %vm993, %v3319, %v3321
      %v3323 = vrot.slane %v3141, 1
      %v3324 = vrot.slane %v3144, 1
      %v3325 = vsel %vm993, %v3323, %v3324
      %v3326 = vrot.slane %v3149, 1
      %v3327 = vsel %vm993, %v3324, %v3326
      %v3328 = vrot.slane %v3152, 1
      %v3329 = vrot.slane %v3157, 1
      %v3330 = vsel %vm993, %v3328, %v3329
      %v3331 = vrot.slane %v3160, 1
      %v3332 = vsel %vm993, %v3329, %v3331
      %v3333 = vrot.slane %v3165, 1
      %v3334 = vrot.slane %v3168, 1
      %v3335 = vsel %vm993, %v3333, %v3334
      %v3336 = vrot.slane %v3173, 1
      %v3337 = vsel %vm993, %v3334, %v3336
      %v3338 = vrot.slane %v3176, 1
      %v3339 = vrot.slane %v3181, 1
      %v3340 = vsel %vm993, %v3338, %v3339
      %v3341 = vrot.slane %v3184, 1
      %v3342 = vsel %vm993, %v3339, %v3341
      %v3343 = vrot.slane %v3189, 1
      %v3344 = vrot.slane %v3192, 1
      %v3345 = vsel %vm993, %v3343, %v3344
      %v3346 = vrot.slane %v3197, 1
      %v3347 = vsel %vm993, %v3344, %v3346
      %v3348 = vrot.slane %v3200, 1
      %v3349 = vrot.slane %v3205, 1
      %v3350 = vsel %vm993, %v3348, %v3349
      %v3351 = vrot.slane %v3208, 1
      %v3352 = vsel %vm993, %v3349, %v3351
      %v3353 = vrot.slane %v3213, 1
      %v3354 = vrot.slane %v3216, 1
      %v3355 = vsel %vm993, %v3353, %v3354
      %v3356 = vrot.slane %v3221, 1
      %v3357 = vsel %vm993, %v3354, %v3356
      %v3358 = vrot.slane %v3224, 1
      %v3359 = vrot.slane %v3229, 1
      %v3360 = vsel %vm993, %v3358, %v3359
      %v3361 = vrot.slane %v3232, 1
      %v3362 = vsel %vm993, %v3359, %v3361
      %v3395 = vadd.f32 %v2975, %v3285
      %v3396 = vadd.f32 %v2976, %v3287
      %v3397 = vadd.f32 %v2977, %v3290
      %v3398 = vadd.f32 %v2978, %v3292
      %v3399 = vadd.f32 %v2979, %v3295
      %v3400 = vadd.f32 %v2980, %v3297
      %v3401 = vadd.f32 %v2981, %v3300
      %v3402 = vadd.f32 %v2982, %v3302
      %v3403 = vadd.f32 %v2983, %v3305
      %v3404 = vadd.f32 %v2984, %v3307
      %v3405 = vadd.f32 %v2985, %v3310
      %v3406 = vadd.f32 %v2986, %v3312
      %v3407 = vadd.f32 %v2987, %v3315
      %v3408 = vadd.f32 %v2988, %v3317
      %v3409 = vadd.f32 %v2989, %v3320
      %v3410 = vadd.f32 %v2990, %v3322
      %v3411 = vadd.f32 %v2991, %v3325
      %v3412 = vadd.f32 %v2992, %v3327
      %v3413 = vadd.f32 %v2993, %v3330
      %v3414 = vadd.f32 %v2994, %v3332
      %v3415 = vadd.f32 %v2995, %v3335
      %v3416 = vadd.f32 %v2996, %v3337
      %v3417 = vadd.f32 %v2997, %v3340
      %v3418 = vadd.f32 %v2998, %v3342
      %v3419 = vadd.f32 %v2999, %v3345
      %v3420 = vadd.f32 %v3000, %v3347
      %v3421 = vadd.f32 %v3001, %v3350
      %v3422 = vadd.f32 %v3002, %v3352
      %v3423 = vadd.f32 %v3003, %v3355
      %v3424 = vadd.f32 %v3004, %v3357
      %v3425 = vadd.f32 %v3005, %v3360
      %v3426 = vadd.f32 %v3006, %v3362
      %v3428 = vsel %vm472, %v278, 0
      %3430 = vmatprep.subr.bf16.mxu0 0
      %3431 = vmatpush1.bf16.msra.mxu0 %v3428
      %3432 = vmatprep.subr.bf16.mxu0 0
      %3433 = vmatpush1.bf16.msra.mxu0 0
      %3434 = vmatprep.subr.bf16.mxu0 0
      %3435 = vmatpush1.bf16.msra.mxu0 0
      %3436 = vmatprep.subr.bf16.mxu0 0
      %3437 = vmatpush1.bf16.msra.mxu0 0
      %3438 = vmatprep.subr.bf16.mxu0 0
      %3439 = vmatpush1.bf16.msra.mxu0 0
      %3440 = vmatprep.subr.bf16.mxu0 0
      %3441 = vmatpush1.bf16.msra.mxu0 0
      %3442 = vmatprep.subr.bf16.mxu0 0
      %3443 = vmatpush1.bf16.msra.mxu0 0
      %3444 = vmatprep.subr.bf16.mxu0 0
      %3445 = vmatpush1.bf16.msra.mxu0 0
      %3446 = vmatprep.subr.bf16.mxu0 0
      %3447 = vmatpush1.bf16.msra.mxu0 0
      %3448 = vmatprep.subr.bf16.mxu0 0
      %3449 = vmatpush1.bf16.msra.mxu0 0
      %3450 = vmatprep.subr.bf16.mxu0 0
      %3451 = vmatpush1.bf16.msra.mxu0 0
      %3452 = vmatprep.subr.bf16.mxu0 0
      %3453 = vmatpush1.bf16.msra.mxu0 0
      %3454 = vmatprep.subr.bf16.mxu0 0
      %3455 = vmatpush1.bf16.msra.mxu0 0
      %3456 = vmatprep.subr.bf16.mxu0 0
      %3457 = vmatpush1.bf16.msra.mxu0 0
      %3458 = vmatprep.subr.bf16.mxu0 0
      %3459 = vmatpush1.bf16.msra.mxu0 0
      %3460 = vmatprep.subr.bf16.mxu0 0
      %3461 = vmatpush1.bf16.msra.mxu0 0
      %3462 = vmatprep.mubr.bf16.mxu0 0
      %3463 = vmatmul.mubr.bf16.gmra.mrb[0].mxu0 %v410
      %v3464 = vpop.f32.mrb[0].mxu0
      %v3465 = vadd.f32 0.0, %v3464
      %v3466 = vpop.f32.mrb[0].mxu0
      %v3467 = vpop.f32.mrb[0].mxu0
      %v3468 = vadd.f32 0.0, %v3467
      %v3469 = vpop.f32.mrb[0].mxu0
      %3470 = vmatprep.mubr.bf16.mxu0 0
      %3471 = vmatmul.mubr.bf16.gmra.mrb[0].mxu0 %v413
      %v3472 = vpop.f32.mrb[0].mxu0
      %v3473 = vadd.f32 0.0, %v3472
      %v3474 = vpop.f32.mrb[0].mxu0
      %v3475 = vpop.f32.mrb[0].mxu0
      %v3476 = vadd.f32 0.0, %v3475
      %v3477 = vpop.f32.mrb[0].mxu0
      %3478 = vmatprep.mubr.bf16.mxu0 0
      %3479 = vmatmul.mubr.bf16.gmra.mrb[0].mxu0 %v416
      %v3480 = vpop.f32.mrb[0].mxu0
      %v3481 = vadd.f32 0.0, %v3480
      %v3482 = vpop.f32.mrb[0].mxu0
      %v3483 = vpop.f32.mrb[0].mxu0
      %v3484 = vadd.f32 0.0, %v3483
      %v3485 = vpop.f32.mrb[0].mxu0
      %3486 = vmatprep.mubr.bf16.mxu0 0
      %3487 = vmatmul.mubr.bf16.gmra.mrb[0].mxu0 %v419
      %v3488 = vpop.f32.mrb[0].mxu0
      %v3489 = vadd.f32 0.0, %v3488
      %v3490 = vpop.f32.mrb[0].mxu0
      %v3491 = vpop.f32.mrb[0].mxu0
      %v3492 = vadd.f32 0.0, %v3491
      %v3493 = vpop.f32.mrb[0].mxu0
      %3494 = vmatprep.mubr.bf16.mxu0 0
      %3495 = vmatmul.mubr.bf16.gmra.mrb[0].mxu0 %v422
      %v3496 = vpop.f32.mrb[0].mxu0
      %v3497 = vadd.f32 0.0, %v3496
      %v3498 = vpop.f32.mrb[0].mxu0
      %v3499 = vpop.f32.mrb[0].mxu0
      %v3500 = vadd.f32 0.0, %v3499
      %v3501 = vpop.f32.mrb[0].mxu0
      %3502 = vmatprep.mubr.bf16.mxu0 0
      %3503 = vmatmul.mubr.bf16.gmra.mrb[0].mxu0 %v425
      %v3504 = vpop.f32.mrb[0].mxu0
      %v3505 = vadd.f32 0.0, %v3504
      %v3506 = vpop.f32.mrb[0].mxu0
      %v3507 = vpop.f32.mrb[0].mxu0
      %v3508 = vadd.f32 0.0, %v3507
      %v3509 = vpop.f32.mrb[0].mxu0
      %3510 = vmatprep.mubr.bf16.mxu0 0
      %3511 = vmatmul.mubr.bf16.gmra.mrb[0].mxu0 %v428
      %v3512 = vpop.f32.mrb[0].mxu0
      %v3513 = vadd.f32 0.0, %v3512
      %v3514 = vpop.f32.mrb[0].mxu0
      %v3515 = vpop.f32.mrb[0].mxu0
      %v3516 = vadd.f32 0.0, %v3515
      %v3517 = vpop.f32.mrb[0].mxu0
      %3518 = vmatprep.mubr.bf16.mxu0 0
      %3519 = vmatmul.mubr.bf16.gmra.mrb[0].mxu0 %v431
      %v3520 = vpop.f32.mrb[0].mxu0
      %v3521 = vadd.f32 0.0, %v3520
      %v3522 = vpop.f32.mrb[0].mxu0
      %v3523 = vpop.f32.mrb[0].mxu0
      %v3524 = vadd.f32 0.0, %v3523
      %v3525 = vpop.f32.mrb[0].mxu0
      %3526 = vmatprep.mubr.bf16.mxu0 0
      %3527 = vmatmul.mubr.bf16.gmra.mrb[0].mxu0 %v434
      %v3528 = vpop.f32.mrb[0].mxu0
      %v3529 = vadd.f32 0.0, %v3528
      %v3530 = vpop.f32.mrb[0].mxu0
      %v3531 = vpop.f32.mrb[0].mxu0
      %v3532 = vadd.f32 0.0, %v3531
      %v3533 = vpop.f32.mrb[0].mxu0
      %3534 = vmatprep.mubr.bf16.mxu0 0
      %3535 = vmatmul.mubr.bf16.gmra.mrb[0].mxu0 %v437
      %v3536 = vpop.f32.mrb[0].mxu0
      %v3537 = vadd.f32 0.0, %v3536
      %v3538 = vpop.f32.mrb[0].mxu0
      %v3539 = vpop.f32.mrb[0].mxu0
      %v3540 = vadd.f32 0.0, %v3539
      %v3541 = vpop.f32.mrb[0].mxu0
      %3542 = vmatprep.mubr.bf16.mxu0 0
      %3543 = vmatmul.mubr.bf16.gmra.mrb[0].mxu0 %v440
      %v3544 = vpop.f32.mrb[0].mxu0
      %v3545 = vadd.f32 0.0, %v3544
      %v3546 = vpop.f32.mrb[0].mxu0
      %v3547 = vpop.f32.mrb[0].mxu0
      %v3548 = vadd.f32 0.0, %v3547
      %v3549 = vpop.f32.mrb[0].mxu0
      %3550 = vmatprep.mubr.bf16.mxu0 0
      %3551 = vmatmul.mubr.bf16.gmra.mrb[0].mxu0 %v443
      %v3552 = vpop.f32.mrb[0].mxu0
      %v3553 = vadd.f32 0.0, %v3552
      %v3554 = vpop.f32.mrb[0].mxu0
      %v3555 = vpop.f32.mrb[0].mxu0
      %v3556 = vadd.f32 0.0, %v3555
      %v3557 = vpop.f32.mrb[0].mxu0
      %3558 = vmatprep.mubr.bf16.mxu0 0
      %3559 = vmatmul.mubr.bf16.gmra.mrb[0].mxu0 %v446
      %v3560 = vpop.f32.mrb[0].mxu0
      %v3561 = vadd.f32 0.0, %v3560
      %v3562 = vpop.f32.mrb[0].mxu0
      %v3563 = vpop.f32.mrb[0].mxu0
      %v3564 = vadd.f32 0.0, %v3563
      %v3565 = vpop.f32.mrb[0].mxu0
      %3566 = vmatprep.mubr.bf16.mxu0 0
      %3567 = vmatmul.mubr.bf16.gmra.mrb[0].mxu0 %v449
      %v3568 = vpop.f32.mrb[0].mxu0
      %v3569 = vadd.f32 0.0, %v3568
      %v3570 = vpop.f32.mrb[0].mxu0
      %v3571 = vpop.f32.mrb[0].mxu0
      %v3572 = vadd.f32 0.0, %v3571
      %v3573 = vpop.f32.mrb[0].mxu0
      %3574 = vmatprep.mubr.bf16.mxu0 0
      %3575 = vmatmul.mubr.bf16.gmra.mrb[0].mxu0 %v452
      %v3576 = vpop.f32.mrb[0].mxu0
      %v3577 = vadd.f32 0.0, %v3576
      %v3578 = vpop.f32.mrb[0].mxu0
      %v3579 = vpop.f32.mrb[0].mxu0
      %v3580 = vadd.f32 0.0, %v3579
      %v3581 = vpop.f32.mrb[0].mxu0
      %3582 = vmatprep.mubr.bf16.mxu0 0
      %3583 = vmatmul.mubr.bf16.gmra.mrb[0].mxu0 %v455
      %v3584 = vpop.f32.mrb[0].mxu0
      %v3585 = vadd.f32 0.0, %v3584
      %v3586 = vpop.f32.mrb[0].mxu0
      %v3587 = vpop.f32.mrb[0].mxu0
      %v3588 = vadd.f32 0.0, %v3587
      %v3589 = vpop.f32.mrb[0].mxu0
      %3590 = vmatprep.mubr.bf16.mxu0 0
      %3591 = vmatmul.mubr.bf16.gmra.mrb[0].mxu0 %v458
      %v3592 = vpop.f32.mrb[0].mxu0
      %v3593 = vadd.f32 0.0, %v3592
      %v3594 = vpop.f32.mrb[0].mxu0
      %v3595 = vpop.f32.mrb[0].mxu0
      %v3596 = vadd.f32 0.0, %v3595
      %v3597 = vpop.f32.mrb[0].mxu0
      %3598 = vmatprep.mubr.bf16.mxu0 0
      %3599 = vmatmul.mubr.bf16.gmra.mrb[0].mxu0 %v461
      %v3600 = vpop.f32.mrb[0].mxu0
      %v3601 = vadd.f32 0.0, %v3600
      %v3602 = vpop.f32.mrb[0].mxu0
      %v3603 = vpop.f32.mrb[0].mxu0
      %v3604 = vadd.f32 0.0, %v3603
      %v3605 = vpop.f32.mrb[0].mxu0
      %3606 = vmatprep.mubr.bf16.mxu0 0
      %3607 = vmatmul.mubr.bf16.gmra.mrb[0].mxu0 %v464
      %v3608 = vpop.f32.mrb[0].mxu0
      %v3609 = vadd.f32 0.0, %v3608
      %v3610 = vpop.f32.mrb[0].mxu0
      %v3611 = vpop.f32.mrb[0].mxu0
      %v3612 = vadd.f32 0.0, %v3611
      %v3613 = vpop.f32.mrb[0].mxu0
      %3614 = vmatprep.mubr.bf16.mxu0 0
      %3615 = vmatmul.mubr.bf16.gmra.mrb[0].mxu0 %v467
      %v3616 = vpop.f32.mrb[0].mxu0
      %v3617 = vadd.f32 0.0, %v3616
      %v3618 = vpop.f32.mrb[0].mxu0
      %v3619 = vpop.f32.mrb[0].mxu0
      %v3620 = vadd.f32 0.0, %v3619
      %v3621 = vpop.f32.mrb[0].mxu0
      %3622 = vmatprep.mubr.bf16.mxu0 0
      %3623 = vmatmul.mubr.bf16.gmra.mrb[0].mxu0 %v470
      %v3624 = vpop.f32.mrb[0].mxu0
      %v3625 = vadd.f32 0.0, %v3624
      %v3626 = vpop.f32.mrb[0].mxu0
      %v3627 = vpop.f32.mrb[0].mxu0
      %v3628 = vadd.f32 0.0, %v3627
      %v3629 = vpop.f32.mrb[0].mxu0
      %3630 = vmatprep.mubr.bf16.mxu0 0
      %3631 = vmatmul.mubr.bf16.gmra.mrb[0].mxu0 %v2755
      %v3632 = vpop.f32.mrb[0].mxu0
      %v3633 = vadd.f32 0.0, %v3632
      %v3634 = vpop.f32.mrb[0].mxu0
      %v3635 = vpop.f32.mrb[0].mxu0
      %v3636 = vadd.f32 0.0, %v3635
      %v3637 = vpop.f32.mrb[0].mxu0
      %3638 = vmatprep.mubr.bf16.mxu0 0
      %3639 = vmatmul.mubr.bf16.gmra.mrb[0].mxu0 %v2758
      %v3640 = vpop.f32.mrb[0].mxu0
      %v3641 = vadd.f32 0.0, %v3640
      %v3642 = vpop.f32.mrb[0].mxu0
      %v3643 = vpop.f32.mrb[0].mxu0
      %v3644 = vadd.f32 0.0, %v3643
      %v3645 = vpop.f32.mrb[0].mxu0
      %3646 = vmatprep.mubr.bf16.mxu0 0
      %3647 = vmatmul.mubr.bf16.gmra.mrb[0].mxu0 %v2761
      %v3648 = vpop.f32.mrb[0].mxu0
      %v3649 = vadd.f32 0.0, %v3648
      %v3650 = vpop.f32.mrb[0].mxu0
      %v3651 = vpop.f32.mrb[0].mxu0
      %v3652 = vadd.f32 0.0, %v3651
      %v3653 = vpop.f32.mrb[0].mxu0
      %3654 = vdwg.mxu0
      %v3703 = vrot.slane %v3465, 2
      %v3704 = vrot.slane %v3468, 2
      %v3705 = vsel %vm1414, %v3703, %v3704
      %v3706 = vrot.slane %v3473, 2
      %v3707 = vsel %vm1414, %v3704, %v3706
      %v3708 = vrot.slane %v3476, 2
      %v3709 = vrot.slane %v3481, 2
      %v3710 = vsel %vm1414, %v3708, %v3709
      %v3711 = vrot.slane %v3484, 2
      %v3712 = vsel %vm1414, %v3709, %v3711
      %v3713 = vrot.slane %v3489, 2
      %v3714 = vrot.slane %v3492, 2
      %v3715 = vsel %vm1414, %v3713, %v3714
      %v3716 = vrot.slane %v3497, 2
      %v3717 = vsel %vm1414, %v3714, %v3716
      %v3718 = vrot.slane %v3500, 2
      %v3719 = vrot.slane %v3505, 2
      %v3720 = vsel %vm1414, %v3718, %v3719
      %v3721 = vrot.slane %v3508, 2
      %v3722 = vsel %vm1414, %v3719, %v3721
      %v3723 = vrot.slane %v3513, 2
      %v3724 = vrot.slane %v3516, 2
      %v3725 = vsel %vm1414, %v3723, %v3724
      %v3726 = vrot.slane %v3521, 2
      %v3727 = vsel %vm1414, %v3724, %v3726
      %v3728 = vrot.slane %v3524, 2
      %v3729 = vrot.slane %v3529, 2
      %v3730 = vsel %vm1414, %v3728, %v3729
      %v3731 = vrot.slane %v3532, 2
      %v3732 = vsel %vm1414, %v3729, %v3731
      %v3733 = vrot.slane %v3537, 2
      %v3734 = vrot.slane %v3540, 2
      %v3735 = vsel %vm1414, %v3733, %v3734
      %v3736 = vrot.slane %v3545, 2
      %v3737 = vsel %vm1414, %v3734, %v3736
      %v3738 = vrot.slane %v3548, 2
      %v3739 = vrot.slane %v3553, 2
      %v3740 = vsel %vm1414, %v3738, %v3739
      %v3741 = vrot.slane %v3556, 2
      %v3742 = vsel %vm1414, %v3739, %v3741
      %v3743 = vrot.slane %v3561, 2
      %v3744 = vrot.slane %v3564, 2
      %v3745 = vsel %vm1414, %v3743, %v3744
      %v3746 = vrot.slane %v3569, 2
      %v3747 = vsel %vm1414, %v3744, %v3746
      %v3748 = vrot.slane %v3572, 2
      %v3749 = vrot.slane %v3577, 2
      %v3750 = vsel %vm1414, %v3748, %v3749
      %v3751 = vrot.slane %v3580, 2
      %v3752 = vsel %vm1414, %v3749, %v3751
      %v3753 = vrot.slane %v3585, 2
      %v3754 = vrot.slane %v3588, 2
      %v3755 = vsel %vm1414, %v3753, %v3754
      %v3756 = vrot.slane %v3593, 2
      %v3757 = vsel %vm1414, %v3754, %v3756
      %v3758 = vrot.slane %v3596, 2
      %v3759 = vrot.slane %v3601, 2
      %v3760 = vsel %vm1414, %v3758, %v3759
      %v3761 = vrot.slane %v3604, 2
      %v3762 = vsel %vm1414, %v3759, %v3761
      %v3763 = vrot.slane %v3609, 2
      %v3764 = vrot.slane %v3612, 2
      %v3765 = vsel %vm1414, %v3763, %v3764
      %v3766 = vrot.slane %v3617, 2
      %v3767 = vsel %vm1414, %v3764, %v3766
      %v3768 = vrot.slane %v3620, 2
      %v3769 = vrot.slane %v3625, 2
      %v3770 = vsel %vm1414, %v3768, %v3769
      %v3771 = vrot.slane %v3628, 2
      %v3772 = vsel %vm1414, %v3769, %v3771
      %v3773 = vrot.slane %v3633, 2
      %v3774 = vrot.slane %v3636, 2
      %v3775 = vsel %vm1414, %v3773, %v3774
      %v3776 = vrot.slane %v3641, 2
      %v3777 = vsel %vm1414, %v3774, %v3776
      %v3778 = vrot.slane %v3644, 2
      %v3779 = vrot.slane %v3649, 2
      %v3780 = vsel %vm1414, %v3778, %v3779
      %v3781 = vrot.slane %v3652, 2
      %v3782 = vsel %vm1414, %v3779, %v3781
      %v3815 = vadd.f32 %v3395, %v3705
      %v3816 = vadd.f32 %v3396, %v3707
      %v3817 = vadd.f32 %v3397, %v3710
      %v3818 = vadd.f32 %v3398, %v3712
      %v3819 = vadd.f32 %v3399, %v3715
      %v3820 = vadd.f32 %v3400, %v3717
      %v3821 = vadd.f32 %v3401, %v3720
      %v3822 = vadd.f32 %v3402, %v3722
      %v3823 = vadd.f32 %v3403, %v3725
      %v3824 = vadd.f32 %v3404, %v3727
      %v3825 = vadd.f32 %v3405, %v3730
      %v3826 = vadd.f32 %v3406, %v3732
      %v3827 = vadd.f32 %v3407, %v3735
      %v3828 = vadd.f32 %v3408, %v3737
      %v3829 = vadd.f32 %v3409, %v3740
      %v3830 = vadd.f32 %v3410, %v3742
      %v3831 = vadd.f32 %v3411, %v3745
      %v3832 = vadd.f32 %v3412, %v3747
      %v3833 = vadd.f32 %v3413, %v3750
      %v3834 = vadd.f32 %v3414, %v3752
      %v3835 = vadd.f32 %v3415, %v3755
      %v3836 = vadd.f32 %v3416, %v3757
      %v3837 = vadd.f32 %v3417, %v3760
      %v3838 = vadd.f32 %v3418, %v3762
      %v3839 = vadd.f32 %v3419, %v3765
      %v3840 = vadd.f32 %v3420, %v3767
      %v3841 = vadd.f32 %v3421, %v3770
      %v3842 = vadd.f32 %v3422, %v3772
      %v3843 = vadd.f32 %v3423, %v3775
      %v3844 = vadd.f32 %v3424, %v3777
      %v3845 = vadd.f32 %v3425, %v3780
      %v3846 = vadd.f32 %v3426, %v3782
      %v3847 = vpack.c.bf16 %v3816, %v3815
      %v3848 = vpack.c.bf16 %v3818, %v3817
      %v3849 = vpack.c.bf16 %v3820, %v3819
      %v3850 = vpack.c.bf16 %v3822, %v3821
      %v3851 = vpack.c.bf16 %v3824, %v3823
      %v3852 = vpack.c.bf16 %v3826, %v3825
      %v3853 = vpack.c.bf16 %v3828, %v3827
      %v3854 = vpack.c.bf16 %v3830, %v3829
      %v3855 = vpack.c.bf16 %v3832, %v3831
      %v3856 = vpack.c.bf16 %v3834, %v3833
      %v3857 = vpack.c.bf16 %v3836, %v3835
      %v3858 = vpack.c.bf16 %v3838, %v3837
      %v3859 = vpack.c.bf16 %v3840, %v3839
      %v3860 = vpack.c.bf16 %v3842, %v3841
      %v3861 = vpack.c.bf16 %v3844, %v3843
      %v3862 = vpack.c.bf16 %v3846, %v3845
      %v3879 = vunpack.c.l.b16 %v3847
      %v3880 = vunpack.c.h.b16 %v3847
      %v3881 = vunpack.c.l.b16 %v3848
      %v3882 = vunpack.c.h.b16 %v3848
      %v3883 = vunpack.c.l.b16 %v3849
      %v3884 = vunpack.c.h.b16 %v3849
      %v3885 = vunpack.c.l.b16 %v3850
      %v3886 = vunpack.c.h.b16 %v3850
      %v3887 = vunpack.c.l.b16 %v3851
      %v3888 = vunpack.c.h.b16 %v3851
      %v3889 = vunpack.c.l.b16 %v3852
      %v3890 = vunpack.c.h.b16 %v3852
      %v3891 = vunpack.c.l.b16 %v3853
      %v3892 = vunpack.c.h.b16 %v3853
      %v3893 = vunpack.c.l.b16 %v3854
      %v3894 = vunpack.c.h.b16 %v3854
      %v3895 = vunpack.c.l.b16 %v3855
      %v3896 = vunpack.c.h.b16 %v3855
      %v3897 = vunpack.c.l.b16 %v3856
      %v3898 = vunpack.c.h.b16 %v3856
      %v3899 = vunpack.c.l.b16 %v3857
      %v3900 = vunpack.c.h.b16 %v3857
      %v3901 = vunpack.c.l.b16 %v3858
      %v3902 = vunpack.c.h.b16 %v3858
      %v3903 = vunpack.c.l.b16 %v3859
      %v3904 = vunpack.c.h.b16 %v3859
      %v3905 = vunpack.c.l.b16 %v3860
      %v3906 = vunpack.c.h.b16 %v3860
      %v3907 = vunpack.c.l.b16 %v3861
      %v3908 = vunpack.c.h.b16 %v3861
      %v3909 = vunpack.c.l.b16 %v3862
      %v3910 = vunpack.c.h.b16 %v3862
      %v3911 = vpack.c.b16 %v3879, %v3879
      %v3912 = vpack.c.b16 %v3880, %v3880
      %v3913 = vpack.c.b16 %v3881, %v3881
      %v3914 = vpack.c.b16 %v3882, %v3882
      %v3915 = vpack.c.b16 %v3883, %v3883
      %v3916 = vpack.c.b16 %v3884, %v3884
      %v3917 = vpack.c.b16 %v3885, %v3885
      %v3918 = vpack.c.b16 %v3886, %v3886
      %v3919 = vpack.c.b16 %v3887, %v3887
      %v3920 = vpack.c.b16 %v3888, %v3888
      %v3921 = vpack.c.b16 %v3889, %v3889
      %v3922 = vpack.c.b16 %v3890, %v3890
      %v3923 = vpack.c.b16 %v3891, %v3891
      %v3924 = vpack.c.b16 %v3892, %v3892
      %v3925 = vpack.c.b16 %v3893, %v3893
      %v3926 = vpack.c.b16 %v3894, %v3894
      %v3927 = vpack.c.b16 %v3895, %v3895
      %v3928 = vpack.c.b16 %v3896, %v3896
      %v3929 = vpack.c.b16 %v3897, %v3897
      %v3930 = vpack.c.b16 %v3898, %v3898
      %v3931 = vpack.c.b16 %v3899, %v3899
      %v3932 = vpack.c.b16 %v3900, %v3900
      %v3933 = vpack.c.b16 %v3901, %v3901
      %v3934 = vpack.c.b16 %v3902, %v3902
      %v3935 = vpack.c.b16 %v3903, %v3903
      %v3936 = vpack.c.b16 %v3904, %v3904
      %v3937 = vpack.c.b16 %v3905, %v3905
      %v3938 = vpack.c.b16 %v3906, %v3906
      %v3939 = vpack.c.b16 %v3907, %v3907
      %v3940 = vpack.c.b16 %v3908, %v3908
      %v3941 = vpack.c.b16 %v3909, %v3909
      %v3942 = vpack.c.b16 %v3910, %v3910
      %vm3975 = vcmask 60416
      %3976 = vst.msk [vmem:[%s208] sm:$0xf] %vm3975, %v3911
      %3977 = vst.msk [vmem:[%s208 + $0x4] sm:$0xf] %vm3975, %v3912
      %3978 = vst.msk [vmem:[%s208 + $0x8] sm:$0xf] %vm3975, %v3913
      %3979 = vst.msk [vmem:[%s208 + $0xc] sm:$0xf] %vm3975, %v3914
      %3980 = vst.msk [vmem:[%s208 + $0x10] sm:$0xf] %vm3975, %v3915
      %3981 = vst.msk [vmem:[%s208 + $0x14] sm:$0xf] %vm3975, %v3916
      %3982 = vst.msk [vmem:[%s208 + $0x18] sm:$0xf] %vm3975, %v3917
      %3983 = vst.msk [vmem:[%s208 + $0x1c] sm:$0xf] %vm3975, %v3918
      %3984 = vst.msk [vmem:[%s208 + $0x20] sm:$0xf] %vm3975, %v3919
      %3985 = vst.msk [vmem:[%s208 + $0x24] sm:$0xf] %vm3975, %v3920
      %3986 = vst.msk [vmem:[%s208 + $0x28] sm:$0xf] %vm3975, %v3921
      %3987 = vst.msk [vmem:[%s208 + $0x2c] sm:$0xf] %vm3975, %v3922
      %3988 = vst.msk [vmem:[%s208 + $0x30] sm:$0xf] %vm3975, %v3923
      %3989 = vst.msk [vmem:[%s208 + $0x34] sm:$0xf] %vm3975, %v3924
      %3990 = vst.msk [vmem:[%s208 + $0x38] sm:$0xf] %vm3975, %v3925
      %3991 = vst.msk [vmem:[%s208 + $0x3c] sm:$0xf] %vm3975, %v3926
      %3992 = vst.msk [vmem:[%s208 + $0x40] sm:$0xf] %vm3975, %v3927
      %3993 = vst.msk [vmem:[%s208 + $0x44] sm:$0xf] %vm3975, %v3928
      %3994 = vst.msk [vmem:[%s208 + $0x48] sm:$0xf] %vm3975, %v3929
      %3995 = vst.msk [vmem:[%s208 + $0x4c] sm:$0xf] %vm3975, %v3930
      %3996 = vst.msk [vmem:[%s208 + $0x50] sm:$0xf] %vm3975, %v3931
      %3997 = vst.msk [vmem:[%s208 + $0x54] sm:$0xf] %vm3975, %v3932
      %3998 = vst.msk [vmem:[%s208 + $0x58] sm:$0xf] %vm3975, %v3933
      %3999 = vst.msk [vmem:[%s208 + $0x5c] sm:$0xf] %vm3975, %v3934
      %4000 = vst.msk [vmem:[%s208 + $0x60] sm:$0xf] %vm3975, %v3935
      %4001 = vst.msk [vmem:[%s208 + $0x64] sm:$0xf] %vm3975, %v3936
      %4002 = vst.msk [vmem:[%s208 + $0x68] sm:$0xf] %vm3975, %v3937
      %4003 = vst.msk [vmem:[%s208 + $0x6c] sm:$0xf] %vm3975, %v3938
      %4004 = vst.msk [vmem:[%s208 + $0x70] sm:$0xf] %vm3975, %v3939
      %4005 = vst.msk [vmem:[%s208 + $0x74] sm:$0xf] %vm3975, %v3940
      %4006 = vst.msk [vmem:[%s208 + $0x78] sm:$0xf] %vm3975, %v3941
      %4007 = vst.msk [vmem:[%s208 + $0x7c] sm:$0xf] %vm3975, %v3942
      %v4008 = vadd.f32 %v3815, %v3816
      %v4009 = vadd.f32 %v4008, %v3817
      %v4010 = vadd.f32 %v4009, %v3818
      %v4011 = vadd.f32 %v4010, %v3819
      %v4012 = vadd.f32 %v4011, %v3820
      %v4013 = vadd.f32 %v4012, %v3821
      %v4014 = vadd.f32 %v4013, %v3822
      %v4015 = vadd.f32 %v4014, %v3823
      %v4016 = vadd.f32 %v4015, %v3824
      %v4017 = vadd.f32 %v4016, %v3825
      %v4018 = vadd.f32 %v4017, %v3826
      %v4019 = vadd.f32 %v4018, %v3827
      %v4020 = vadd.f32 %v4019, %v3828
      %v4021 = vadd.f32 %v4020, %v3829
      %v4022 = vadd.f32 %v4021, %v3830
      %v4023 = vadd.f32 %v4022, %v3831
      %v4024 = vadd.f32 %v4023, %v3832
      %v4025 = vadd.f32 %v4024, %v3833
      %v4026 = vadd.f32 %v4025, %v3834
      %v4027 = vadd.f32 %v4026, %v3835
      %v4028 = vadd.f32 %v4027, %v3836
      %v4029 = vadd.f32 %v4028, %v3837
      %v4030 = vadd.f32 %v4029, %v3838
      %v4031 = vadd.f32 %v4030, %v3839
      %v4032 = vadd.f32 %v4031, %v3840
      %v4033 = vadd.f32 %v4032, %v3841
      %v4034 = vadd.f32 %v4033, %v3842
      %v4035 = vadd.f32 %v4034, %v3843
      %v4036 = vadd.f32 %v4035, %v3844
      %v4037 = vadd.f32 %v4036, %v3845
      %v4038 = vadd.f32 %v4037, %v3846
      %v4039 = vrot.slane %v4038, 4
      %v4040 = vadd.f32 %v4038, %v4039
      %v4041 = vrot.slane %v4040, 2
      %v4042 = vadd.f32 %v4040, %v4041
      %v4043 = vrot.slane %v4042, 1
      %v4044 = vadd.f32 %v4042, %v4043
      %4045 = vst [vmem:[%s211] sm:$0x1] %v4044
      %v4046 = vmul.f32 %v3815, %v3815
      %v4047 = vmul.f32 %v3816, %v3816
      %v4048 = vmul.f32 %v3817, %v3817
      %v4049 = vmul.f32 %v3818, %v3818
      %v4050 = vmul.f32 %v3819, %v3819
      %v4051 = vmul.f32 %v3820, %v3820
      %v4052 = vmul.f32 %v3821, %v3821
      %v4053 = vmul.f32 %v3822, %v3822
      %v4054 = vmul.f32 %v3823, %v3823
      %v4055 = vmul.f32 %v3824, %v3824
      %v4056 = vmul.f32 %v3825, %v3825
      %v4057 = vmul.f32 %v3826, %v3826
      %v4058 = vmul.f32 %v3827, %v3827
      %v4059 = vmul.f32 %v3828, %v3828
      %v4060 = vmul.f32 %v3829, %v3829
      %v4061 = vmul.f32 %v3830, %v3830
      %v4062 = vmul.f32 %v3831, %v3831
      %v4063 = vmul.f32 %v3832, %v3832
      %v4064 = vmul.f32 %v3833, %v3833
      %v4065 = vmul.f32 %v3834, %v3834
      %v4066 = vmul.f32 %v3835, %v3835
      %v4067 = vmul.f32 %v3836, %v3836
      %v4068 = vmul.f32 %v3837, %v3837
      %v4069 = vmul.f32 %v3838, %v3838
      %v4070 = vmul.f32 %v3839, %v3839
      %v4071 = vmul.f32 %v3840, %v3840
      %v4072 = vmul.f32 %v3841, %v3841
      %v4073 = vmul.f32 %v3842, %v3842
      %v4074 = vmul.f32 %v3843, %v3843
      %v4075 = vmul.f32 %v3844, %v3844
      %v4076 = vmul.f32 %v3845, %v3845
      %v4077 = vmul.f32 %v3846, %v3846
      %v4078 = vadd.f32 %v4046, %v4047
      %v4079 = vadd.f32 %v4078, %v4048
      %v4080 = vadd.f32 %v4079, %v4049
      %v4081 = vadd.f32 %v4080, %v4050
      %v4082 = vadd.f32 %v4081, %v4051
      %v4083 = vadd.f32 %v4082, %v4052
      %v4084 = vadd.f32 %v4083, %v4053
      %v4085 = vadd.f32 %v4084, %v4054
      %v4086 = vadd.f32 %v4085, %v4055
      %v4087 = vadd.f32 %v4086, %v4056
      %v4088 = vadd.f32 %v4087, %v4057
      %v4089 = vadd.f32 %v4088, %v4058
      %v4090 = vadd.f32 %v4089, %v4059
      %v4091 = vadd.f32 %v4090, %v4060
      %v4092 = vadd.f32 %v4091, %v4061
      %v4093 = vadd.f32 %v4092, %v4062
      %v4094 = vadd.f32 %v4093, %v4063
      %v4095 = vadd.f32 %v4094, %v4064
      %v4096 = vadd.f32 %v4095, %v4065
      %v4097 = vadd.f32 %v4096, %v4066
      %v4098 = vadd.f32 %v4097, %v4067
      %v4099 = vadd.f32 %v4098, %v4068
      %v4100 = vadd.f32 %v4099, %v4069
      %v4101 = vadd.f32 %v4100, %v4070
      %v4102 = vadd.f32 %v4101, %v4071
      %v4103 = vadd.f32 %v4102, %v4072
      %v4104 = vadd.f32 %v4103, %v4073
      %v4105 = vadd.f32 %v4104, %v4074
      %v4106 = vadd.f32 %v4105, %v4075
      %v4107 = vadd.f32 %v4106, %v4076
      %v4108 = vadd.f32 %v4107, %v4077
      %v4109 = vrot.slane %v4108, 4
      %v4110 = vadd.f32 %v4108, %v4109
      %v4111 = vrot.slane %v4110, 2
      %v4112 = vadd.f32 %v4110, %v4111
      %v4113 = vrot.slane %v4112, 1
      %v4114 = vadd.f32 %v4112, %v4113
      %4115 = vst [vmem:[%s214] sm:$0x1] %v4114
      %p4116 = scmp.lt.s32.totalorder %s16, 1
      %s4117 = scalar_select %p4116, %s16, 1
      %s4118 = smul.addr %s4117, 32
      %s4119 = smul.addr %s4118, 4
      %s4120 = scalar_lea.vmem %s2, %s4119
      %p4121 = scmp.lt.s32.totalorder %s16, 1
      %s4122 = scalar_select %p4121, %s16, 1
      %s4123 = scalar_lea.vmem %s3, %s4122
      %p4124 = scmp.lt.s32.totalorder %s16, 1
      %s4125 = scalar_select %p4124, %s16, 1
      %s4126 = scalar_lea.vmem %s4, %s4125
      // Predicated region
      $region29: #{_cbr_forward.2} parent=27 // pred_check
        %p4127 = pneg %p81
      $region30: #{_cbr_forward.2} parent=27 // pred_check_branch
        %4129 = sbr.rel (%p4127) target = $region32
      $region31: #{_cbr_forward.2} parent=27 // pred_region
        _
      $region32: #{_cbr_forward.2} parent=27 // pred_fallthru
        _
      // Predicated region
      $region33: #{_cbr_forward.2} parent=27 // pred_check
        %p4130 = pneg %p107
      $region34: #{_cbr_forward.2} parent=27 // pred_check_branch
        %4132 = sbr.rel (%p4130) target = $region36
      $region35: #{_cbr_forward.2} parent=27 // pred_region
        _
      $region36: #{_cbr_forward.2} parent=27 // pred_fallthru
        _
      // Predicated region
      $region37: #{_cbr_forward.2} parent=27 // pred_check
        %p4133 = pneg %p133
      $region38: #{_cbr_forward.2} parent=27 // pred_check_branch
        %4135 = sbr.rel (%p4133) target = $region40
      $region39: #{_cbr_forward.2} parent=27 // pred_region
        _
      $region40: #{_cbr_forward.2} parent=27 // pred_fallthru
        _
    $region28: #{_cbr_forward.2} parent=5 // pred_fallthru
      _
    %p4136 = scmp.le.s32.totalorder 2, %s11
    // Predicated region
    $region41: #{_cbr_forward.2} parent=5 // pred_check
      %p4137 = pneg %p4136
    $region42: #{_cbr_forward.2} parent=5 // pred_check_branch
      %4139 = sbr.rel (%p4137) target = $region44
    $region43: #{_cbr_forward.2} parent=5 // pred_region
      %s4140 = ssub.s32 %s11, 2
      // Predicated region
      $region45: #{_cbr_forward.2} parent=43 // pred_check
        %p4141 = pneg %p87
      $region46: #{_cbr_forward.2} parent=43 // pred_check_branch
        %4143 = sbr.rel (%p4141) target = $region48
      $region47: #{_cbr_forward.2} parent=43 // pred_region
        %p4144 = scmp.lt.s32.totalorder %s17, 1
        %s4145 = scalar_select %p4144, %s17, 1
        %s4146 = smul.addr %s4145, 32
        %s4147 = smul.addr %s4146, 4
        %s4148 = scalar_lea.vmem %s2, %s4147
      $region48: #{_cbr_forward.2} parent=43 // pred_fallthru
        _
      // Predicated region
      $region49: #{_cbr_forward.2} parent=43 // pred_check
        %p4149 = pneg %p113
      $region50: #{_cbr_forward.2} parent=43 // pred_check_branch
        %4151 = sbr.rel (%p4149) target = $region52
      $region51: #{_cbr_forward.2} parent=43 // pred_region
        %p4152 = scmp.lt.s32.totalorder %s17, 1
        %s4153 = scalar_select %p4152, %s17, 1
        %s4154 = scalar_lea.vmem %s3, %s4153
      $region52: #{_cbr_forward.2} parent=43 // pred_fallthru
        _
      // Predicated region
      $region53: #{_cbr_forward.2} parent=43 // pred_check
        %p4155 = pneg %p139
      $region54: #{_cbr_forward.2} parent=43 // pred_check_branch
        %4157 = sbr.rel (%p4155) target = $region56
      $region55: #{_cbr_forward.2} parent=43 // pred_region
        %p4158 = scmp.lt.s32.totalorder %s17, 1
        %s4159 = scalar_select %p4158, %s17, 1
        %s4160 = scalar_lea.vmem %s4, %s4159
      $region56: #{_cbr_forward.2} parent=43 // pred_fallthru
        _
    $region44: #{_cbr_forward.2} parent=5 // pred_fallthru
      _
  $region6: #{_cbr_forward.2} parent=0 // loop_footer
    %s15 = sadd.s32 1, %s11
  $region7: #{_cbr_forward.2} parent=0 // loop_footer_branch
    %10 = sbr.rel target = $region3
  $region8: #{_cbr_forward.2} parent=0 // loop_exit
    _

</llo_original>
